<compile_context>
chip_gen: v7x
topology: tpu7x:2x2x1
jax: 0.10.0
libtpu: 0.0.40
codegen_flags: <defaults>
</compile_context>

<pallas_src>
import jax
import jax.numpy as jnp
from jax.experimental import pallas as pl
from jax.experimental.pallas import tpu as pltpu

_LANE = 128
_TM_MAX = 512      # im2col rows per tile; ~5 MiB footprint at K=576 (v5e-safe)
_MIN_TILES = 2     # keep both v7x TensorCores busy


def _round_up(x, m):
    return (x + m - 1) // m * m


def _cdiv(a, b):
    return -(-a // b)


def _pad_axis(x, target, axis):
    pad = target - x.shape[axis]
    if pad == 0:
        return x
    cfg = [(0, 0)] * x.ndim
    cfg[axis] = (0, pad)
    return jnp.pad(x, cfg)


def _choose_tile(mout, tm_max=_TM_MAX, min_tiles=_MIN_TILES):
    """M-tile size (multiple of 16) and tile count (>= min_tiles, minimal padding)."""
    n = max(min_tiles, _cdiv(mout, tm_max))
    tm = _round_up(_cdiv(mout, n), 16)
    return tm, n


def _corner_im2col(x_nhwc, kh, kw):
    """bf16 im2col rows grouped by 2x2 pooling corner.

    Returns (4, B, PH, PW, K): row (b, ph, pw) of corner (dr, dc) is the im2col row
    of conv output position (2*ph+dr, 2*pw+dc); the K columns are ordered
    (ki, kj, cin) to match the (KH, KW, Cin, Cout) weight reshape.
    """
    b, h, w, cin = x_nhwc.shape
    oh, ow = h - kh + 1, w - kw + 1
    assert oh % 2 == 0 and ow % 2 == 0, "2x2 pool needs even conv output dims"
    k = kh * kw * cin
    xb = x_nhwc.astype(jnp.bfloat16)
    taps = [xb[:, i:i + oh, j:j + ow, :] for i in range(kh) for j in range(kw)]
    p = jnp.stack(taps, axis=3).reshape(b, oh, ow, k)
    return jnp.stack([p[:, dr::2, dc::2, :] for dr in (0, 1) for dc in (0, 1)],
                     axis=0)                                   # (4, B, PH, PW, K)


# ---------------------------------------------------------------------------
# conv1 / conv2: fused conv-as-matmul + bias + ReLU + 2x2 max-pool
# ---------------------------------------------------------------------------
def _conv_relu_pool_kernel(x_ref, w_ref, b_ref, o_ref):
    """x_ref (4, tm, K) bf16; w_ref (K, Cout) bf16; b_ref (1, Cout) f32;
    o_ref (tm, Cout) bf16."""
    four, tm, k = x_ref.shape
    xx = x_ref[...].reshape(four * tm, k)          # leading-dim merge; tm % 16 == 0
    acc = jnp.dot(xx, w_ref[...], preferred_element_type=jnp.float32)  # (4*tm, Cout)
    # 2x2 max-pool = max over the 4 corner row-groups (tile-aligned row slices).
    y = jnp.maximum(jnp.maximum(acc[0 * tm:1 * tm], acc[1 * tm:2 * tm]),
                    jnp.maximum(acc[2 * tm:3 * tm], acc[3 * tm:4 * tm]))
    y = jnp.maximum(y + b_ref[...], 0.0)           # bias + ReLU after the max (exact)
    o_ref[...] = y.astype(o_ref.dtype)


def conv_relu_pool(x_nhwc, w_oihw, bias, *, tm_max=_TM_MAX):
    """Valid conv (stride 1) + ReLU + 2x2/2 max-pool.  NHWC in, NHWC bf16 out."""
    cout, cin, kh, kw = w_oihw.shape
    b, h, w, c = x_nhwc.shape
    assert c == cin
    ph, pw = (h - kh + 1) // 2, (w - kw + 1) // 2
    k = kh * kw * cin

    corners = _corner_im2col(x_nhwc, kh, kw)
    mout = b * ph * pw
    xmat = corners.reshape(4, mout, k)
    tm, ntiles = _choose_tile(mout, tm_max)
    mp = tm * ntiles
    xmat = _pad_axis(xmat, mp, axis=1)

    wmat = jnp.transpose(w_oihw, (2, 3, 1, 0)).reshape(k, cout).astype(jnp.bfloat16)
    bvec = bias.astype(jnp.float32).reshape(1, cout)

    y = pl.pallas_call(
        _conv_relu_pool_kernel,
        out_shape=jax.ShapeDtypeStruct((mp, cout), jnp.bfloat16),
        grid=(ntiles,),
        in_specs=[
            pl.BlockSpec((4, tm, k), lambda i: (0, i, 0)),   # streamed im2col rows
            pl.BlockSpec((k, cout), lambda i: (0, 0)),       # weights resident
            pl.BlockSpec((1, cout), lambda i: (0, 0)),       # bias resident
        ],
        out_specs=pl.BlockSpec((tm, cout), lambda i: (i, 0)),
        compiler_params=pltpu.CompilerParams(dimension_semantics=("parallel",)),
    )(xmat, wmat, bvec)

    return y[:mout].reshape(b, ph, pw, cout)       # bf16, NHWC


# ---------------------------------------------------------------------------
# conv3 + fc1 + fc2 + fc3 fused, gridded over the batch (one image per program)
# ---------------------------------------------------------------------------
def _conv3_fc_kernel(xc_ref, w3_ref, b3_ref, wf1_ref, bf1_ref, wf2_ref, bf2_ref,
                     wf3_ref, bf3_ref, x3_ref, x4_ref, x5_ref, x6_ref):
    """Per-image: conv3 + bias + ReLU + 2x2 pool, then fc1/fc2/fc3 all in VMEM.

    xc_ref  (1, 4, PP, K3) bf16   corner-grouped im2col rows of this image
    w3_ref  (K3, C3) bf16, b3_ref (1, C3) f32
    wf1_ref (PP, C3, H1) bf16     fc1 weight regrouped per pooled position
    wf2_ref (H1, H2) bf16, wf3_ref (H2, NCp) bf16, bf*_ref (1, *) f32
    x3_ref  (1, PP, C3) f32; x4_ref (1,1,H1); x5_ref (1,1,H2); x6_ref (1,1,NCp) f32
    """
    xc = xc_ref[0]                                  # (4, PP, K3)
    w3 = w3_ref[...]
    y = None
    for c in range(4):                              # 2x2 pooling corners
        acc = jnp.dot(xc[c], w3, preferred_element_type=jnp.float32)   # (PP, C3)
        y = acc if y is None else jnp.maximum(y, acc)
    x3 = jnp.maximum(y + b3_ref[...], 0.0)          # bias + ReLU after pool max
    x3_ref[0] = x3

    # fc1: contract over (pooled position, channel).  wf1 is pre-permuted to the
    # PyTorch NCHW-flatten order; row p of x3 is picked with a mask + sublane sum
    # (avoids unaligned sublane slicing inside the kernel).
    pp = x3.shape[0]
    row_ids = jax.lax.broadcasted_iota(jnp.int32, x3.shape, 0)          # (PP, C3)
    h = bf1_ref[...]
    for p in range(pp):
        xrow = jnp.sum(jnp.where(row_ids == p, x3, 0.0), axis=0, keepdims=True)
        h = h + jnp.dot(xrow.astype(jnp.bfloat16), wf1_ref[p],
                        preferred_element_type=jnp.float32)             # (1, H1)
    h = jnp.maximum(h, 0.0)
    x4_ref[0] = h

    h2 = jnp.dot(h.astype(jnp.bfloat16), wf2_ref[...],
                 preferred_element_type=jnp.float32) + bf2_ref[...]
    h2 = jnp.maximum(h2, 0.0)
    x5_ref[0] = h2

    x6_ref[0] = jnp.dot(h2.astype(jnp.bfloat16), wf3_ref[...],
                        preferred_element_type=jnp.float32) + bf3_ref[...]


def conv3_fc_stack(x2_nhwc, c3_w, c3_b, fc1_w, fc1_b, fc2_w, fc2_b, fc3_w, fc3_b):
    c3out, c3in, kh, kw = c3_w.shape
    b = x2_nhwc.shape[0]
    assert x2_nhwc.shape[3] == c3in
    ph, pw = (x2_nhwc.shape[1] - kh + 1) // 2, (x2_nhwc.shape[2] - kw + 1) // 2
    pp = ph * pw
    k3 = kh * kw * c3in
    h1, h2 = fc1_w.shape[1], fc2_w.shape[1]
    nc = fc3_w.shape[1]
    ncp = _round_up(nc, _LANE)                      # lane-dense fc3 store

    corners = _corner_im2col(x2_nhwc, kh, kw)                   # (4, B, PH, PW, K3)
    xc = jnp.transpose(corners, (1, 0, 2, 3, 4)).reshape(b, 4, pp, k3)

    w3m = jnp.transpose(c3_w, (2, 3, 1, 0)).reshape(k3, c3out).astype(jnp.bfloat16)
    b3v = c3_b.astype(jnp.float32).reshape(1, c3out)
    # PyTorch flattens (C3, PH, PW) channel-major -> fc1 input index = c*PP + p.
    wf1 = fc1_w.reshape(c3out, pp, h1).transpose(1, 0, 2).astype(jnp.bfloat16)
    bf1 = fc1_b.astype(jnp.float32).reshape(1, h1)
    wf2 = fc2_w.astype(jnp.bfloat16)
    bf2 = fc2_b.astype(jnp.float32).reshape(1, h2)
    wf3 = _pad_axis(fc3_w.astype(jnp.bfloat16), ncp, axis=1)
    bf3 = _pad_axis(fc3_b.astype(jnp.float32), ncp, axis=0).reshape(1, ncp)

    x3p, x4, x5, x6 = pl.pallas_call(
        _conv3_fc_kernel,
        out_shape=(jax.ShapeDtypeStruct((b, pp, c3out), jnp.float32),
                   jax.ShapeDtypeStruct((b, 1, h1), jnp.float32),
                   jax.ShapeDtypeStruct((b, 1, h2), jnp.float32),
                   jax.ShapeDtypeStruct((b, 1, ncp), jnp.float32)),
        grid=(b,),
        in_specs=[
            pl.BlockSpec((1, 4, pp, k3), lambda i: (i, 0, 0, 0)),
            pl.BlockSpec((k3, c3out), lambda i: (0, 0)),
            pl.BlockSpec((1, c3out), lambda i: (0, 0)),
            pl.BlockSpec((pp, c3out, h1), lambda i: (0, 0, 0)),
            pl.BlockSpec((1, h1), lambda i: (0, 0)),
            pl.BlockSpec((h1, h2), lambda i: (0, 0)),
            pl.BlockSpec((1, h2), lambda i: (0, 0)),
            pl.BlockSpec((h2, ncp), lambda i: (0, 0)),
            pl.BlockSpec((1, ncp), lambda i: (0, 0)),
        ],
        out_specs=[
            pl.BlockSpec((1, pp, c3out), lambda i: (i, 0, 0)),
            pl.BlockSpec((1, 1, h1), lambda i: (i, 0, 0)),
            pl.BlockSpec((1, 1, h2), lambda i: (i, 0, 0)),
            pl.BlockSpec((1, 1, ncp), lambda i: (i, 0, 0)),
        ],
        compiler_params=pltpu.CompilerParams(dimension_semantics=("parallel",)),
    )(xc, w3m, b3v, wf1, bf1, wf2, bf2, wf3, bf3)

    # x3 in PyTorch NCHW-flatten order: (B, PP, C3) -> (B, C3, PP) -> (B, C3*PP)
    x3 = jnp.transpose(x3p, (0, 2, 1)).reshape(b, c3out * pp)
    return x3, x4.reshape(b, h1), x5.reshape(b, h2), x6.reshape(b, ncp)[:, :nc]


# ---------------------------------------------------------------------------
# Parameters (deterministic synthetic init; FC weights stored as (in, out))
# ---------------------------------------------------------------------------
def init_params(key, num_classes=2):
    ks = jax.random.split(key, 12)

    def rnd(k, shape, scale):
        return jax.random.normal(k, shape, jnp.float32) * scale

    return {
        "c1_w": rnd(ks[0], (32, 3, 5, 5), 0.10),   "c1_b": rnd(ks[1], (32,), 0.10),
        "c2_w": rnd(ks[2], (64, 32, 3, 3), 0.05),  "c2_b": rnd(ks[3], (64,), 0.05),
        "c3_w": rnd(ks[4], (128, 64, 3, 3), 0.05), "c3_b": rnd(ks[5], (128,), 0.05),
        "fc1_w": rnd(ks[6], (512, 128), 0.05),     "fc1_b": rnd(ks[7], (128,), 0.05),
        "fc2_w": rnd(ks[8], (128, 128), 0.05),     "fc2_b": rnd(ks[9], (128,), 0.05),
        "fc3_w": rnd(ks[10], (128, num_classes), 0.05),
        "fc3_b": rnd(ks[11], (num_classes,), 0.05),
    }


# ---------------------------------------------------------------------------
# Forward pass matching ConvNet.forward
# ---------------------------------------------------------------------------
def convnet_forward(params, x_nchw):
    x = jnp.transpose(x_nchw, (0, 2, 3, 1))                       # NCHW -> NHWC

    x1 = conv_relu_pool(x, params["c1_w"], params["c1_b"])        # (B,14,14,32) bf16
    x2 = conv_relu_pool(x1, params["c2_w"], params["c2_b"])       # (B, 6, 6,64) bf16
    x3, x4, x5, logits = conv3_fc_stack(
        x2, params["c3_w"], params["c3_b"],
        params["fc1_w"], params["fc1_b"],
        params["fc2_w"], params["fc2_b"],
        params["fc3_w"], params["fc3_b"])

    # Returned activation copies in f32 / PyTorch NCHW layout.
    x1_nchw = jnp.transpose(x1, (0, 3, 1, 2)).astype(jnp.float32)
    x2_nchw = jnp.transpose(x2, (0, 3, 1, 2)).astype(jnp.float32)
    return logits, [x1_nchw, x2_nchw, x3, x4, x5]


if __name__ == "__main__":
    key = jax.random.PRNGKey(0)
    pkey, xkey = jax.random.split(key)
    params = init_params(pkey, num_classes=2)
    x = jax.random.normal(xkey, (2, 3, 32, 32), jnp.float32)      # NCHW like PyTorch

    fwd = jax.jit(convnet_forward)
    logits, acts = fwd(params, x)
    jax.block_until_ready(logits)
    for a in acts:
        jax.block_until_ready(a)

    assert logits.shape == (2, 2)
    assert acts[0].shape == (2, 32, 14, 14)
    assert acts[1].shape == (2, 64, 6, 6)
    assert acts[2].shape == (2, 512)
    assert acts[3].shape == (2, 128)
    assert acts[4].shape == (2, 128)
    print("KERNEL_OK")
</pallas_src>

<mosaic_0001>
module attributes {stable_mosaic.version = 11 : i64} {
  func.func @_conv_relu_pool_kernel(%arg0: i32, %arg1: memref<4x208x75xbf16, #tpu.memory_space<vmem>>, %arg2: memref<75x32xbf16, #tpu.memory_space<vmem>>, %arg3: memref<1x32xf32, #tpu.memory_space<vmem>>, %arg4: memref<208x32xbf16, #tpu.memory_space<vmem>>) attributes {dimension_semantics = [#tpu.dimension_semantics<parallel>], iteration_bounds = array<i64: 2>, scalar_prefetch = 0 : i64, scratch_operands = 0 : i64, tpu.core_type = #tpu.core_type<tc>, window_params = [{transform_indices = @transform_0, window_bounds = array<i64: 4, 208, 75>}, {pipeline_mode = #tpu.pipeline_mode<synchronous>, transform_indices = @transform_1, window_bounds = array<i64: 75, 32>}, {pipeline_mode = #tpu.pipeline_mode<synchronous>, transform_indices = @transform_2, window_bounds = array<i64: 1, 32>}, {transform_indices = @transform_3, window_bounds = array<i64: 208, 32>}]} {
    %c0 = arith.constant 0 : index
    %c0_0 = arith.constant 0 : index
    %c0_1 = arith.constant 0 : index
    %0 = vector.load %arg1[%c0, %c0_0, %c0_1] : memref<4x208x75xbf16, #tpu.memory_space<vmem>>, vector<4x208x75xbf16>
    %1 = vector.shape_cast %0 : vector<4x208x75xbf16> to vector<832x75xbf16>
    %c0_2 = arith.constant 0 : index
    %c0_3 = arith.constant 0 : index
    %2 = vector.load %arg2[%c0_2, %c0_3] : memref<75x32xbf16, #tpu.memory_space<vmem>>, vector<75x32xbf16>
    %cst = arith.constant dense<0.000000e+00> : vector<832x32xf32>
    %3 = tpu.matmul %1, %2, %cst {dimension_numbers = #tpu.dot_dimension_numbers<[1], [0], [0], [1], [0, 0, 1, 1], [], []>} : vector<832x75xbf16>, vector<75x32xbf16>, vector<832x32xf32> -> vector<832x32xf32>
    %4 = vector.extract_strided_slice %3 {offsets = [0, 0], sizes = [208, 32], strides = [1, 1]} : vector<832x32xf32> to vector<208x32xf32>
    %5 = vector.extract_strided_slice %3 {offsets = [208, 0], sizes = [208, 32], strides = [1, 1]} : vector<832x32xf32> to vector<208x32xf32>
    %6 = arith.maximumf %4, %5 : vector<208x32xf32>
    %7 = vector.extract_strided_slice %3 {offsets = [416, 0], sizes = [208, 32], strides = [1, 1]} : vector<832x32xf32> to vector<208x32xf32>
    %8 = vector.extract_strided_slice %3 {offsets = [624, 0], sizes = [208, 32], strides = [1, 1]} : vector<832x32xf32> to vector<208x32xf32>
    %9 = arith.maximumf %7, %8 : vector<208x32xf32>
    %10 = arith.maximumf %6, %9 : vector<208x32xf32>
    %c0_4 = arith.constant 0 : index
    %c0_5 = arith.constant 0 : index
    %11 = vector.load %arg3[%c0_4, %c0_5] : memref<1x32xf32, #tpu.memory_space<vmem>>, vector<1x32xf32>
    %12 = vector.broadcast %11 : vector<1x32xf32> to vector<208x32xf32>
    %13 = arith.addf %10, %12 : vector<208x32xf32>
    %cst_6 = arith.constant 0.000000e+00 : f32
    %14 = vector.broadcast %cst_6 : f32 to vector<208x32xf32>
    %15 = arith.maximumf %13, %14 : vector<208x32xf32>
    %16 = arith.truncf %15 : vector<208x32xf32> to vector<208x32xbf16>
    %c0_7 = arith.constant 0 : index
    %c0_8 = arith.constant 0 : index
    %17 = vector.load %arg4[%c0_7, %c0_8] : memref<208x32xbf16, #tpu.memory_space<vmem>>, vector<208x32xbf16>
    tpu.vector_store %arg4[%c0_7, %c0_8], %16 {strides = array<i32>} : memref<208x32xbf16, #tpu.memory_space<vmem>>, vector<208x32xbf16>,
    return
  }
  func.func @transform_0(%arg0: i32) -> (i32, i32, i32) {
    %c0_i32 = arith.constant 0 : i32
    %c0_i32_0 = arith.constant 0 : i32
    %c0_i32_1 = arith.constant 0 : i32
    return %c0_i32, %arg0, %c0_i32_0 : i32, i32, i32
  }
  func.func @transform_1(%arg0: i32) -> (i32, i32) {
    %c0_i32 = arith.constant 0 : i32
    %c0_i32_0 = arith.constant 0 : i32
    %c0_i32_1 = arith.constant 0 : i32
    return %c0_i32, %c0_i32_0 : i32, i32
  }
  func.func @transform_2(%arg0: i32) -> (i32, i32) {
    %c0_i32 = arith.constant 0 : i32
    %c0_i32_0 = arith.constant 0 : i32
    %c0_i32_1 = arith.constant 0 : i32
    return %c0_i32, %c0_i32_0 : i32, i32
  }
  func.func @transform_3(%arg0: i32) -> (i32, i32) {
    %c0_i32 = arith.constant 0 : i32
    %c0_i32_0 = arith.constant 0 : i32
    return %arg0, %c0_i32 : i32, i32
  }
}

module attributes {stable_mosaic.version = 11 : i64} {
  func.func @_conv_relu_pool_kernel(%arg0: i32, %arg1: memref<4x48x288xbf16, #tpu.memory_space<vmem>>, %arg2: memref<288x64xbf16, #tpu.memory_space<vmem>>, %arg3: memref<1x64xf32, #tpu.memory_space<vmem>>, %arg4: memref<48x64xbf16, #tpu.memory_space<vmem>>) attributes {dimension_semantics = [#tpu.dimension_semantics<parallel>], iteration_bounds = array<i64: 2>, scalar_prefetch = 0 : i64, scratch_operands = 0 : i64, tpu.core_type = #tpu.core_type<tc>, window_params = [{transform_indices = @transform_0, window_bounds = array<i64: 4, 48, 288>}, {pipeline_mode = #tpu.pipeline_mode<synchronous>, transform_indices = @transform_1, window_bounds = array<i64: 288, 64>}, {pipeline_mode = #tpu.pipeline_mode<synchronous>, transform_indices = @transform_2, window_bounds = array<i64: 1, 64>}, {transform_indices = @transform_3, window_bounds = array<i64: 48, 64>}]} {
    %c0 = arith.constant 0 : index
    %c0_0 = arith.constant 0 : index
    %c0_1 = arith.constant 0 : index
    %0 = vector.load %arg1[%c0, %c0_0, %c0_1] : memref<4x48x288xbf16, #tpu.memory_space<vmem>>, vector<4x48x288xbf16>
    %1 = vector.shape_cast %0 : vector<4x48x288xbf16> to vector<192x288xbf16>
    %c0_2 = arith.constant 0 : index
    %c0_3 = arith.constant 0 : index
    %2 = vector.load %arg2[%c0_2, %c0_3] : memref<288x64xbf16, #tpu.memory_space<vmem>>, vector<288x64xbf16>
    %cst = arith.constant dense<0.000000e+00> : vector<192x64xf32>
    %3 = tpu.matmul %1, %2, %cst {dimension_numbers = #tpu.dot_dimension_numbers<[1], [0], [0], [1], [0, 0, 1, 1], [], []>} : vector<192x288xbf16>, vector<288x64xbf16>, vector<192x64xf32> -> vector<192x64xf32>
    %4 = vector.extract_strided_slice %3 {offsets = [0, 0], sizes = [48, 64], strides = [1, 1]} : vector<192x64xf32> to vector<48x64xf32>
    %5 = vector.extract_strided_slice %3 {offsets = [48, 0], sizes = [48, 64], strides = [1, 1]} : vector<192x64xf32> to vector<48x64xf32>
    %6 = arith.maximumf %4, %5 : vector<48x64xf32>
    %7 = vector.extract_strided_slice %3 {offsets = [96, 0], sizes = [48, 64], strides = [1, 1]} : vector<192x64xf32> to vector<48x64xf32>
    %8 = vector.extract_strided_slice %3 {offsets = [144, 0], sizes = [48, 64], strides = [1, 1]} : vector<192x64xf32> to vector<48x64xf32>
    %9 = arith.maximumf %7, %8 : vector<48x64xf32>
    %10 = arith.maximumf %6, %9 : vector<48x64xf32>
    %c0_4 = arith.constant 0 : index
    %c0_5 = arith.constant 0 : index
    %11 = vector.load %arg3[%c0_4, %c0_5] : memref<1x64xf32, #tpu.memory_space<vmem>>, vector<1x64xf32>
    %12 = vector.broadcast %11 : vector<1x64xf32> to vector<48x64xf32>
    %13 = arith.addf %10, %12 : vector<48x64xf32>
    %cst_6 = arith.constant 0.000000e+00 : f32
    %14 = vector.broadcast %cst_6 : f32 to vector<48x64xf32>
    %15 = arith.maximumf %13, %14 : vector<48x64xf32>
    %16 = arith.truncf %15 : vector<48x64xf32> to vector<48x64xbf16>
    %c0_7 = arith.constant 0 : index
    %c0_8 = arith.constant 0 : index
    %17 = vector.load %arg4[%c0_7, %c0_8] : memref<48x64xbf16, #tpu.memory_space<vmem>>, vector<48x64xbf16>
    tpu.vector_store %arg4[%c0_7, %c0_8], %16 {strides = array<i32>} : memref<48x64xbf16, #tpu.memory_space<vmem>>, vector<48x64xbf16>,
    return
  }
  func.func @transform_0(%arg0: i32) -> (i32, i32, i32) {
    %c0_i32 = arith.constant 0 : i32
    %c0_i32_0 = arith.constant 0 : i32
    %c0_i32_1 = arith.constant 0 : i32
    return %c0_i32, %arg0, %c0_i32_0 : i32, i32, i32
  }
  func.func @transform_1(%arg0: i32) -> (i32, i32) {
    %c0_i32 = arith.constant 0 : i32
    %c0_i32_0 = arith.constant 0 : i32
    %c0_i32_1 = arith.constant 0 : i32
    return %c0_i32, %c0_i32_0 : i32, i32
  }
  func.func @transform_2(%arg0: i32) -> (i32, i32) {
    %c0_i32 = arith.constant 0 : i32
    %c0_i32_0 = arith.constant 0 : i32
    %c0_i32_1 = arith.constant 0 : i32
    return %c0_i32, %c0_i32_0 : i32, i32
  }
  func.func @transform_3(%arg0: i32) -> (i32, i32) {
    %c0_i32 = arith.constant 0 : i32
    %c0_i32_0 = arith.constant 0 : i32
    return %arg0, %c0_i32 : i32, i32
  }
}

module attributes {stable_mosaic.version = 11 : i64} {
  func.func @_conv3_fc_kernel(%arg0: i32, %arg1: memref<1x4x4x576xbf16, #tpu.memory_space<vmem>>, %arg2: memref<576x128xbf16, #tpu.memory_space<vmem>>, %arg3: memref<1x128xf32, #tpu.memory_space<vmem>>, %arg4: memref<4x128x128xbf16, #tpu.memory_space<vmem>>, %arg5: memref<1x128xf32, #tpu.memory_space<vmem>>, %arg6: memref<128x128xbf16, #tpu.memory_space<vmem>>, %arg7: memref<1x128xf32, #tpu.memory_space<vmem>>, %arg8: memref<128x128xbf16, #tpu.memory_space<vmem>>, %arg9: memref<1x128xf32, #tpu.memory_space<vmem>>, %arg10: memref<1x4x128xf32, #tpu.memory_space<vmem>>, %arg11: memref<1x1x128xf32, #tpu.memory_space<vmem>>, %arg12: memref<1x1x128xf32, #tpu.memory_space<vmem>>, %arg13: memref<1x1x128xf32, #tpu.memory_space<vmem>>) attributes {dimension_semantics = [#tpu.dimension_semantics<parallel>], iteration_bounds = array<i64: 2>, scalar_prefetch = 0 : i64, scratch_operands = 0 : i64, tpu.core_type = #tpu.core_type<tc>, window_params = [{transform_indices = @transform_0, window_bounds = array<i64: 1, 4, 4, 576>}, {pipeline_mode = #tpu.pipeline_mode<synchronous>, transform_indices = @transform_1, window_bounds = array<i64: 576, 128>}, {pipeline_mode = #tpu.pipeline_mode<synchronous>, transform_indices = @transform_2, window_bounds = array<i64: 1, 128>}, {pipeline_mode = #tpu.pipeline_mode<synchronous>, transform_indices = @transform_3, window_bounds = array<i64: 4, 128, 128>}, {pipeline_mode = #tpu.pipeline_mode<synchronous>, transform_indices = @transform_4, window_bounds = array<i64: 1, 128>}, {pipeline_mode = #tpu.pipeline_mode<synchronous>, transform_indices = @transform_5, window_bounds = array<i64: 128, 128>}, {pipeline_mode = #tpu.pipeline_mode<synchronous>, transform_indices = @transform_6, window_bounds = array<i64: 1, 128>}, {pipeline_mode = #tpu.pipeline_mode<synchronous>, transform_indices = @transform_7, window_bounds = array<i64: 128, 128>}, {pipeline_mode = #tpu.pipeline_mode<synchronous>, transform_indices = @transform_8, window_bounds = array<i64: 1, 128>}, {transform_indices = @transform_9, window_bounds = array<i64: 1, 4, 128>}, {transform_indices = @transform_10, window_bounds = array<i64: 1, 1, 128>}, {transform_indices = @transform_11, window_bounds = array<i64: 1, 1, 128>}, {transform_indices = @transform_12, window_bounds = array<i64: 1, 1, 128>}]} {
    %c0 = arith.constant 0 : index
    %c0_0 = arith.constant 0 : index
    %c0_1 = arith.constant 0 : index
    %c0_2 = arith.constant 0 : index
    %0 = vector.load %arg1[%c0, %c0_0, %c0_1, %c0_2] : memref<1x4x4x576xbf16, #tpu.memory_space<vmem>>, vector<1x4x4x576xbf16>
    %1 = vector.shape_cast %0 : vector<1x4x4x576xbf16> to vector<4x4x576xbf16>
    %c0_3 = arith.constant 0 : index
    %c0_4 = arith.constant 0 : index
    %2 = vector.load %arg2[%c0_3, %c0_4] : memref<576x128xbf16, #tpu.memory_space<vmem>>, vector<576x128xbf16>
    %3 = vector.extract_strided_slice %1 {offsets = [0, 0, 0], sizes = [1, 4, 576], strides = [1, 1, 1]} : vector<4x4x576xbf16> to vector<1x4x576xbf16>
    %4 = vector.shape_cast %3 : vector<1x4x576xbf16> to vector<4x576xbf16>
    %cst = arith.constant dense<0.000000e+00> : vector<4x128xf32>
    %5 = tpu.matmul %4, %2, %cst {dimension_numbers = #tpu.dot_dimension_numbers<[1], [0], [0], [1], [0, 0, 1, 1], [], []>} : vector<4x576xbf16>, vector<576x128xbf16>, vector<4x128xf32> -> vector<4x128xf32>
    %6 = vector.extract_strided_slice %1 {offsets = [1, 0, 0], sizes = [1, 4, 576], strides = [1, 1, 1]} : vector<4x4x576xbf16> to vector<1x4x576xbf16>
    %7 = vector.shape_cast %6 : vector<1x4x576xbf16> to vector<4x576xbf16>
    %cst_5 = arith.constant dense<0.000000e+00> : vector<4x128xf32>
    %8 = tpu.matmul %7, %2, %cst_5 {dimension_numbers = #tpu.dot_dimension_numbers<[1], [0], [0], [1], [0, 0, 1, 1], [], []>} : vector<4x576xbf16>, vector<576x128xbf16>, vector<4x128xf32> -> vector<4x128xf32>
    %9 = arith.maximumf %5, %8 : vector<4x128xf32>
    %10 = vector.extract_strided_slice %1 {offsets = [2, 0, 0], sizes = [1, 4, 576], strides = [1, 1, 1]} : vector<4x4x576xbf16> to vector<1x4x576xbf16>
    %11 = vector.shape_cast %10 : vector<1x4x576xbf16> to vector<4x576xbf16>
    %cst_6 = arith.constant dense<0.000000e+00> : vector<4x128xf32>
    %12 = tpu.matmul %11, %2, %cst_6 {dimension_numbers = #tpu.dot_dimension_numbers<[1], [0], [0], [1], [0, 0, 1, 1], [], []>} : vector<4x576xbf16>, vector<576x128xbf16>, vector<4x128xf32> -> vector<4x128xf32>
    %13 = arith.maximumf %9, %12 : vector<4x128xf32>
    %14 = vector.extract_strided_slice %1 {offsets = [3, 0, 0], sizes = [1, 4, 576], strides = [1, 1, 1]} : vector<4x4x576xbf16> to vector<1x4x576xbf16>
    %15 = vector.shape_cast %14 : vector<1x4x576xbf16> to vector<4x576xbf16>
    %cst_7 = arith.constant dense<0.000000e+00> : vector<4x128xf32>
    %16 = tpu.matmul %15, %2, %cst_7 {dimension_numbers = #tpu.dot_dimension_numbers<[1], [0], [0], [1], [0, 0, 1, 1], [], []>} : vector<4x576xbf16>, vector<576x128xbf16>, vector<4x128xf32> -> vector<4x128xf32>
    %17 = arith.maximumf %13, %16 : vector<4x128xf32>
    %c0_8 = arith.constant 0 : index
    %c0_9 = arith.constant 0 : index
    %18 = vector.load %arg3[%c0_8, %c0_9] : memref<1x128xf32, #tpu.memory_space<vmem>>, vector<1x128xf32>
    %19 = vector.broadcast %18 : vector<1x128xf32> to vector<4x128xf32>
    %20 = arith.addf %17, %19 : vector<4x128xf32>
    %cst_10 = arith.constant 0.000000e+00 : f32
    %21 = vector.broadcast %cst_10 : f32 to vector<4x128xf32>
    %22 = arith.maximumf %20, %21 : vector<4x128xf32>
    %c0_11 = arith.constant 0 : index
    %c0_12 = arith.constant 0 : index
    %c0_13 = arith.constant 0 : index
    %23 = vector.load %arg10[%c0_11, %c0_12, %c0_13] : memref<1x4x128xf32, #tpu.memory_space<vmem>>, vector<1x4x128xf32>
    %24 = vector.shape_cast %23 : vector<1x4x128xf32> to vector<4x128xf32>
    %25 = vector.shape_cast %22 : vector<4x128xf32> to vector<1x4x128xf32>
    tpu.vector_store %arg10[%c0_11, %c0_12, %c0_13], %25 {strides = array<i32>} : memref<1x4x128xf32, #tpu.memory_space<vmem>>, vector<1x4x128xf32>,
    %26 = tpu.iota {dimensions = array<i32: 0>} : vector<4x128xi32>
    %c0_14 = arith.constant 0 : index
    %c0_15 = arith.constant 0 : index
    %27 = vector.load %arg5[%c0_14, %c0_15] : memref<1x128xf32, #tpu.memory_space<vmem>>, vector<1x128xf32>
    %c0_i32 = arith.constant 0 : i32
    %28 = vector.broadcast %c0_i32 : i32 to vector<4x128xi32>
    %29 = arith.cmpi eq, %26, %28 : vector<4x128xi32>
    %cst_16 = arith.constant 0.000000e+00 : f32
    %30 = vector.broadcast %cst_16 : f32 to vector<4x128xf32>
    %31 = arith.select %29, %22, %30 : vector<4x128xi1>, vector<4x128xf32>
    %cst_17 = arith.constant dense<0.000000e+00> : vector<128xf32>
    %32 = vector.multi_reduction <add>, %31, %cst_17 [0] : vector<4x128xf32> to vector<128xf32>
    %33 = vector.shape_cast %32 : vector<128xf32> to vector<1x128xf32>
    %34 = arith.truncf %33 : vector<1x128xf32> to vector<1x128xbf16>
    %c0_18 = arith.constant 0 : index
    %c0_19 = arith.constant 0 : index
    %c0_20 = arith.constant 0 : index
    %35 = vector.load %arg4[%c0_18, %c0_19, %c0_20] : memref<4x128x128xbf16, #tpu.memory_space<vmem>>, vector<1x128x128xbf16>
    %36 = vector.shape_cast %35 : vector<1x128x128xbf16> to vector<128x128xbf16>
    %cst_21 = arith.constant dense<0.000000e+00> : vector<1x128xf32>
    %37 = tpu.matmul %34, %36, %cst_21 {dimension_numbers = #tpu.dot_dimension_numbers<[1], [0], [0], [1], [0, 0, 1, 1], [], []>} : vector<1x128xbf16>, vector<128x128xbf16>, vector<1x128xf32> -> vector<1x128xf32>
    %38 = arith.addf %27, %37 : vector<1x128xf32>
    %c1_i32 = arith.constant 1 : i32
    %39 = vector.broadcast %c1_i32 : i32 to vector<4x128xi32>
    %40 = arith.cmpi eq, %26, %39 : vector<4x128xi32>
    %cst_22 = arith.constant 0.000000e+00 : f32
    %41 = vector.broadcast %cst_22 : f32 to vector<4x128xf32>
    %42 = arith.select %40, %22, %41 : vector<4x128xi1>, vector<4x128xf32>
    %cst_23 = arith.constant dense<0.000000e+00> : vector<128xf32>
    %43 = vector.multi_reduction <add>, %42, %cst_23 [0] : vector<4x128xf32> to vector<128xf32>
    %44 = vector.shape_cast %43 : vector<128xf32> to vector<1x128xf32>
    %45 = arith.truncf %44 : vector<1x128xf32> to vector<1x128xbf16>
    %c1 = arith.constant 1 : index
    %c0_24 = arith.constant 0 : index
    %c0_25 = arith.constant 0 : index
    %46 = vector.load %arg4[%c1, %c0_24, %c0_25] : memref<4x128x128xbf16, #tpu.memory_space<vmem>>, vector<1x128x128xbf16>
    %47 = vector.shape_cast %46 : vector<1x128x128xbf16> to vector<128x128xbf16>
    %cst_26 = arith.constant dense<0.000000e+00> : vector<1x128xf32>
    %48 = tpu.matmul %45, %47, %cst_26 {dimension_numbers = #tpu.dot_dimension_numbers<[1], [0], [0], [1], [0, 0, 1, 1], [], []>} : vector<1x128xbf16>, vector<128x128xbf16>, vector<1x128xf32> -> vector<1x128xf32>
    %49 = arith.addf %38, %48 : vector<1x128xf32>
    %c2_i32 = arith.constant 2 : i32
    %50 = vector.broadcast %c2_i32 : i32 to vector<4x128xi32>
    %51 = arith.cmpi eq, %26, %50 : vector<4x128xi32>
    %cst_27 = arith.constant 0.000000e+00 : f32
    %52 = vector.broadcast %cst_27 : f32 to vector<4x128xf32>
    %53 = arith.select %51, %22, %52 : vector<4x128xi1>, vector<4x128xf32>
    %cst_28 = arith.constant dense<0.000000e+00> : vector<128xf32>
    %54 = vector.multi_reduction <add>, %53, %cst_28 [0] : vector<4x128xf32> to vector<128xf32>
    %55 = vector.shape_cast %54 : vector<128xf32> to vector<1x128xf32>
    %56 = arith.truncf %55 : vector<1x128xf32> to vector<1x128xbf16>
    %c2 = arith.constant 2 : index
    %c0_29 = arith.constant 0 : index
    %c0_30 = arith.constant 0 : index
    %57 = vector.load %arg4[%c2, %c0_29, %c0_30] : memref<4x128x128xbf16, #tpu.memory_space<vmem>>, vector<1x128x128xbf16>
    %58 = vector.shape_cast %57 : vector<1x128x128xbf16> to vector<128x128xbf16>
    %cst_31 = arith.constant dense<0.000000e+00> : vector<1x128xf32>
    %59 = tpu.matmul %56, %58, %cst_31 {dimension_numbers = #tpu.dot_dimension_numbers<[1], [0], [0], [1], [0, 0, 1, 1], [], []>} : vector<1x128xbf16>, vector<128x128xbf16>, vector<1x128xf32> -> vector<1x128xf32>
    %60 = arith.addf %49, %59 : vector<1x128xf32>
    %c3_i32 = arith.constant 3 : i32
    %61 = vector.broadcast %c3_i32 : i32 to vector<4x128xi32>
    %62 = arith.cmpi eq, %26, %61 : vector<4x128xi32>
    %cst_32 = arith.constant 0.000000e+00 : f32
    %63 = vector.broadcast %cst_32 : f32 to vector<4x128xf32>
    %64 = arith.select %62, %22, %63 : vector<4x128xi1>, vector<4x128xf32>
    %cst_33 = arith.constant dense<0.000000e+00> : vector<128xf32>
    %65 = vector.multi_reduction <add>, %64, %cst_33 [0] : vector<4x128xf32> to vector<128xf32>
    %66 = vector.shape_cast %65 : vector<128xf32> to vector<1x128xf32>
    %67 = arith.truncf %66 : vector<1x128xf32> to vector<1x128xbf16>
    %c3 = arith.constant 3 : index
    %c0_34 = arith.constant 0 : index
    %c0_35 = arith.constant 0 : index
    %68 = vector.load %arg4[%c3, %c0_34, %c0_35] : memref<4x128x128xbf16, #tpu.memory_space<vmem>>, vector<1x128x128xbf16>
    %69 = vector.shape_cast %68 : vector<1x128x128xbf16> to vector<128x128xbf16>
    %cst_36 = arith.constant dense<0.000000e+00> : vector<1x128xf32>
    %70 = tpu.matmul %67, %69, %cst_36 {dimension_numbers = #tpu.dot_dimension_numbers<[1], [0], [0], [1], [0, 0, 1, 1], [], []>} : vector<1x128xbf16>, vector<128x128xbf16>, vector<1x128xf32> -> vector<1x128xf32>
    %71 = arith.addf %60, %70 : vector<1x128xf32>
    %cst_37 = arith.constant 0.000000e+00 : f32
    %72 = vector.broadcast %cst_37 : f32 to vector<1x128xf32>
    %73 = arith.maximumf %71, %72 : vector<1x128xf32>
    %c0_38 = arith.constant 0 : index
    %c0_39 = arith.constant 0 : index
    %c0_40 = arith.constant 0 : index
    %74 = vector.load %arg11[%c0_38, %c0_39, %c0_40] : memref<1x1x128xf32, #tpu.memory_space<vmem>>, vector<1x1x128xf32>
    %75 = vector.shape_cast %74 : vector<1x1x128xf32> to vector<1x128xf32>
    %76 = vector.shape_cast %73 : vector<1x128xf32> to vector<1x1x128xf32>
    tpu.vector_store %arg11[%c0_38, %c0_39, %c0_40], %76 {strides = array<i32>} : memref<1x1x128xf32, #tpu.memory_space<vmem>>, vector<1x1x128xf32>,
    %77 = arith.truncf %73 : vector<1x128xf32> to vector<1x128xbf16>
    %c0_41 = arith.constant 0 : index
    %c0_42 = arith.constant 0 : index
    %78 = vector.load %arg6[%c0_41, %c0_42] : memref<128x128xbf16, #tpu.memory_space<vmem>>, vector<128x128xbf16>
    %cst_43 = arith.constant dense<0.000000e+00> : vector<1x128xf32>
    %79 = tpu.matmul %77, %78, %cst_43 {dimension_numbers = #tpu.dot_dimension_numbers<[1], [0], [0], [1], [0, 0, 1, 1], [], []>} : vector<1x128xbf16>, vector<128x128xbf16>, vector<1x128xf32> -> vector<1x128xf32>
    %c0_44 = arith.constant 0 : index
    %c0_45 = arith.constant 0 : index
    %80 = vector.load %arg7[%c0_44, %c0_45] : memref<1x128xf32, #tpu.memory_space<vmem>>, vector<1x128xf32>
    %81 = arith.addf %79, %80 : vector<1x128xf32>
    %cst_46 = arith.constant 0.000000e+00 : f32
    %82 = vector.broadcast %cst_46 : f32 to vector<1x128xf32>
    %83 = arith.maximumf %81, %82 : vector<1x128xf32>
    %c0_47 = arith.constant 0 : index
    %c0_48 = arith.constant 0 : index
    %c0_49 = arith.constant 0 : index
    %84 = vector.load %arg12[%c0_47, %c0_48, %c0_49] : memref<1x1x128xf32, #tpu.memory_space<vmem>>, vector<1x1x128xf32>
    %85 = vector.shape_cast %84 : vector<1x1x128xf32> to vector<1x128xf32>
    %86 = vector.shape_cast %83 : vector<1x128xf32> to vector<1x1x128xf32>
    tpu.vector_store %arg12[%c0_47, %c0_48, %c0_49], %86 {strides = array<i32>} : memref<1x1x128xf32, #tpu.memory_space<vmem>>, vector<1x1x128xf32>,
    %87 = arith.truncf %83 : vector<1x128xf32> to vector<1x128xbf16>
    %c0_50 = arith.constant 0 : index
    %c0_51 = arith.constant 0 : index
    %88 = vector.load %arg8[%c0_50, %c0_51] : memref<128x128xbf16, #tpu.memory_space<vmem>>, vector<128x128xbf16>
    %cst_52 = arith.constant dense<0.000000e+00> : vector<1x128xf32>
    %89 = tpu.matmul %87, %88, %cst_52 {dimension_numbers = #tpu.dot_dimension_numbers<[1], [0], [0], [1], [0, 0, 1, 1], [], []>} : vector<1x128xbf16>, vector<128x128xbf16>, vector<1x128xf32> -> vector<1x128xf32>
    %c0_53 = arith.constant 0 : index
    %c0_54 = arith.constant 0 : index
    %90 = vector.load %arg9[%c0_53, %c0_54] : memref<1x128xf32, #tpu.memory_space<vmem>>, vector<1x128xf32>
    %91 = arith.addf %89, %90 : vector<1x128xf32>
    %c0_55 = arith.constant 0 : index
    %c0_56 = arith.constant 0 : index
    %c0_57 = arith.constant 0 : index
    %92 = vector.load %arg13[%c0_55, %c0_56, %c0_57] : memref<1x1x128xf32, #tpu.memory_space<vmem>>, vector<1x1x128xf32>
    %93 = vector.shape_cast %92 : vector<1x1x128xf32> to vector<1x128xf32>
    %94 = vector.shape_cast %91 : vector<1x128xf32> to vector<1x1x128xf32>
    tpu.vector_store %arg13[%c0_55, %c0_56, %c0_57], %94 {strides = array<i32>} : memref<1x1x128xf32, #tpu.memory_space<vmem>>, vector<1x1x128xf32>,
    return
  }
  func.func @transform_0(%arg0: i32) -> (i32, i32, i32, i32) {
    %c0_i32 = arith.constant 0 : i32
    %c0_i32_0 = arith.constant 0 : i32
    %c0_i32_1 = arith.constant 0 : i32
    %c0_i32_2 = arith.constant 0 : i32
    return %arg0, %c0_i32, %c0_i32_0, %c0_i32_1 : i32, i32, i32, i32
  }
  func.func @transform_1(%arg0: i32) -> (i32, i32) {
    %c0_i32 = arith.constant 0 : i32
    %c0_i32_0 = arith.constant 0 : i32
    %c0_i32_1 = arith.constant 0 : i32
    return %c0_i32, %c0_i32_0 : i32, i32
  }
  func.func @transform_2(%arg0: i32) -> (i32, i32) {
    %c0_i32 = arith.constant 0 : i32
    %c0_i32_0 = arith.constant 0 : i32
    %c0_i32_1 = arith.constant 0 : i32
    return %c0_i32, %c0_i32_0 : i32, i32
  }
  func.func @transform_3(%arg0: i32) -> (i32, i32, i32) {
    %c0_i32 = arith.constant 0 : i32
    %c0_i32_0 = arith.constant 0 : i32
    %c0_i32_1 = arith.constant 0 : i32
    %c0_i32_2 = arith.constant 0 : i32
    return %c0_i32, %c0_i32_0, %c0_i32_1 : i32, i32, i32
  }
  func.func @transform_4(%arg0: i32) -> (i32, i32) {
    %c0_i32 = arith.constant 0 : i32
    %c0_i32_0 = arith.constant 0 : i32
    %c0_i32_1 = arith.constant 0 : i32
    return %c0_i32, %c0_i32_0 : i32, i32
  }
  func.func @transform_5(%arg0: i32) -> (i32, i32) {
    %c0_i32 = arith.constant 0 : i32
    %c0_i32_0 = arith.constant 0 : i32
    %c0_i32_1 = arith.constant 0 : i32
    return %c0_i32, %c0_i32_0 : i32, i32
  }
  func.func @transform_6(%arg0: i32) -> (i32, i32) {
    %c0_i32 = arith.constant 0 : i32
    %c0_i32_0 = arith.constant 0 : i32
    %c0_i32_1 = arith.constant 0 : i32
    return %c0_i32, %c0_i32_0 : i32, i32
  }
  func.func @transform_7(%arg0: i32) -> (i32, i32) {
    %c0_i32 = arith.constant 0 : i32
    %c0_i32_0 = arith.constant 0 : i32
    %c0_i32_1 = arith.constant 0 : i32
    return %c0_i32, %c0_i32_0 : i32, i32
  }
  func.func @transform_8(%arg0: i32) -> (i32, i32) {
    %c0_i32 = arith.constant 0 : i32
    %c0_i32_0 = arith.constant 0 : i32
    %c0_i32_1 = arith.constant 0 : i32
    return %c0_i32, %c0_i32_0 : i32, i32
  }
  func.func @transform_9(%arg0: i32) -> (i32, i32, i32) {
    %c0_i32 = arith.constant 0 : i32
    %c0_i32_0 = arith.constant 0 : i32
    %c0_i32_1 = arith.constant 0 : i32
    return %arg0, %c0_i32, %c0_i32_0 : i32, i32, i32
  }
  func.func @transform_10(%arg0: i32) -> (i32, i32, i32) {
    %c0_i32 = arith.constant 0 : i32
    %c0_i32_0 = arith.constant 0 : i32
    %c0_i32_1 = arith.constant 0 : i32
    return %arg0, %c0_i32, %c0_i32_0 : i32, i32, i32
  }
  func.func @transform_11(%arg0: i32) -> (i32, i32, i32) {
    %c0_i32 = arith.constant 0 : i32
    %c0_i32_0 = arith.constant 0 : i32
    %c0_i32_1 = arith.constant 0 : i32
    return %arg0, %c0_i32, %c0_i32_0 : i32, i32, i32
  }
  func.func @transform_12(%arg0: i32) -> (i32, i32, i32) {
    %c0_i32 = arith.constant 0 : i32
    %c0_i32_0 = arith.constant 0 : i32
    %c0_i32_1 = arith.constant 0 : i32
    return %arg0, %c0_i32, %c0_i32_0 : i32, i32, i32
  }
}

</mosaic_0001>

<llo_original>
// kernel: convnet_forward.3
$region0: #{convnet_forward.3}
  #allocation0 [shape = 'u32[]', space=smem, size = 0x4, offset = 0x4, fixed_abs, tag = 'smem constant byte address 0x4 - core index']
  #allocation1 [shape = 'u32[144,128]{1,0:T(1,128)}', space=vmem, size = 0x12000, scoped, tag = 'internal scratch']
  %s0 = inlined_call_operand.vmem [shape: bf16[4,416,75], index: 0, kind: input, shape index: {}]
  %s1 = inlined_call_operand.vmem [shape: bf16[75,32], index: 1, kind: input, shape index: {}]
  %s2 = inlined_call_operand.vmem [shape: f32[1,32], index: 2, kind: input, shape index: {}]
  %s3 = inlined_call_operand.vmem [shape: bf16[416,32], index: 3, kind: output, shape index: {}]
  %s4 = sld [smem:[#allocation0]]
  $region86: #{convnet_forward.3} parent=0
    _
  %s6 = ssub.s32 1, %s4
  %s7 = scalar_select 0, %s6, %s4
  $region1: #{convnet_forward.3} parent=0
    #allocation2 [shape = 'u8[425984]{0}', space=vmem, size = 0x68000, scoped, tag = 'input window, operand 0']
    loop: start=0, step=1, limit=4
    $region2: #{convnet_forward.3} parent=1 // loop_pre_header
      _
    $region3: #{convnet_forward.3} parent=1 // loop_header
      %s9 = sphi 0, %s13
      %p10 = scmp.ge.s32.totalorder %s9, 4
      %s19 = sphi 0, %s21
      %s22 = sphi 0, %s19
      %s23 = sphi 0, %s22
      %s39 = sphi 0, %s23
      %s43 = sphi 0, %s43
      %s45 = sphi 0, %s43
      %s46 = sphi 0, %s45
      %s60 = sphi 0, %s46
      %s64 = sphi 0, %s64
      %s66 = sphi 0, %s64
      %s67 = sphi 0, %s66
      %s81 = sphi 0, %s67
      %s87 = sphi 0, %s89
      %s90 = sphi 0, %s87
      %s91 = sphi 0, %s90
      %s107 = sphi 0, %s91
    $region4: #{convnet_forward.3} parent=1 // loop_header_branch
      %12 = sbr.rel (%p10) target = $region8
    $region5: #{convnet_forward.3} parent=1 // loop_body
      %s14 = ssub.s32 %s9, 1
      %s15 = ssub.s32 %s9, 2
      %s16 = sadd.s32 %s9, 1
      %s17 = ssub.s32 %s9, %s16
      %p18 = scmp.eq.s32.totalorder %s17, 0
      %s20 = sadd.s32 %s19, 1
      %s21 = scalar_select %p18, %s19, %s20
      %p24 = pneg %p18
      %p25 = scmp.eq.s32.totalorder %s9, 1
      %p26 = por %p24, %p25
      %p27 = scmp.ne.s32.totalorder %s19, %s22
      %p28 = scmp.eq.s32.totalorder %s9, 0
      %p29 = por %p27, %p28
      %p30 = scmp.ne.s32.totalorder %s19, %s22
      %p31 = scmp.eq.s32.totalorder %s14, 1
      %p32 = por %p30, %p31
      %p33 = scmp.ne.s32.totalorder %s22, %s23
      %p34 = scmp.eq.s32.totalorder %s14, 0
      %p35 = por %p33, %p34
      %p36 = scmp.ne.s32.totalorder %s22, %s23
      %p37 = scmp.eq.s32.totalorder %s15, 1
      %p38 = por %p36, %p37
      %p40 = scmp.ne.s32.totalorder %s23, %s39
      %p41 = scmp.eq.s32.totalorder %s15, 0
      %p42 = por %p40, %p41
      %s44 = sadd.s32 %s43, 1
      %p47 = scmp.eq.s32.totalorder %s9, 1
      %p48 = scmp.ne.s32.totalorder %s43, %s45
      %p49 = scmp.eq.s32.totalorder %s9, 0
      %p50 = por %p48, %p49
      %p51 = scmp.ne.s32.totalorder %s43, %s45
      %p52 = scmp.eq.s32.totalorder %s14, 1
      %p53 = por %p51, %p52
      %p54 = scmp.ne.s32.totalorder %s45, %s46
      %p55 = scmp.eq.s32.totalorder %s14, 0
      %p56 = por %p54, %p55
      %p57 = scmp.ne.s32.totalorder %s45, %s46
      %p58 = scmp.eq.s32.totalorder %s15, 1
      %p59 = por %p57, %p58
      %p61 = scmp.ne.s32.totalorder %s46, %s60
      %p62 = scmp.eq.s32.totalorder %s15, 0
      %p63 = por %p61, %p62
      %s65 = sadd.s32 %s64, 1
      %p68 = scmp.eq.s32.totalorder %s9, 1
      %p69 = scmp.ne.s32.totalorder %s64, %s66
      %p70 = scmp.eq.s32.totalorder %s9, 0
      %p71 = por %p69, %p70
      %p72 = scmp.ne.s32.totalorder %s64, %s66
      %p73 = scmp.eq.s32.totalorder %s14, 1
      %p74 = por %p72, %p73
      %p75 = scmp.ne.s32.totalorder %s66, %s67
      %p76 = scmp.eq.s32.totalorder %s14, 0
      %p77 = por %p75, %p76
      %p78 = scmp.ne.s32.totalorder %s66, %s67
      %p79 = scmp.eq.s32.totalorder %s15, 1
      %p80 = por %p78, %p79
      %p82 = scmp.ne.s32.totalorder %s67, %s81
      %p83 = scmp.eq.s32.totalorder %s15, 0
      %p84 = por %p82, %p83
      %s85 = ssub.s32 %s9, %s16
      %p86 = scmp.eq.s32.totalorder %s85, 0
      %s88 = sadd.s32 %s87, 1
      %s89 = scalar_select %p86, %s87, %s88
      %p92 = pneg %p86
      %p93 = scmp.eq.s32.totalorder %s9, 1
      %p94 = por %p92, %p93
      %p95 = scmp.ne.s32.totalorder %s87, %s90
      %p96 = scmp.eq.s32.totalorder %s9, 0
      %p97 = por %p95, %p96
      %p98 = scmp.ne.s32.totalorder %s87, %s90
      %p99 = scmp.eq.s32.totalorder %s14, 1
      %p100 = por %p98, %p99
      %p101 = scmp.ne.s32.totalorder %s90, %s91
      %p102 = scmp.eq.s32.totalorder %s14, 0
      %p103 = por %p101, %p102
      %p104 = scmp.ne.s32.totalorder %s90, %s91
      %p105 = scmp.eq.s32.totalorder %s15, 1
      %p106 = por %p104, %p105
      %p108 = scmp.ne.s32.totalorder %s91, %s107
      %p109 = scmp.eq.s32.totalorder %s15, 0
      %p110 = por %p108, %p109
      %p111 = scmp.le.s32.totalorder 1, %s9
      %p112 = scmp.lt.s32.totalorder %s9, 3
      %p113 = pnand %p111, %p112
      %p114 = pneg %p113
      // Predicated region
      $region9: #{convnet_forward.3} parent=5 // pred_check
        _
      $region10: #{convnet_forward.3} parent=5 // pred_check_branch
        %116 = sbr.rel (%p113) target = $region12
      $region11: #{convnet_forward.3} parent=5 // pred_region
        %s117 = ssub.s32 %s9, 1
        // Predicated region
        $region13: #{convnet_forward.3} parent=11 // pred_check
          %p118 = pneg %p56
        $region14: #{convnet_forward.3} parent=11 // pred_check_branch
          %120 = sbr.rel (%p118) target = $region16
        $region15: #{convnet_forward.3} parent=11 // pred_region
          _
        $region16: #{convnet_forward.3} parent=11 // pred_fallthru
          _
        // Predicated region
        $region17: #{convnet_forward.3} parent=11 // pred_check
          %p121 = pneg %p77
        $region18: #{convnet_forward.3} parent=11 // pred_check_branch
          %123 = sbr.rel (%p121) target = $region20
        $region19: #{convnet_forward.3} parent=11 // pred_region
          _
        $region20: #{convnet_forward.3} parent=11 // pred_fallthru
          _
      $region12: #{convnet_forward.3} parent=5 // pred_fallthru
        _
      %p124 = scmp.lt.s32.totalorder %s9, 2
      // Predicated region
      $region21: #{convnet_forward.3} parent=5 // pred_check
        %p125 = pneg %p124
      $region22: #{convnet_forward.3} parent=5 // pred_check_branch
        %127 = sbr.rel (%p125) target = $region24
      $region23: #{convnet_forward.3} parent=5 // pred_region
        // Predicated region
        $region25: #{convnet_forward.3} parent=23 // pred_check
          %p128 = pneg %p29
        $region26: #{convnet_forward.3} parent=23 // pred_check_branch
          %130 = sbr.rel (%p128) target = $region28
        $region27: #{convnet_forward.3} parent=23 // pred_region
          %s131 = sand.u32 %s19, 1
          %s132 = sand.u32 %s19, 1
          %s133 = smul.addr %s132, 416
          %s134 = scalar_lea.vmem [#allocation2], %s133
          %s135 = smul.u32 26, %s9
          %s136 = smul.addr %s135, 4
          %s137 = scalar_lea.vmem %s0, %s136
          // Predicated region
          $region29: #{convnet_forward.3} parent=27 // pred_check
            _
          $region30: #{convnet_forward.3} parent=27 // pred_check_branch
            %139 = sbr.rel (0) target = $region32
          $region31: #{convnet_forward.3} parent=27 // pred_region
            // Predicated region
            $region33: #{convnet_forward.3} parent=31 // pred_check
              _
            $region34: #{convnet_forward.3} parent=31 // pred_check_branch
              %141 = sbr.rel target = $region36
            $region35: #{convnet_forward.3} parent=31 // pred_region
              // Predicated region
              $region48: #{convnet_forward.3} parent=35 // pred_check
                _
              $region49: #{convnet_forward.3} parent=35 // pred_check_branch
                %362 = sbr.rel (0) target = $region51
              $region50: #{convnet_forward.3} parent=35 // pred_region
                loop: start=0, step=1, limit=1
                $region52: #{convnet_forward.3} parent=50 // loop_pre_header
                  _
                $region53: #{convnet_forward.3} parent=50 // loop_header
                  %s364 = sphi 0, %s368
                  %p365 = scmp.ge.s32.totalorder %s364, 1
                  %s369 = sphi %s137, %s137
                  %s370 = sphi %s134, %s134
                $region54: #{convnet_forward.3} parent=50 // loop_header_branch
                  %367 = sbr.rel (%p365) target = $region58
                $region55: #{convnet_forward.3} parent=50 // loop_body
                  _
                $region56: #{convnet_forward.3} parent=50 // loop_footer
                  %s368 = sadd.s32 1, %s364
                $region57: #{convnet_forward.3} parent=50 // loop_footer_branch
                  %363 = sbr.rel target = $region53
                $region58: #{convnet_forward.3} parent=50 // loop_exit
                  _
                loop: start=0, step=1, limit=1
                $region59: #{convnet_forward.3} parent=50 // loop_pre_header
                  _
                $region60: #{convnet_forward.3} parent=50 // loop_header
                  %s373 = sphi 0, %s377
                  %p374 = scmp.ge.s32.totalorder %s373, 1
                  %s378 = sphi %s137, %s137
                  %s379 = sphi %s134, %s134
                $region61: #{convnet_forward.3} parent=50 // loop_header_branch
                  %376 = sbr.rel (%p374) target = $region65
                $region62: #{convnet_forward.3} parent=50 // loop_body
                  %v380 = vld [vmem:[%s378] sm:$0xf]
                  %381 = vst [vmem:[%s379] sm:$0xf] %v380
                  %v382 = vld [vmem:[%s378 + $0x4] sm:$0xf]
                  %383 = vst [vmem:[%s379 + $0x4] sm:$0xf] %v382
                  %v384 = vld [vmem:[%s378 + $0x8] sm:$0xf]
                  %385 = vst [vmem:[%s379 + $0x8] sm:$0xf] %v384
                  %v386 = vld [vmem:[%s378 + $0xc] sm:$0xf]
                  %387 = vst [vmem:[%s379 + $0xc] sm:$0xf] %v386
                  %v388 = vld [vmem:[%s378 + $0x10] sm:$0xf]
                  %389 = vst [vmem:[%s379 + $0x10] sm:$0xf] %v388
                  %v390 = vld [vmem:[%s378 + $0x14] sm:$0xf]
                  %391 = vst [vmem:[%s379 + $0x14] sm:$0xf] %v390
                  %v392 = vld [vmem:[%s378 + $0x18] sm:$0xf]
                  %393 = vst [vmem:[%s379 + $0x18] sm:$0xf] %v392
                  %v394 = vld [vmem:[%s378 + $0x1c] sm:$0xf]
                  %395 = vst [vmem:[%s379 + $0x1c] sm:$0xf] %v394
                  %v396 = vld [vmem:[%s378 + $0x20] sm:$0xf]
                  %397 = vst [vmem:[%s379 + $0x20] sm:$0xf] %v396
                  %v398 = vld [vmem:[%s378 + $0x24] sm:$0xf]
                  %399 = vst [vmem:[%s379 + $0x24] sm:$0xf] %v398
                  %v400 = vld [vmem:[%s378 + $0x28] sm:$0xf]
                  %401 = vst [vmem:[%s379 + $0x28] sm:$0xf] %v400
                  %v402 = vld [vmem:[%s378 + $0x2c] sm:$0xf]
                  %403 = vst [vmem:[%s379 + $0x2c] sm:$0xf] %v402
                  %v404 = vld [vmem:[%s378 + $0x30] sm:$0xf]
                  %405 = vst [vmem:[%s379 + $0x30] sm:$0xf] %v404
                  %v406 = vld [vmem:[%s378 + $0x34] sm:$0xf]
                  %407 = vst [vmem:[%s379 + $0x34] sm:$0xf] %v406
                  %v408 = vld [vmem:[%s378 + $0x38] sm:$0xf]
                  %409 = vst [vmem:[%s379 + $0x38] sm:$0xf] %v408
                  %v410 = vld [vmem:[%s378 + $0x3c] sm:$0xf]
                  %411 = vst [vmem:[%s379 + $0x3c] sm:$0xf] %v410
                  %v412 = vld [vmem:[%s378 + $0x40] sm:$0xf]
                  %413 = vst [vmem:[%s379 + $0x40] sm:$0xf] %v412
                  %v414 = vld [vmem:[%s378 + $0x44] sm:$0xf]
                  %415 = vst [vmem:[%s379 + $0x44] sm:$0xf] %v414
                  %v416 = vld [vmem:[%s378 + $0x48] sm:$0xf]
                  %417 = vst [vmem:[%s379 + $0x48] sm:$0xf] %v416
                  %v418 = vld [vmem:[%s378 + $0x4c] sm:$0xf]
                  %419 = vst [vmem:[%s379 + $0x4c] sm:$0xf] %v418
                  %v420 = vld [vmem:[%s378 + $0x50] sm:$0xf]
                  %421 = vst [vmem:[%s379 + $0x50] sm:$0xf] %v420
                  %v422 = vld [vmem:[%s378 + $0x54] sm:$0xf]
                  %423 = vst [vmem:[%s379 + $0x54] sm:$0xf] %v422
                  %v424 = vld [vmem:[%s378 + $0x58] sm:$0xf]
                  %425 = vst [vmem:[%s379 + $0x58] sm:$0xf] %v424
                  %v426 = vld [vmem:[%s378 + $0x5c] sm:$0xf]
                  %427 = vst [vmem:[%s379 + $0x5c] sm:$0xf] %v426
                  %v428 = vld [vmem:[%s378 + $0x60] sm:$0xf]
                  %429 = vst [vmem:[%s379 + $0x60] sm:$0xf] %v428
                  %v430 = vld [vmem:[%s378 + $0x64] sm:$0xf]
                  %431 = vst [vmem:[%s379 + $0x64] sm:$0xf] %v430
                  %v432 = vld [vmem:[%s378 + $0xd0] sm:$0xf]
                  %433 = vst [vmem:[%s379 + $0x68] sm:$0xf] %v432
                  %v434 = vld [vmem:[%s378 + $0xd4] sm:$0xf]
                  %435 = vst [vmem:[%s379 + $0x6c] sm:$0xf] %v434
                  %v436 = vld [vmem:[%s378 + $0xd8] sm:$0xf]
                  %437 = vst [vmem:[%s379 + $0x70] sm:$0xf] %v436
                  %v438 = vld [vmem:[%s378 + $0xdc] sm:$0xf]
                  %439 = vst [vmem:[%s379 + $0x74] sm:$0xf] %v438
                  %v440 = vld [vmem:[%s378 + $0xe0] sm:$0xf]
                  %441 = vst [vmem:[%s379 + $0x78] sm:$0xf] %v440
                  %v442 = vld [vmem:[%s378 + $0xe4] sm:$0xf]
                  %443 = vst [vmem:[%s379 + $0x7c] sm:$0xf] %v442
                  %v444 = vld [vmem:[%s378 + $0xe8] sm:$0xf]
                  %445 = vst [vmem:[%s379 + $0x80] sm:$0xf] %v444
                  %v446 = vld [vmem:[%s378 + $0xec] sm:$0xf]
                  %447 = vst [vmem:[%s379 + $0x84] sm:$0xf] %v446
                  %v448 = vld [vmem:[%s378 + $0xf0] sm:$0xf]
                  %449 = vst [vmem:[%s379 + $0x88] sm:$0xf] %v448
                  %v450 = vld [vmem:[%s378 + $0xf4] sm:$0xf]
                  %451 = vst [vmem:[%s379 + $0x8c] sm:$0xf] %v450
                  %v452 = vld [vmem:[%s378 + $0xf8] sm:$0xf]
                  %453 = vst [vmem:[%s379 + $0x90] sm:$0xf] %v452
                  %v454 = vld [vmem:[%s378 + $0xfc] sm:$0xf]
                  %455 = vst [vmem:[%s379 + $0x94] sm:$0xf] %v454
                  %v456 = vld [vmem:[%s378 + $0x100] sm:$0xf]
                  %457 = vst [vmem:[%s379 + $0x98] sm:$0xf] %v456
                  %v458 = vld [vmem:[%s378 + $0x104] sm:$0xf]
                  %459 = vst [vmem:[%s379 + $0x9c] sm:$0xf] %v458
                  %v460 = vld [vmem:[%s378 + $0x108] sm:$0xf]
                  %461 = vst [vmem:[%s379 + $0xa0] sm:$0xf] %v460
                  %v462 = vld [vmem:[%s378 + $0x10c] sm:$0xf]
                  %463 = vst [vmem:[%s379 + $0xa4] sm:$0xf] %v462
                  %v464 = vld [vmem:[%s378 + $0x110] sm:$0xf]
                  %465 = vst [vmem:[%s379 + $0xa8] sm:$0xf] %v464
                  %v466 = vld [vmem:[%s378 + $0x114] sm:$0xf]
                  %467 = vst [vmem:[%s379 + $0xac] sm:$0xf] %v466
                  %v468 = vld [vmem:[%s378 + $0x118] sm:$0xf]
                  %469 = vst [vmem:[%s379 + $0xb0] sm:$0xf] %v468
                  %v470 = vld [vmem:[%s378 + $0x11c] sm:$0xf]
                  %471 = vst [vmem:[%s379 + $0xb4] sm:$0xf] %v470
                  %v472 = vld [vmem:[%s378 + $0x120] sm:$0xf]
                  %473 = vst [vmem:[%s379 + $0xb8] sm:$0xf] %v472
                  %v474 = vld [vmem:[%s378 + $0x124] sm:$0xf]
                  %475 = vst [vmem:[%s379 + $0xbc] sm:$0xf] %v474
                  %v476 = vld [vmem:[%s378 + $0x128] sm:$0xf]
                  %477 = vst [vmem:[%s379 + $0xc0] sm:$0xf] %v476
                  %v478 = vld [vmem:[%s378 + $0x12c] sm:$0xf]
                  %479 = vst [vmem:[%s379 + $0xc4] sm:$0xf] %v478
                  %v480 = vld [vmem:[%s378 + $0x130] sm:$0xf]
                  %481 = vst [vmem:[%s379 + $0xc8] sm:$0xf] %v480
                  %v482 = vld [vmem:[%s378 + $0x134] sm:$0xf]
                  %483 = vst [vmem:[%s379 + $0xcc] sm:$0xf] %v482
                  %v484 = vld [vmem:[%s378 + $0x1a0] sm:$0xf]
                  %485 = vst [vmem:[%s379 + $0xd0] sm:$0xf] %v484
                  %v486 = vld [vmem:[%s378 + $0x1a4] sm:$0xf]
                  %487 = vst [vmem:[%s379 + $0xd4] sm:$0xf] %v486
                  %v488 = vld [vmem:[%s378 + $0x1a8] sm:$0xf]
                  %489 = vst [vmem:[%s379 + $0xd8] sm:$0xf] %v488
                  %v490 = vld [vmem:[%s378 + $0x1ac] sm:$0xf]
                  %491 = vst [vmem:[%s379 + $0xdc] sm:$0xf] %v490
                  %v492 = vld [vmem:[%s378 + $0x1b0] sm:$0xf]
                  %493 = vst [vmem:[%s379 + $0xe0] sm:$0xf] %v492
                  %v494 = vld [vmem:[%s378 + $0x1b4] sm:$0xf]
                  %495 = vst [vmem:[%s379 + $0xe4] sm:$0xf] %v494
                  %v496 = vld [vmem:[%s378 + $0x1b8] sm:$0xf]
                  %497 = vst [vmem:[%s379 + $0xe8] sm:$0xf] %v496
                  %v498 = vld [vmem:[%s378 + $0x1bc] sm:$0xf]
                  %499 = vst [vmem:[%s379 + $0xec] sm:$0xf] %v498
                  %v500 = vld [vmem:[%s378 + $0x1c0] sm:$0xf]
                  %501 = vst [vmem:[%s379 + $0xf0] sm:$0xf] %v500
                  %v502 = vld [vmem:[%s378 + $0x1c4] sm:$0xf]
                  %503 = vst [vmem:[%s379 + $0xf4] sm:$0xf] %v502
                  %v504 = vld [vmem:[%s378 + $0x1c8] sm:$0xf]
                  %505 = vst [vmem:[%s379 + $0xf8] sm:$0xf] %v504
                  %v506 = vld [vmem:[%s378 + $0x1cc] sm:$0xf]
                  %507 = vst [vmem:[%s379 + $0xfc] sm:$0xf] %v506
                  %v508 = vld [vmem:[%s378 + $0x1d0] sm:$0xf]
                  %509 = vst [vmem:[%s379 + $0x100] sm:$0xf] %v508
                  %v510 = vld [vmem:[%s378 + $0x1d4] sm:$0xf]
                  %511 = vst [vmem:[%s379 + $0x104] sm:$0xf] %v510
                  %v512 = vld [vmem:[%s378 + $0x1d8] sm:$0xf]
                  %513 = vst [vmem:[%s379 + $0x108] sm:$0xf] %v512
                  %v514 = vld [vmem:[%s378 + $0x1dc] sm:$0xf]
                  %515 = vst [vmem:[%s379 + $0x10c] sm:$0xf] %v514
                  %v516 = vld [vmem:[%s378 + $0x1e0] sm:$0xf]
                  %517 = vst [vmem:[%s379 + $0x110] sm:$0xf] %v516
                  %v518 = vld [vmem:[%s378 + $0x1e4] sm:$0xf]
                  %519 = vst [vmem:[%s379 + $0x114] sm:$0xf] %v518
                  %v520 = vld [vmem:[%s378 + $0x1e8] sm:$0xf]
                  %521 = vst [vmem:[%s379 + $0x118] sm:$0xf] %v520
                  %v522 = vld [vmem:[%s378 + $0x1ec] sm:$0xf]
                  %523 = vst [vmem:[%s379 + $0x11c] sm:$0xf] %v522
                  %v524 = vld [vmem:[%s378 + $0x1f0] sm:$0xf]
                  %525 = vst [vmem:[%s379 + $0x120] sm:$0xf] %v524
                  %v526 = vld [vmem:[%s378 + $0x1f4] sm:$0xf]
                  %527 = vst [vmem:[%s379 + $0x124] sm:$0xf] %v526
                  %v528 = vld [vmem:[%s378 + $0x1f8] sm:$0xf]
                  %529 = vst [vmem:[%s379 + $0x128] sm:$0xf] %v528
                  %v530 = vld [vmem:[%s378 + $0x1fc] sm:$0xf]
                  %531 = vst [vmem:[%s379 + $0x12c] sm:$0xf] %v530
                  %v532 = vld [vmem:[%s378 + $0x200] sm:$0xf]
                  %533 = vst [vmem:[%s379 + $0x130] sm:$0xf] %v532
                  %v534 = vld [vmem:[%s378 + $0x204] sm:$0xf]
                  %535 = vst [vmem:[%s379 + $0x134] sm:$0xf] %v534
                  %v536 = vld [vmem:[%s378 + $0x270] sm:$0xf]
                  %537 = vst [vmem:[%s379 + $0x138] sm:$0xf] %v536
                  %v538 = vld [vmem:[%s378 + $0x274] sm:$0xf]
                  %539 = vst [vmem:[%s379 + $0x13c] sm:$0xf] %v538
                  %v540 = vld [vmem:[%s378 + $0x278] sm:$0xf]
                  %541 = vst [vmem:[%s379 + $0x140] sm:$0xf] %v540
                  %v542 = vld [vmem:[%s378 + $0x27c] sm:$0xf]
                  %543 = vst [vmem:[%s379 + $0x144] sm:$0xf] %v542
                  %v544 = vld [vmem:[%s378 + $0x280] sm:$0xf]
                  %545 = vst [vmem:[%s379 + $0x148] sm:$0xf] %v544
                  %v546 = vld [vmem:[%s378 + $0x284] sm:$0xf]
                  %547 = vst [vmem:[%s379 + $0x14c] sm:$0xf] %v546
                  %v548 = vld [vmem:[%s378 + $0x288] sm:$0xf]
                  %549 = vst [vmem:[%s379 + $0x150] sm:$0xf] %v548
                  %v550 = vld [vmem:[%s378 + $0x28c] sm:$0xf]
                  %551 = vst [vmem:[%s379 + $0x154] sm:$0xf] %v550
                  %v552 = vld [vmem:[%s378 + $0x290] sm:$0xf]
                  %553 = vst [vmem:[%s379 + $0x158] sm:$0xf] %v552
                  %v554 = vld [vmem:[%s378 + $0x294] sm:$0xf]
                  %555 = vst [vmem:[%s379 + $0x15c] sm:$0xf] %v554
                  %v556 = vld [vmem:[%s378 + $0x298] sm:$0xf]
                  %557 = vst [vmem:[%s379 + $0x160] sm:$0xf] %v556
                  %v558 = vld [vmem:[%s378 + $0x29c] sm:$0xf]
                  %559 = vst [vmem:[%s379 + $0x164] sm:$0xf] %v558
                  %v560 = vld [vmem:[%s378 + $0x2a0] sm:$0xf]
                  %561 = vst [vmem:[%s379 + $0x168] sm:$0xf] %v560
                  %v562 = vld [vmem:[%s378 + $0x2a4] sm:$0xf]
                  %563 = vst [vmem:[%s379 + $0x16c] sm:$0xf] %v562
                  %v564 = vld [vmem:[%s378 + $0x2a8] sm:$0xf]
                  %565 = vst [vmem:[%s379 + $0x170] sm:$0xf] %v564
                  %v566 = vld [vmem:[%s378 + $0x2ac] sm:$0xf]
                  %567 = vst [vmem:[%s379 + $0x174] sm:$0xf] %v566
                  %v568 = vld [vmem:[%s378 + $0x2b0] sm:$0xf]
                  %569 = vst [vmem:[%s379 + $0x178] sm:$0xf] %v568
                  %v570 = vld [vmem:[%s378 + $0x2b4] sm:$0xf]
                  %571 = vst [vmem:[%s379 + $0x17c] sm:$0xf] %v570
                  %v572 = vld [vmem:[%s378 + $0x2b8] sm:$0xf]
                  %573 = vst [vmem:[%s379 + $0x180] sm:$0xf] %v572
                  %v574 = vld [vmem:[%s378 + $0x2bc] sm:$0xf]
                  %575 = vst [vmem:[%s379 + $0x184] sm:$0xf] %v574
                  %v576 = vld [vmem:[%s378 + $0x2c0] sm:$0xf]
                  %577 = vst [vmem:[%s379 + $0x188] sm:$0xf] %v576
                  %v578 = vld [vmem:[%s378 + $0x2c4] sm:$0xf]
                  %579 = vst [vmem:[%s379 + $0x18c] sm:$0xf] %v578
                  %v580 = vld [vmem:[%s378 + $0x2c8] sm:$0xf]
                  %581 = vst [vmem:[%s379 + $0x190] sm:$0xf] %v580
                  %v582 = vld [vmem:[%s378 + $0x2cc] sm:$0xf]
                  %583 = vst [vmem:[%s379 + $0x194] sm:$0xf] %v582
                  %v584 = vld [vmem:[%s378 + $0x2d0] sm:$0xf]
                  %585 = vst [vmem:[%s379 + $0x198] sm:$0xf] %v584
                  %v586 = vld [vmem:[%s378 + $0x2d4] sm:$0xf]
                  %587 = vst [vmem:[%s379 + $0x19c] sm:$0xf] %v586
                $region63: #{convnet_forward.3} parent=50 // loop_footer
                  %s377 = sadd.s32 1, %s373
                $region64: #{convnet_forward.3} parent=50 // loop_footer_branch
                  %372 = sbr.rel target = $region60
                $region65: #{convnet_forward.3} parent=50 // loop_exit
                  _
              $region51: #{convnet_forward.3} parent=35 // pred_fallthru
                _
            $region36: #{convnet_forward.3} parent=31 // pred_fallthru
              _
            // Predicated region
            $region37: #{convnet_forward.3} parent=31 // pred_check
              _
            $region38: #{convnet_forward.3} parent=31 // pred_check_branch
              %143 = sbr.rel (0) target = $region40
            $region39: #{convnet_forward.3} parent=31 // pred_region
              loop: start=0, step=1, limit=1
              $region41: #{convnet_forward.3} parent=39 // loop_pre_header
                _
              $region42: #{convnet_forward.3} parent=39 // loop_header
                %s146 = sphi 0, %s150
                %p147 = scmp.ge.s32.totalorder %s146, 1
                %s151 = sphi %s137, %s137
                %s152 = sphi %s134, %s134
              $region43: #{convnet_forward.3} parent=39 // loop_header_branch
                %149 = sbr.rel (%p147) target = $region47
              $region44: #{convnet_forward.3} parent=39 // loop_body
                %v153 = vld [vmem:[%s151] sm:$0xf]
                %154 = vst [vmem:[%s152] sm:$0xf] %v153
                %v155 = vld [vmem:[%s151 + $0x4] sm:$0xf]
                %156 = vst [vmem:[%s152 + $0x4] sm:$0xf] %v155
                %v157 = vld [vmem:[%s151 + $0x8] sm:$0xf]
                %158 = vst [vmem:[%s152 + $0x8] sm:$0xf] %v157
                %v159 = vld [vmem:[%s151 + $0xc] sm:$0xf]
                %160 = vst [vmem:[%s152 + $0xc] sm:$0xf] %v159
                %v161 = vld [vmem:[%s151 + $0x10] sm:$0xf]
                %162 = vst [vmem:[%s152 + $0x10] sm:$0xf] %v161
                %v163 = vld [vmem:[%s151 + $0x14] sm:$0xf]
                %164 = vst [vmem:[%s152 + $0x14] sm:$0xf] %v163
                %v165 = vld [vmem:[%s151 + $0x18] sm:$0xf]
                %166 = vst [vmem:[%s152 + $0x18] sm:$0xf] %v165
                %v167 = vld [vmem:[%s151 + $0x1c] sm:$0xf]
                %168 = vst [vmem:[%s152 + $0x1c] sm:$0xf] %v167
                %v169 = vld [vmem:[%s151 + $0x20] sm:$0xf]
                %170 = vst [vmem:[%s152 + $0x20] sm:$0xf] %v169
                %v171 = vld [vmem:[%s151 + $0x24] sm:$0xf]
                %172 = vst [vmem:[%s152 + $0x24] sm:$0xf] %v171
                %v173 = vld [vmem:[%s151 + $0x28] sm:$0xf]
                %174 = vst [vmem:[%s152 + $0x28] sm:$0xf] %v173
                %v175 = vld [vmem:[%s151 + $0x2c] sm:$0xf]
                %176 = vst [vmem:[%s152 + $0x2c] sm:$0xf] %v175
                %v177 = vld [vmem:[%s151 + $0x30] sm:$0xf]
                %178 = vst [vmem:[%s152 + $0x30] sm:$0xf] %v177
                %v179 = vld [vmem:[%s151 + $0x34] sm:$0xf]
                %180 = vst [vmem:[%s152 + $0x34] sm:$0xf] %v179
                %v181 = vld [vmem:[%s151 + $0x38] sm:$0xf]
                %182 = vst [vmem:[%s152 + $0x38] sm:$0xf] %v181
                %v183 = vld [vmem:[%s151 + $0x3c] sm:$0xf]
                %184 = vst [vmem:[%s152 + $0x3c] sm:$0xf] %v183
                %v185 = vld [vmem:[%s151 + $0x40] sm:$0xf]
                %186 = vst [vmem:[%s152 + $0x40] sm:$0xf] %v185
                %v187 = vld [vmem:[%s151 + $0x44] sm:$0xf]
                %188 = vst [vmem:[%s152 + $0x44] sm:$0xf] %v187
                %v189 = vld [vmem:[%s151 + $0x48] sm:$0xf]
                %190 = vst [vmem:[%s152 + $0x48] sm:$0xf] %v189
                %v191 = vld [vmem:[%s151 + $0x4c] sm:$0xf]
                %192 = vst [vmem:[%s152 + $0x4c] sm:$0xf] %v191
                %v193 = vld [vmem:[%s151 + $0x50] sm:$0xf]
                %194 = vst [vmem:[%s152 + $0x50] sm:$0xf] %v193
                %v195 = vld [vmem:[%s151 + $0x54] sm:$0xf]
                %196 = vst [vmem:[%s152 + $0x54] sm:$0xf] %v195
                %v197 = vld [vmem:[%s151 + $0x58] sm:$0xf]
                %198 = vst [vmem:[%s152 + $0x58] sm:$0xf] %v197
                %v199 = vld [vmem:[%s151 + $0x5c] sm:$0xf]
                %200 = vst [vmem:[%s152 + $0x5c] sm:$0xf] %v199
                %v201 = vld [vmem:[%s151 + $0x60] sm:$0xf]
                %202 = vst [vmem:[%s152 + $0x60] sm:$0xf] %v201
                %v203 = vld [vmem:[%s151 + $0x64] sm:$0xf]
                %204 = vst [vmem:[%s152 + $0x64] sm:$0xf] %v203
                %v205 = vld [vmem:[%s151 + $0xd0] sm:$0xf]
                %206 = vst [vmem:[%s152 + $0x68] sm:$0xf] %v205
                %v207 = vld [vmem:[%s151 + $0xd4] sm:$0xf]
                %208 = vst [vmem:[%s152 + $0x6c] sm:$0xf] %v207
                %v209 = vld [vmem:[%s151 + $0xd8] sm:$0xf]
                %210 = vst [vmem:[%s152 + $0x70] sm:$0xf] %v209
                %v211 = vld [vmem:[%s151 + $0xdc] sm:$0xf]
                %212 = vst [vmem:[%s152 + $0x74] sm:$0xf] %v211
                %v213 = vld [vmem:[%s151 + $0xe0] sm:$0xf]
                %214 = vst [vmem:[%s152 + $0x78] sm:$0xf] %v213
                %v215 = vld [vmem:[%s151 + $0xe4] sm:$0xf]
                %216 = vst [vmem:[%s152 + $0x7c] sm:$0xf] %v215
                %v217 = vld [vmem:[%s151 + $0xe8] sm:$0xf]
                %218 = vst [vmem:[%s152 + $0x80] sm:$0xf] %v217
                %v219 = vld [vmem:[%s151 + $0xec] sm:$0xf]
                %220 = vst [vmem:[%s152 + $0x84] sm:$0xf] %v219
                %v221 = vld [vmem:[%s151 + $0xf0] sm:$0xf]
                %222 = vst [vmem:[%s152 + $0x88] sm:$0xf] %v221
                %v223 = vld [vmem:[%s151 + $0xf4] sm:$0xf]
                %224 = vst [vmem:[%s152 + $0x8c] sm:$0xf] %v223
                %v225 = vld [vmem:[%s151 + $0xf8] sm:$0xf]
                %226 = vst [vmem:[%s152 + $0x90] sm:$0xf] %v225
                %v227 = vld [vmem:[%s151 + $0xfc] sm:$0xf]
                %228 = vst [vmem:[%s152 + $0x94] sm:$0xf] %v227
                %v229 = vld [vmem:[%s151 + $0x100] sm:$0xf]
                %230 = vst [vmem:[%s152 + $0x98] sm:$0xf] %v229
                %v231 = vld [vmem:[%s151 + $0x104] sm:$0xf]
                %232 = vst [vmem:[%s152 + $0x9c] sm:$0xf] %v231
                %v233 = vld [vmem:[%s151 + $0x108] sm:$0xf]
                %234 = vst [vmem:[%s152 + $0xa0] sm:$0xf] %v233
                %v235 = vld [vmem:[%s151 + $0x10c] sm:$0xf]
                %236 = vst [vmem:[%s152 + $0xa4] sm:$0xf] %v235
                %v237 = vld [vmem:[%s151 + $0x110] sm:$0xf]
                %238 = vst [vmem:[%s152 + $0xa8] sm:$0xf] %v237
                %v239 = vld [vmem:[%s151 + $0x114] sm:$0xf]
                %240 = vst [vmem:[%s152 + $0xac] sm:$0xf] %v239
                %v241 = vld [vmem:[%s151 + $0x118] sm:$0xf]
                %242 = vst [vmem:[%s152 + $0xb0] sm:$0xf] %v241
                %v243 = vld [vmem:[%s151 + $0x11c] sm:$0xf]
                %244 = vst [vmem:[%s152 + $0xb4] sm:$0xf] %v243
                %v245 = vld [vmem:[%s151 + $0x120] sm:$0xf]
                %246 = vst [vmem:[%s152 + $0xb8] sm:$0xf] %v245
                %v247 = vld [vmem:[%s151 + $0x124] sm:$0xf]
                %248 = vst [vmem:[%s152 + $0xbc] sm:$0xf] %v247
                %v249 = vld [vmem:[%s151 + $0x128] sm:$0xf]
                %250 = vst [vmem:[%s152 + $0xc0] sm:$0xf] %v249
                %v251 = vld [vmem:[%s151 + $0x12c] sm:$0xf]
                %252 = vst [vmem:[%s152 + $0xc4] sm:$0xf] %v251
                %v253 = vld [vmem:[%s151 + $0x130] sm:$0xf]
                %254 = vst [vmem:[%s152 + $0xc8] sm:$0xf] %v253
                %v255 = vld [vmem:[%s151 + $0x134] sm:$0xf]
                %256 = vst [vmem:[%s152 + $0xcc] sm:$0xf] %v255
                %v257 = vld [vmem:[%s151 + $0x1a0] sm:$0xf]
                %258 = vst [vmem:[%s152 + $0xd0] sm:$0xf] %v257
                %v259 = vld [vmem:[%s151 + $0x1a4] sm:$0xf]
                %260 = vst [vmem:[%s152 + $0xd4] sm:$0xf] %v259
                %v261 = vld [vmem:[%s151 + $0x1a8] sm:$0xf]
                %262 = vst [vmem:[%s152 + $0xd8] sm:$0xf] %v261
                %v263 = vld [vmem:[%s151 + $0x1ac] sm:$0xf]
                %264 = vst [vmem:[%s152 + $0xdc] sm:$0xf] %v263
                %v265 = vld [vmem:[%s151 + $0x1b0] sm:$0xf]
                %266 = vst [vmem:[%s152 + $0xe0] sm:$0xf] %v265
                %v267 = vld [vmem:[%s151 + $0x1b4] sm:$0xf]
                %268 = vst [vmem:[%s152 + $0xe4] sm:$0xf] %v267
                %v269 = vld [vmem:[%s151 + $0x1b8] sm:$0xf]
                %270 = vst [vmem:[%s152 + $0xe8] sm:$0xf] %v269
                %v271 = vld [vmem:[%s151 + $0x1bc] sm:$0xf]
                %272 = vst [vmem:[%s152 + $0xec] sm:$0xf] %v271
                %v273 = vld [vmem:[%s151 + $0x1c0] sm:$0xf]
                %274 = vst [vmem:[%s152 + $0xf0] sm:$0xf] %v273
                %v275 = vld [vmem:[%s151 + $0x1c4] sm:$0xf]
                %276 = vst [vmem:[%s152 + $0xf4] sm:$0xf] %v275
                %v277 = vld [vmem:[%s151 + $0x1c8] sm:$0xf]
                %278 = vst [vmem:[%s152 + $0xf8] sm:$0xf] %v277
                %v279 = vld [vmem:[%s151 + $0x1cc] sm:$0xf]
                %280 = vst [vmem:[%s152 + $0xfc] sm:$0xf] %v279
                %v281 = vld [vmem:[%s151 + $0x1d0] sm:$0xf]
                %282 = vst [vmem:[%s152 + $0x100] sm:$0xf] %v281
                %v283 = vld [vmem:[%s151 + $0x1d4] sm:$0xf]
                %284 = vst [vmem:[%s152 + $0x104] sm:$0xf] %v283
                %v285 = vld [vmem:[%s151 + $0x1d8] sm:$0xf]
                %286 = vst [vmem:[%s152 + $0x108] sm:$0xf] %v285
                %v287 = vld [vmem:[%s151 + $0x1dc] sm:$0xf]
                %288 = vst [vmem:[%s152 + $0x10c] sm:$0xf] %v287
                %v289 = vld [vmem:[%s151 + $0x1e0] sm:$0xf]
                %290 = vst [vmem:[%s152 + $0x110] sm:$0xf] %v289
                %v291 = vld [vmem:[%s151 + $0x1e4] sm:$0xf]
                %292 = vst [vmem:[%s152 + $0x114] sm:$0xf] %v291
                %v293 = vld [vmem:[%s151 + $0x1e8] sm:$0xf]
                %294 = vst [vmem:[%s152 + $0x118] sm:$0xf] %v293
                %v295 = vld [vmem:[%s151 + $0x1ec] sm:$0xf]
                %296 = vst [vmem:[%s152 + $0x11c] sm:$0xf] %v295
                %v297 = vld [vmem:[%s151 + $0x1f0] sm:$0xf]
                %298 = vst [vmem:[%s152 + $0x120] sm:$0xf] %v297
                %v299 = vld [vmem:[%s151 + $0x1f4] sm:$0xf]
                %300 = vst [vmem:[%s152 + $0x124] sm:$0xf] %v299
                %v301 = vld [vmem:[%s151 + $0x1f8] sm:$0xf]
                %302 = vst [vmem:[%s152 + $0x128] sm:$0xf] %v301
                %v303 = vld [vmem:[%s151 + $0x1fc] sm:$0xf]
                %304 = vst [vmem:[%s152 + $0x12c] sm:$0xf] %v303
                %v305 = vld [vmem:[%s151 + $0x200] sm:$0xf]
                %306 = vst [vmem:[%s152 + $0x130] sm:$0xf] %v305
                %v307 = vld [vmem:[%s151 + $0x204] sm:$0xf]
                %308 = vst [vmem:[%s152 + $0x134] sm:$0xf] %v307
                %v309 = vld [vmem:[%s151 + $0x270] sm:$0xf]
                %310 = vst [vmem:[%s152 + $0x138] sm:$0xf] %v309
                %v311 = vld [vmem:[%s151 + $0x274] sm:$0xf]
                %312 = vst [vmem:[%s152 + $0x13c] sm:$0xf] %v311
                %v313 = vld [vmem:[%s151 + $0x278] sm:$0xf]
                %314 = vst [vmem:[%s152 + $0x140] sm:$0xf] %v313
                %v315 = vld [vmem:[%s151 + $0x27c] sm:$0xf]
                %316 = vst [vmem:[%s152 + $0x144] sm:$0xf] %v315
                %v317 = vld [vmem:[%s151 + $0x280] sm:$0xf]
                %318 = vst [vmem:[%s152 + $0x148] sm:$0xf] %v317
                %v319 = vld [vmem:[%s151 + $0x284] sm:$0xf]
                %320 = vst [vmem:[%s152 + $0x14c] sm:$0xf] %v319
                %v321 = vld [vmem:[%s151 + $0x288] sm:$0xf]
                %322 = vst [vmem:[%s152 + $0x150] sm:$0xf] %v321
                %v323 = vld [vmem:[%s151 + $0x28c] sm:$0xf]
                %324 = vst [vmem:[%s152 + $0x154] sm:$0xf] %v323
                %v325 = vld [vmem:[%s151 + $0x290] sm:$0xf]
                %326 = vst [vmem:[%s152 + $0x158] sm:$0xf] %v325
                %v327 = vld [vmem:[%s151 + $0x294] sm:$0xf]
                %328 = vst [vmem:[%s152 + $0x15c] sm:$0xf] %v327
                %v329 = vld [vmem:[%s151 + $0x298] sm:$0xf]
                %330 = vst [vmem:[%s152 + $0x160] sm:$0xf] %v329
                %v331 = vld [vmem:[%s151 + $0x29c] sm:$0xf]
                %332 = vst [vmem:[%s152 + $0x164] sm:$0xf] %v331
                %v333 = vld [vmem:[%s151 + $0x2a0] sm:$0xf]
                %334 = vst [vmem:[%s152 + $0x168] sm:$0xf] %v333
                %v335 = vld [vmem:[%s151 + $0x2a4] sm:$0xf]
                %336 = vst [vmem:[%s152 + $0x16c] sm:$0xf] %v335
                %v337 = vld [vmem:[%s151 + $0x2a8] sm:$0xf]
                %338 = vst [vmem:[%s152 + $0x170] sm:$0xf] %v337
                %v339 = vld [vmem:[%s151 + $0x2ac] sm:$0xf]
                %340 = vst [vmem:[%s152 + $0x174] sm:$0xf] %v339
                %v341 = vld [vmem:[%s151 + $0x2b0] sm:$0xf]
                %342 = vst [vmem:[%s152 + $0x178] sm:$0xf] %v341
                %v343 = vld [vmem:[%s151 + $0x2b4] sm:$0xf]
                %344 = vst [vmem:[%s152 + $0x17c] sm:$0xf] %v343
                %v345 = vld [vmem:[%s151 + $0x2b8] sm:$0xf]
                %346 = vst [vmem:[%s152 + $0x180] sm:$0xf] %v345
                %v347 = vld [vmem:[%s151 + $0x2bc] sm:$0xf]
                %348 = vst [vmem:[%s152 + $0x184] sm:$0xf] %v347
                %v349 = vld [vmem:[%s151 + $0x2c0] sm:$0xf]
                %350 = vst [vmem:[%s152 + $0x188] sm:$0xf] %v349
                %v351 = vld [vmem:[%s151 + $0x2c4] sm:$0xf]
                %352 = vst [vmem:[%s152 + $0x18c] sm:$0xf] %v351
                %v353 = vld [vmem:[%s151 + $0x2c8] sm:$0xf]
                %354 = vst [vmem:[%s152 + $0x190] sm:$0xf] %v353
                %v355 = vld [vmem:[%s151 + $0x2cc] sm:$0xf]
                %356 = vst [vmem:[%s152 + $0x194] sm:$0xf] %v355
                %v357 = vld [vmem:[%s151 + $0x2d0] sm:$0xf]
                %358 = vst [vmem:[%s152 + $0x198] sm:$0xf] %v357
                %v359 = vld [vmem:[%s151 + $0x2d4] sm:$0xf]
                %360 = vst [vmem:[%s152 + $0x19c] sm:$0xf] %v359
              $region45: #{convnet_forward.3} parent=39 // loop_footer
                %s150 = sadd.s32 1, %s146
              $region46: #{convnet_forward.3} parent=39 // loop_footer_branch
                %145 = sbr.rel target = $region42
              $region47: #{convnet_forward.3} parent=39 // loop_exit
                _
            $region40: #{convnet_forward.3} parent=31 // pred_fallthru
              _
          $region32: #{convnet_forward.3} parent=27 // pred_fallthru
            _
          %588 = vnop
        $region28: #{convnet_forward.3} parent=23 // pred_fallthru
          _
      $region24: #{convnet_forward.3} parent=5 // pred_fallthru
        _
      %p589 = scmp.le.s32.totalorder 1, %s9
      %p590 = scmp.lt.s32.totalorder %s9, 3
      %p591 = pnand %p589, %p590
      %p592 = pneg %p591
      // Predicated region
      $region66: #{convnet_forward.3} parent=5 // pred_check
        _
      $region67: #{convnet_forward.3} parent=5 // pred_check_branch
        %594 = sbr.rel (%p591) target = $region69
      $region68: #{convnet_forward.3} parent=5 // pred_region
        %s595 = ssub.s32 %s9, 1
        %s596 = sand.u32 %s22, 1
        %s597 = sand.u32 %s22, 1
        %s598 = smul.addr %s597, 416
        %s599 = scalar_lea.vmem [#allocation2], %s598
        // Predicated region
        $region70: #{convnet_forward.3} parent=68 // pred_check
          %p600 = pneg %p35
        $region71: #{convnet_forward.3} parent=68 // pred_check_branch
          %602 = sbr.rel (%p600) target = $region73
        $region72: #{convnet_forward.3} parent=68 // pred_region
          _
        $region73: #{convnet_forward.3} parent=68 // pred_fallthru
          _
        %s603 = sand.u32 %s22, 1
        %s604 = sand.u32 %s22, 1
        %s605 = smul.addr %s604, 416
        %s606 = scalar_lea.vmem [#allocation2], %s605
        %p607 = pneg %p35
        %p608 = pneg %p32
        %p609 = pneg %p56
        %p610 = pneg %p53
        %p611 = pneg %p77
        %p612 = pneg %p74
        %p613 = pneg %p103
        %p614 = pneg %p100
        %s615 = smul.u32 26, %s14
        %p616 = scmp.lt.s32.totalorder %s615, 51
        %s617 = scalar_select %p616, %s615, 51
        %s618 = smul.addr %s617, 4
        %s619 = scalar_lea.vmem %s3, %s618
        %s620 = smul.u32 26, %s14
        %s621 = smul.u32 26, %s14
        %p622 = scmp.lt.s32.totalorder %s621, 51
        %s623 = scalar_select %p622, %s621, 51
        %s624 = smul.addr %s623, 4
        %s625 = scalar_lea.vmem %s3, %s624
        %s626 = smul.u32 26, %s14
        %v628 = vld [vmem:[%s599] sm:$0xf]
        %v629 = vld [vmem:[%s599 + $0x4] sm:$0xf]
        %v630 = vld [vmem:[%s599 + $0x8] sm:$0xf]
        %v631 = vld [vmem:[%s599 + $0xc] sm:$0xf]
        %v632 = vld [vmem:[%s599 + $0x10] sm:$0xf]
        %v633 = vld [vmem:[%s599 + $0x14] sm:$0xf]
        %v634 = vld [vmem:[%s599 + $0x18] sm:$0xf]
        %v635 = vld [vmem:[%s599 + $0x1c] sm:$0xf]
        %v636 = vld [vmem:[%s599 + $0x20] sm:$0xf]
        %v637 = vld [vmem:[%s599 + $0x24] sm:$0xf]
        %v638 = vld [vmem:[%s599 + $0x28] sm:$0xf]
        %v639 = vld [vmem:[%s599 + $0x2c] sm:$0xf]
        %v640 = vld [vmem:[%s599 + $0x30] sm:$0xf]
        %v641 = vld [vmem:[%s599 + $0x34] sm:$0xf]
        %v642 = vld [vmem:[%s599 + $0x38] sm:$0xf]
        %v643 = vld [vmem:[%s599 + $0x3c] sm:$0xf]
        %v644 = vld [vmem:[%s599 + $0x40] sm:$0xf]
        %v645 = vld [vmem:[%s599 + $0x44] sm:$0xf]
        %v646 = vld [vmem:[%s599 + $0x48] sm:$0xf]
        %v647 = vld [vmem:[%s599 + $0x4c] sm:$0xf]
        %v648 = vld [vmem:[%s599 + $0x50] sm:$0xf]
        %v649 = vld [vmem:[%s599 + $0x54] sm:$0xf]
        %v650 = vld [vmem:[%s599 + $0x58] sm:$0xf]
        %v651 = vld [vmem:[%s599 + $0x5c] sm:$0xf]
        %v652 = vld [vmem:[%s599 + $0x60] sm:$0xf]
        %v653 = vld [vmem:[%s599 + $0x64] sm:$0xf]
        %v654 = vld [vmem:[%s599 + $0x68] sm:$0xf]
        %v655 = vld [vmem:[%s599 + $0x6c] sm:$0xf]
        %v656 = vld [vmem:[%s599 + $0x70] sm:$0xf]
        %v657 = vld [vmem:[%s599 + $0x74] sm:$0xf]
        %v658 = vld [vmem:[%s599 + $0x78] sm:$0xf]
        %v659 = vld [vmem:[%s599 + $0x7c] sm:$0xf]
        %v660 = vld [vmem:[%s599 + $0x80] sm:$0xf]
        %v661 = vld [vmem:[%s599 + $0x84] sm:$0xf]
        %v662 = vld [vmem:[%s599 + $0x88] sm:$0xf]
        %v663 = vld [vmem:[%s599 + $0x8c] sm:$0xf]
        %v664 = vld [vmem:[%s599 + $0x90] sm:$0xf]
        %v665 = vld [vmem:[%s599 + $0x94] sm:$0xf]
        %v666 = vld [vmem:[%s599 + $0x98] sm:$0xf]
        %v667 = vld [vmem:[%s599 + $0x9c] sm:$0xf]
        %v668 = vld [vmem:[%s599 + $0xa0] sm:$0xf]
        %v669 = vld [vmem:[%s599 + $0xa4] sm:$0xf]
        %v670 = vld [vmem:[%s599 + $0xa8] sm:$0xf]
        %v671 = vld [vmem:[%s599 + $0xac] sm:$0xf]
        %v672 = vld [vmem:[%s599 + $0xb0] sm:$0xf]
        %v673 = vld [vmem:[%s599 + $0xb4] sm:$0xf]
        %v674 = vld [vmem:[%s599 + $0xb8] sm:$0xf]
        %v675 = vld [vmem:[%s599 + $0xbc] sm:$0xf]
        %v676 = vld [vmem:[%s599 + $0xc0] sm:$0xf]
        %v677 = vld [vmem:[%s599 + $0xc4] sm:$0xf]
        %v678 = vld [vmem:[%s599 + $0xc8] sm:$0xf]
        %v679 = vld [vmem:[%s599 + $0xcc] sm:$0xf]
        %v680 = vld [vmem:[%s599 + $0xd0] sm:$0xf]
        %v681 = vld [vmem:[%s599 + $0xd4] sm:$0xf]
        %v682 = vld [vmem:[%s599 + $0xd8] sm:$0xf]
        %v683 = vld [vmem:[%s599 + $0xdc] sm:$0xf]
        %v684 = vld [vmem:[%s599 + $0xe0] sm:$0xf]
        %v685 = vld [vmem:[%s599 + $0xe4] sm:$0xf]
        %v686 = vld [vmem:[%s599 + $0xe8] sm:$0xf]
        %v687 = vld [vmem:[%s599 + $0xec] sm:$0xf]
        %v688 = vld [vmem:[%s599 + $0xf0] sm:$0xf]
        %v689 = vld [vmem:[%s599 + $0xf4] sm:$0xf]
        %v690 = vld [vmem:[%s599 + $0xf8] sm:$0xf]
        %v691 = vld [vmem:[%s599 + $0xfc] sm:$0xf]
        %v692 = vld [vmem:[%s599 + $0x100] sm:$0xf]
        %v693 = vld [vmem:[%s599 + $0x104] sm:$0xf]
        %v694 = vld [vmem:[%s599 + $0x108] sm:$0xf]
        %v695 = vld [vmem:[%s599 + $0x10c] sm:$0xf]
        %v696 = vld [vmem:[%s599 + $0x110] sm:$0xf]
        %v697 = vld [vmem:[%s599 + $0x114] sm:$0xf]
        %v698 = vld [vmem:[%s599 + $0x118] sm:$0xf]
        %v699 = vld [vmem:[%s599 + $0x11c] sm:$0xf]
        %v700 = vld [vmem:[%s599 + $0x120] sm:$0xf]
        %v701 = vld [vmem:[%s599 + $0x124] sm:$0xf]
        %v702 = vld [vmem:[%s599 + $0x128] sm:$0xf]
        %v703 = vld [vmem:[%s599 + $0x12c] sm:$0xf]
        %v704 = vld [vmem:[%s599 + $0x130] sm:$0xf]
        %v705 = vld [vmem:[%s599 + $0x134] sm:$0xf]
        %v706 = vld [vmem:[%s599 + $0x138] sm:$0xf]
        %v707 = vld [vmem:[%s599 + $0x13c] sm:$0xf]
        %v708 = vld [vmem:[%s599 + $0x140] sm:$0xf]
        %v709 = vld [vmem:[%s599 + $0x144] sm:$0xf]
        %v710 = vld [vmem:[%s599 + $0x148] sm:$0xf]
        %v711 = vld [vmem:[%s599 + $0x14c] sm:$0xf]
        %v712 = vld [vmem:[%s599 + $0x150] sm:$0xf]
        %v713 = vld [vmem:[%s599 + $0x154] sm:$0xf]
        %v714 = vld [vmem:[%s599 + $0x158] sm:$0xf]
        %v715 = vld [vmem:[%s599 + $0x15c] sm:$0xf]
        %v716 = vld [vmem:[%s599 + $0x160] sm:$0xf]
        %v717 = vld [vmem:[%s599 + $0x164] sm:$0xf]
        %v718 = vld [vmem:[%s599 + $0x168] sm:$0xf]
        %v719 = vld [vmem:[%s599 + $0x16c] sm:$0xf]
        %v720 = vld [vmem:[%s599 + $0x170] sm:$0xf]
        %v721 = vld [vmem:[%s599 + $0x174] sm:$0xf]
        %v722 = vld [vmem:[%s599 + $0x178] sm:$0xf]
        %v723 = vld [vmem:[%s599 + $0x17c] sm:$0xf]
        %v724 = vld [vmem:[%s599 + $0x180] sm:$0xf]
        %v725 = vld [vmem:[%s599 + $0x184] sm:$0xf]
        %v726 = vld [vmem:[%s599 + $0x188] sm:$0xf]
        %v727 = vld [vmem:[%s599 + $0x18c] sm:$0xf]
        %v728 = vld [vmem:[%s599 + $0x190] sm:$0xf]
        %v729 = vld [vmem:[%s599 + $0x194] sm:$0xf]
        %v730 = vld [vmem:[%s599 + $0x198] sm:$0xf]
        %v731 = vld [vmem:[%s599 + $0x19c] sm:$0xf]
        %v732 = vld [vmem:[%s1] sm:$0xf]
        %v733 = vld [vmem:[%s1 + $0x4] sm:$0xf]
        %v734 = vld [vmem:[%s1 + $0x8] sm:$0xf]
        %v735 = vld [vmem:[%s1 + $0xc] sm:$0xf]
        %v736 = vld [vmem:[%s1 + $0x10] sm:$0xf]
        %v737 = vld [vmem:[%s1 + $0x14] sm:$0xf]
        %v738 = vld [vmem:[%s1 + $0x18] sm:$0xf]
        %v739 = vld [vmem:[%s1 + $0x1c] sm:$0xf]
        %v740 = vld [vmem:[%s1 + $0x20] sm:$0xf]
        %v741 = vld [vmem:[%s1 + $0x24] sm:$0x3]
        %v846 = vunpack.c.l.b16 %v628
        %v847 = vunpack.c.l.b16 %v629
        %v848 = vunpack.c.l.b16 %v630
        %v849 = vunpack.c.l.b16 %v631
        %v850 = vunpack.c.l.b16 %v632
        %v851 = vunpack.c.l.b16 %v633
        %v852 = vunpack.c.l.b16 %v634
        %v853 = vunpack.c.l.b16 %v635
        %v854 = vunpack.c.l.b16 %v636
        %v855 = vunpack.c.l.b16 %v637
        %v856 = vunpack.c.l.b16 %v638
        %v857 = vunpack.c.l.b16 %v639
        %v858 = vunpack.c.l.b16 %v640
        %v859 = vunpack.c.l.b16 %v641
        %v860 = vunpack.c.l.b16 %v642
        %v861 = vunpack.c.l.b16 %v643
        %v862 = vunpack.c.l.b16 %v644
        %v863 = vunpack.c.l.b16 %v645
        %v864 = vunpack.c.l.b16 %v646
        %v865 = vunpack.c.l.b16 %v647
        %v866 = vunpack.c.l.b16 %v648
        %v867 = vunpack.c.l.b16 %v649
        %v868 = vunpack.c.l.b16 %v650
        %v869 = vunpack.c.l.b16 %v651
        %v870 = vunpack.c.l.b16 %v652
        %v871 = vunpack.c.l.b16 %v653
        %v872 = vunpack.c.l.b16 %v654
        %v873 = vunpack.c.l.b16 %v655
        %v874 = vunpack.c.l.b16 %v656
        %v875 = vunpack.c.l.b16 %v657
        %v876 = vunpack.c.l.b16 %v658
        %v877 = vunpack.c.l.b16 %v659
        %v878 = vunpack.c.l.b16 %v660
        %v879 = vunpack.c.l.b16 %v661
        %v880 = vunpack.c.l.b16 %v662
        %v881 = vunpack.c.l.b16 %v663
        %v882 = vunpack.c.l.b16 %v664
        %v883 = vunpack.c.l.b16 %v665
        %v884 = vunpack.c.l.b16 %v666
        %v885 = vunpack.c.l.b16 %v667
        %v886 = vunpack.c.l.b16 %v668
        %v887 = vunpack.c.l.b16 %v669
        %v888 = vunpack.c.l.b16 %v670
        %v889 = vunpack.c.l.b16 %v671
        %v890 = vunpack.c.l.b16 %v672
        %v891 = vunpack.c.l.b16 %v673
        %v892 = vunpack.c.l.b16 %v674
        %v893 = vunpack.c.l.b16 %v675
        %v894 = vunpack.c.l.b16 %v676
        %v895 = vunpack.c.l.b16 %v677
        %v896 = vunpack.c.l.b16 %v678
        %v897 = vunpack.c.l.b16 %v679
        %v898 = vunpack.c.l.b16 %v680
        %v899 = vunpack.c.l.b16 %v681
        %v900 = vunpack.c.l.b16 %v682
        %v901 = vunpack.c.l.b16 %v683
        %v902 = vunpack.c.l.b16 %v684
        %v903 = vunpack.c.l.b16 %v685
        %v904 = vunpack.c.l.b16 %v686
        %v905 = vunpack.c.l.b16 %v687
        %v906 = vunpack.c.l.b16 %v688
        %v907 = vunpack.c.l.b16 %v689
        %v908 = vunpack.c.l.b16 %v690
        %v909 = vunpack.c.l.b16 %v691
        %v910 = vunpack.c.l.b16 %v692
        %v911 = vunpack.c.l.b16 %v693
        %v912 = vunpack.c.l.b16 %v694
        %v913 = vunpack.c.l.b16 %v695
        %v914 = vunpack.c.l.b16 %v696
        %v915 = vunpack.c.l.b16 %v697
        %v916 = vunpack.c.l.b16 %v698
        %v917 = vunpack.c.l.b16 %v699
        %v918 = vunpack.c.l.b16 %v700
        %v919 = vunpack.c.l.b16 %v701
        %v920 = vunpack.c.l.b16 %v702
        %v921 = vunpack.c.l.b16 %v703
        %v922 = vunpack.c.l.b16 %v704
        %v923 = vunpack.c.l.b16 %v705
        %v924 = vunpack.c.l.b16 %v706
        %v925 = vunpack.c.l.b16 %v707
        %v926 = vunpack.c.l.b16 %v708
        %v927 = vunpack.c.l.b16 %v709
        %v928 = vunpack.c.l.b16 %v710
        %v929 = vunpack.c.l.b16 %v711
        %v930 = vunpack.c.l.b16 %v712
        %v931 = vunpack.c.l.b16 %v713
        %v932 = vunpack.c.l.b16 %v714
        %v933 = vunpack.c.l.b16 %v715
        %v934 = vunpack.c.l.b16 %v716
        %v935 = vunpack.c.l.b16 %v717
        %v936 = vunpack.c.l.b16 %v718
        %v937 = vunpack.c.l.b16 %v719
        %v938 = vunpack.c.l.b16 %v720
        %v939 = vunpack.c.l.b16 %v721
        %v940 = vunpack.c.l.b16 %v722
        %v941 = vunpack.c.l.b16 %v723
        %v942 = vunpack.c.l.b16 %v724
        %v943 = vunpack.c.l.b16 %v725
        %v944 = vunpack.c.l.b16 %v726
        %v945 = vunpack.c.l.b16 %v727
        %v946 = vunpack.c.l.b16 %v728
        %v947 = vunpack.c.l.b16 %v729
        %v948 = vunpack.c.l.b16 %v730
        %v949 = vunpack.c.l.b16 %v731
        %v950 = vpack.c.b16 %v847, %v846
        %v951 = vpack.c.b16 %v849, %v848
        %v952 = vpack.c.b16 %v851, %v850
        %v953 = vpack.c.b16 %v853, %v852
        %v954 = vpack.c.b16 %v855, %v854
        %v955 = vpack.c.b16 %v857, %v856
        %v956 = vpack.c.b16 %v859, %v858
        %v957 = vpack.c.b16 %v861, %v860
        %v958 = vpack.c.b16 %v863, %v862
        %v959 = vpack.c.b16 %v865, %v864
        %v960 = vpack.c.b16 %v867, %v866
        %v961 = vpack.c.b16 %v869, %v868
        %v962 = vpack.c.b16 %v871, %v870
        %v963 = vpack.c.b16 %v873, %v872
        %v964 = vpack.c.b16 %v875, %v874
        %v965 = vpack.c.b16 %v877, %v876
        %v966 = vpack.c.b16 %v879, %v878
        %v967 = vpack.c.b16 %v881, %v880
        %v968 = vpack.c.b16 %v883, %v882
        %v969 = vpack.c.b16 %v885, %v884
        %v970 = vpack.c.b16 %v887, %v886
        %v971 = vpack.c.b16 %v889, %v888
        %v972 = vpack.c.b16 %v891, %v890
        %v973 = vpack.c.b16 %v893, %v892
        %v974 = vpack.c.b16 %v895, %v894
        %v975 = vpack.c.b16 %v897, %v896
        %v976 = vpack.c.b16 %v899, %v898
        %v977 = vpack.c.b16 %v901, %v900
        %v978 = vpack.c.b16 %v903, %v902
        %v979 = vpack.c.b16 %v905, %v904
        %v980 = vpack.c.b16 %v907, %v906
        %v981 = vpack.c.b16 %v909, %v908
        %v982 = vpack.c.b16 %v911, %v910
        %v983 = vpack.c.b16 %v913, %v912
        %v984 = vpack.c.b16 %v915, %v914
        %v985 = vpack.c.b16 %v917, %v916
        %v986 = vpack.c.b16 %v919, %v918
        %v987 = vpack.c.b16 %v921, %v920
        %v988 = vpack.c.b16 %v923, %v922
        %v989 = vpack.c.b16 %v925, %v924
        %v990 = vpack.c.b16 %v927, %v926
        %v991 = vpack.c.b16 %v929, %v928
        %v992 = vpack.c.b16 %v931, %v930
        %v993 = vpack.c.b16 %v933, %v932
        %v994 = vpack.c.b16 %v935, %v934
        %v995 = vpack.c.b16 %v937, %v936
        %v996 = vpack.c.b16 %v939, %v938
        %v997 = vpack.c.b16 %v941, %v940
        %v998 = vpack.c.b16 %v943, %v942
        %v999 = vpack.c.b16 %v945, %v944
        %v1000 = vpack.c.b16 %v947, %v946
        %v1001 = vpack.c.b16 %v949, %v948
        %v1012 = vunpack.c.l.b16 %v732
        %v1013 = vunpack.c.l.b16 %v733
        %v1014 = vunpack.c.l.b16 %v734
        %v1015 = vunpack.c.l.b16 %v735
        %v1016 = vunpack.c.l.b16 %v736
        %v1017 = vunpack.c.l.b16 %v737
        %v1018 = vunpack.c.l.b16 %v738
        %v1019 = vunpack.c.l.b16 %v739
        %v1020 = vunpack.c.l.b16 %v740
        %v1021 = vunpack.c.l.b16 %v741
        %v1022 = vpack.c.b16 %v1013, %v1012
        %v1023 = vpack.c.b16 %v1015, %v1014
        %v1024 = vpack.c.b16 %v1017, %v1016
        %v1025 = vpack.c.b16 %v1019, %v1018
        %v1026 = vpack.c.b16 %v1021, %v1020
        %vm1031 = vcmask 613376
        %v1033 = vsel %vm1031, %v950, 0
        %v1036 = vsel %vm1031, %v951, 0
        %v1039 = vsel %vm1031, %v952, 0
        %v1042 = vsel %vm1031, %v953, 0
        %v1045 = vsel %vm1031, %v954, 0
        %v1048 = vsel %vm1031, %v955, 0
        %v1051 = vsel %vm1031, %v956, 0
        %v1054 = vsel %vm1031, %v957, 0
        %v1057 = vsel %vm1031, %v958, 0
        %v1060 = vsel %vm1031, %v959, 0
        %v1063 = vsel %vm1031, %v960, 0
        %v1066 = vsel %vm1031, %v961, 0
        %v1069 = vsel %vm1031, %v962, 0
        %v1072 = vsel %vm1031, %v963, 0
        %v1075 = vsel %vm1031, %v964, 0
        %v1078 = vsel %vm1031, %v965, 0
        %v1081 = vsel %vm1031, %v966, 0
        %v1084 = vsel %vm1031, %v967, 0
        %v1087 = vsel %vm1031, %v968, 0
        %v1090 = vsel %vm1031, %v969, 0
        %v1093 = vsel %vm1031, %v970, 0
        %v1096 = vsel %vm1031, %v971, 0
        %v1099 = vsel %vm1031, %v972, 0
        %v1102 = vsel %vm1031, %v973, 0
        %v1105 = vsel %vm1031, %v974, 0
        %v1108 = vsel %vm1031, %v975, 0
        %v1111 = vsel %vm1031, %v976, 0
        %v1114 = vsel %vm1031, %v977, 0
        %v1117 = vsel %vm1031, %v978, 0
        %v1120 = vsel %vm1031, %v979, 0
        %v1123 = vsel %vm1031, %v980, 0
        %v1126 = vsel %vm1031, %v981, 0
        %v1129 = vsel %vm1031, %v982, 0
        %v1132 = vsel %vm1031, %v983, 0
        %v1135 = vsel %vm1031, %v984, 0
        %v1138 = vsel %vm1031, %v985, 0
        %v1141 = vsel %vm1031, %v986, 0
        %v1144 = vsel %vm1031, %v987, 0
        %v1147 = vsel %vm1031, %v988, 0
        %v1150 = vsel %vm1031, %v989, 0
        %v1153 = vsel %vm1031, %v990, 0
        %v1156 = vsel %vm1031, %v991, 0
        %v1159 = vsel %vm1031, %v992, 0
        %v1162 = vsel %vm1031, %v993, 0
        %v1165 = vsel %vm1031, %v994, 0
        %v1168 = vsel %vm1031, %v995, 0
        %v1171 = vsel %vm1031, %v996, 0
        %v1174 = vsel %vm1031, %v997, 0
        %v1177 = vsel %vm1031, %v998, 0
        %v1180 = vsel %vm1031, %v999, 0
        %v1183 = vsel %vm1031, %v1000, 0
        %v1186 = vsel %vm1031, %v1001, 0
        %vm1188 = vcmask 1044480
        %vm1189 = vcmask 1045504
        %v1190 = vsel %vm1188, 4294967295, 65535
        %v1191 = vsel %vm1189, %v1190, 0
        %v1193 = vand.u32 %v1026, %v1191
        %1195 = vmatprep.subr.bf16.mxu0 0
        %1196 = vmatpush1.bf16.msra.mxu0 %v1022
        %1197 = vmatprep.subr.bf16.mxu0 0
        %1198 = vmatpush1.bf16.msra.mxu0 %v1023
        %1199 = vmatprep.subr.bf16.mxu0 0
        %1200 = vmatpush1.bf16.msra.mxu0 %v1024
        %1201 = vmatprep.subr.bf16.mxu0 0
        %1202 = vmatpush1.bf16.msra.mxu0 %v1025
        %1203 = vmatprep.subr.bf16.mxu0 0
        %1204 = vmatpush1.bf16.msra.mxu0 %v1193
        %1205 = vmatprep.subr.bf16.mxu0 0
        %1206 = vmatpush1.bf16.msra.mxu0 0
        %1207 = vmatprep.subr.bf16.mxu0 0
        %1208 = vmatpush1.bf16.msra.mxu0 0
        %1209 = vmatprep.subr.bf16.mxu0 0
        %1210 = vmatpush1.bf16.msra.mxu0 0
        %1211 = vmatprep.subr.bf16.mxu0 0
        %1212 = vmatpush1.bf16.msra.mxu0 0
        %1213 = vmatprep.subr.bf16.mxu0 0
        %1214 = vmatpush1.bf16.msra.mxu0 0
        %1215 = vmatprep.subr.bf16.mxu0 0
        %1216 = vmatpush1.bf16.msra.mxu0 0
        %1217 = vmatprep.subr.bf16.mxu0 0
        %1218 = vmatpush1.bf16.msra.mxu0 0
        %1219 = vmatprep.subr.bf16.mxu0 0
        %1220 = vmatpush1.bf16.msra.mxu0 0
        %1221 = vmatprep.subr.bf16.mxu0 0
        %1222 = vmatpush1.bf16.msra.mxu0 0
        %1223 = vmatprep.subr.bf16.mxu0 0
        %1224 = vmatpush1.bf16.msra.mxu0 0
        %1225 = vmatprep.subr.bf16.mxu0 0
        %1226 = vmatpush1.bf16.msra.mxu0 0
        %1227 = vmatprep.mubr.bf16.mxu0 0
        %1228 = vmatmul.mubr.bf16.gmra.mrb[0].mxu0 %v1033
        %v1229 = vpop.f32.mrb[0].mxu0
        %v1230 = vadd.f32 0.0, %v1229
        %v1231 = vpop.f32.mrb[0].mxu0
        %v1232 = vpop.f32.mrb[0].mxu0
        %v1233 = vadd.f32 0.0, %v1232
        %v1234 = vpop.f32.mrb[0].mxu0
        %1235 = vmatprep.mubr.bf16.mxu0 0
        %1236 = vmatmul.mubr.bf16.gmra.mrb[0].mxu0 %v1036
        %v1237 = vpop.f32.mrb[0].mxu0
        %v1238 = vadd.f32 0.0, %v1237
        %v1239 = vpop.f32.mrb[0].mxu0
        %v1240 = vpop.f32.mrb[0].mxu0
        %v1241 = vadd.f32 0.0, %v1240
        %v1242 = vpop.f32.mrb[0].mxu0
        %1243 = vmatprep.mubr.bf16.mxu0 0
        %1244 = vmatmul.mubr.bf16.gmra.mrb[0].mxu0 %v1039
        %v1245 = vpop.f32.mrb[0].mxu0
        %v1246 = vadd.f32 0.0, %v1245
        %v1247 = vpop.f32.mrb[0].mxu0
        %v1248 = vpop.f32.mrb[0].mxu0
        %v1249 = vadd.f32 0.0, %v1248
        %v1250 = vpop.f32.mrb[0].mxu0
        %1251 = vmatprep.mubr.bf16.mxu0 0
        %1252 = vmatmul.mubr.bf16.gmra.mrb[0].mxu0 %v1042
        %v1253 = vpop.f32.mrb[0].mxu0
        %v1254 = vadd.f32 0.0, %v1253
        %v1255 = vpop.f32.mrb[0].mxu0
        %v1256 = vpop.f32.mrb[0].mxu0
        %v1257 = vadd.f32 0.0, %v1256
        %v1258 = vpop.f32.mrb[0].mxu0
        %1259 = vmatprep.mubr.bf16.mxu0 0
        %1260 = vmatmul.mubr.bf16.gmra.mrb[0].mxu0 %v1045
        %v1261 = vpop.f32.mrb[0].mxu0
        %v1262 = vadd.f32 0.0, %v1261
        %v1263 = vpop.f32.mrb[0].mxu0
        %v1264 = vpop.f32.mrb[0].mxu0
        %v1265 = vadd.f32 0.0, %v1264
        %v1266 = vpop.f32.mrb[0].mxu0
        %1267 = vmatprep.mubr.bf16.mxu0 0
        %1268 = vmatmul.mubr.bf16.gmra.mrb[0].mxu0 %v1048
        %v1269 = vpop.f32.mrb[0].mxu0
        %v1270 = vadd.f32 0.0, %v1269
        %v1271 = vpop.f32.mrb[0].mxu0
        %v1272 = vpop.f32.mrb[0].mxu0
        %v1273 = vadd.f32 0.0, %v1272
        %v1274 = vpop.f32.mrb[0].mxu0
        %1275 = vmatprep.mubr.bf16.mxu0 0
        %1276 = vmatmul.mubr.bf16.gmra.mrb[0].mxu0 %v1051
        %v1277 = vpop.f32.mrb[0].mxu0
        %v1278 = vadd.f32 0.0, %v1277
        %v1279 = vpop.f32.mrb[0].mxu0
        %v1280 = vpop.f32.mrb[0].mxu0
        %v1281 = vadd.f32 0.0, %v1280
        %v1282 = vpop.f32.mrb[0].mxu0
        %1283 = vmatprep.mubr.bf16.mxu0 0
        %1284 = vmatmul.mubr.bf16.gmra.mrb[0].mxu0 %v1054
        %v1285 = vpop.f32.mrb[0].mxu0
        %v1286 = vadd.f32 0.0, %v1285
        %v1287 = vpop.f32.mrb[0].mxu0
        %v1288 = vpop.f32.mrb[0].mxu0
        %v1289 = vadd.f32 0.0, %v1288
        %v1290 = vpop.f32.mrb[0].mxu0
        %1291 = vmatprep.mubr.bf16.mxu0 0
        %1292 = vmatmul.mubr.bf16.gmra.mrb[0].mxu0 %v1057
        %v1293 = vpop.f32.mrb[0].mxu0
        %v1294 = vadd.f32 0.0, %v1293
        %v1295 = vpop.f32.mrb[0].mxu0
        %v1296 = vpop.f32.mrb[0].mxu0
        %v1297 = vadd.f32 0.0, %v1296
        %v1298 = vpop.f32.mrb[0].mxu0
        %1299 = vmatprep.mubr.bf16.mxu0 0
        %1300 = vmatmul.mubr.bf16.gmra.mrb[0].mxu0 %v1060
        %v1301 = vpop.f32.mrb[0].mxu0
        %v1302 = vadd.f32 0.0, %v1301
        %v1303 = vpop.f32.mrb[0].mxu0
        %v1304 = vpop.f32.mrb[0].mxu0
        %v1305 = vadd.f32 0.0, %v1304
        %v1306 = vpop.f32.mrb[0].mxu0
        %1307 = vmatprep.mubr.bf16.mxu0 0
        %1308 = vmatmul.mubr.bf16.gmra.mrb[0].mxu0 %v1063
        %v1309 = vpop.f32.mrb[0].mxu0
        %v1310 = vadd.f32 0.0, %v1309
        %v1311 = vpop.f32.mrb[0].mxu0
        %v1312 = vpop.f32.mrb[0].mxu0
        %v1313 = vadd.f32 0.0, %v1312
        %v1314 = vpop.f32.mrb[0].mxu0
        %1315 = vmatprep.mubr.bf16.mxu0 0
        %1316 = vmatmul.mubr.bf16.gmra.mrb[0].mxu0 %v1066
        %v1317 = vpop.f32.mrb[0].mxu0
        %v1318 = vadd.f32 0.0, %v1317
        %v1319 = vpop.f32.mrb[0].mxu0
        %v1320 = vpop.f32.mrb[0].mxu0
        %v1321 = vadd.f32 0.0, %v1320
        %v1322 = vpop.f32.mrb[0].mxu0
        %1323 = vmatprep.mubr.bf16.mxu0 0
        %1324 = vmatmul.mubr.bf16.gmra.mrb[0].mxu0 %v1069
        %v1325 = vpop.f32.mrb[0].mxu0
        %v1326 = vadd.f32 0.0, %v1325
        %v1327 = vpop.f32.mrb[0].mxu0
        %v1328 = vpop.f32.mrb[0].mxu0
        %v1329 = vadd.f32 0.0, %v1328
        %v1330 = vpop.f32.mrb[0].mxu0
        %1331 = vmatprep.mubr.bf16.mxu0 0
        %1332 = vmatmul.mubr.bf16.gmra.mrb[0].mxu0 %v1072
        %v1333 = vpop.f32.mrb[0].mxu0
        %v1334 = vadd.f32 0.0, %v1333
        %v1335 = vpop.f32.mrb[0].mxu0
        %v1336 = vpop.f32.mrb[0].mxu0
        %v1337 = vadd.f32 0.0, %v1336
        %v1338 = vpop.f32.mrb[0].mxu0
        %1339 = vmatprep.mubr.bf16.mxu0 0
        %1340 = vmatmul.mubr.bf16.gmra.mrb[0].mxu0 %v1075
        %v1341 = vpop.f32.mrb[0].mxu0
        %v1342 = vadd.f32 0.0, %v1341
        %v1343 = vpop.f32.mrb[0].mxu0
        %v1344 = vpop.f32.mrb[0].mxu0
        %v1345 = vadd.f32 0.0, %v1344
        %v1346 = vpop.f32.mrb[0].mxu0
        %1347 = vmatprep.mubr.bf16.mxu0 0
        %1348 = vmatmul.mubr.bf16.gmra.mrb[0].mxu0 %v1078
        %v1349 = vpop.f32.mrb[0].mxu0
        %v1350 = vadd.f32 0.0, %v1349
        %v1351 = vpop.f32.mrb[0].mxu0
        %v1352 = vpop.f32.mrb[0].mxu0
        %v1353 = vadd.f32 0.0, %v1352
        %v1354 = vpop.f32.mrb[0].mxu0
        %1355 = vmatprep.mubr.bf16.mxu0 0
        %1356 = vmatmul.mubr.bf16.gmra.mrb[0].mxu0 %v1081
        %v1357 = vpop.f32.mrb[0].mxu0
        %v1358 = vadd.f32 0.0, %v1357
        %v1359 = vpop.f32.mrb[0].mxu0
        %v1360 = vpop.f32.mrb[0].mxu0
        %v1361 = vadd.f32 0.0, %v1360
        %v1362 = vpop.f32.mrb[0].mxu0
        %1363 = vmatprep.mubr.bf16.mxu0 0
        %1364 = vmatmul.mubr.bf16.gmra.mrb[0].mxu0 %v1084
        %v1365 = vpop.f32.mrb[0].mxu0
        %v1366 = vadd.f32 0.0, %v1365
        %v1367 = vpop.f32.mrb[0].mxu0
        %v1368 = vpop.f32.mrb[0].mxu0
        %v1369 = vadd.f32 0.0, %v1368
        %v1370 = vpop.f32.mrb[0].mxu0
        %1371 = vmatprep.mubr.bf16.mxu0 0
        %1372 = vmatmul.mubr.bf16.gmra.mrb[0].mxu0 %v1087
        %v1373 = vpop.f32.mrb[0].mxu0
        %v1374 = vadd.f32 0.0, %v1373
        %v1375 = vpop.f32.mrb[0].mxu0
        %v1376 = vpop.f32.mrb[0].mxu0
        %v1377 = vadd.f32 0.0, %v1376
        %v1378 = vpop.f32.mrb[0].mxu0
        %1379 = vmatprep.mubr.bf16.mxu0 0
        %1380 = vmatmul.mubr.bf16.gmra.mrb[0].mxu0 %v1090
        %v1381 = vpop.f32.mrb[0].mxu0
        %v1382 = vadd.f32 0.0, %v1381
        %v1383 = vpop.f32.mrb[0].mxu0
        %v1384 = vpop.f32.mrb[0].mxu0
        %v1385 = vadd.f32 0.0, %v1384
        %v1386 = vpop.f32.mrb[0].mxu0
        %1387 = vmatprep.mubr.bf16.mxu0 0
        %1388 = vmatmul.mubr.bf16.gmra.mrb[0].mxu0 %v1093
        %v1389 = vpop.f32.mrb[0].mxu0
        %v1390 = vadd.f32 0.0, %v1389
        %v1391 = vpop.f32.mrb[0].mxu0
        %v1392 = vpop.f32.mrb[0].mxu0
        %v1393 = vadd.f32 0.0, %v1392
        %v1394 = vpop.f32.mrb[0].mxu0
        %1395 = vmatprep.mubr.bf16.mxu0 0
        %1396 = vmatmul.mubr.bf16.gmra.mrb[0].mxu0 %v1096
        %v1397 = vpop.f32.mrb[0].mxu0
        %v1398 = vadd.f32 0.0, %v1397
        %v1399 = vpop.f32.mrb[0].mxu0
        %v1400 = vpop.f32.mrb[0].mxu0
        %v1401 = vadd.f32 0.0, %v1400
        %v1402 = vpop.f32.mrb[0].mxu0
        %1403 = vmatprep.mubr.bf16.mxu0 0
        %1404 = vmatmul.mubr.bf16.gmra.mrb[0].mxu0 %v1099
        %v1405 = vpop.f32.mrb[0].mxu0
        %v1406 = vadd.f32 0.0, %v1405
        %v1407 = vpop.f32.mrb[0].mxu0
        %v1408 = vpop.f32.mrb[0].mxu0
        %v1409 = vadd.f32 0.0, %v1408
        %v1410 = vpop.f32.mrb[0].mxu0
        %1411 = vmatprep.mubr.bf16.mxu0 0
        %1412 = vmatmul.mubr.bf16.gmra.mrb[0].mxu0 %v1102
        %v1413 = vpop.f32.mrb[0].mxu0
        %v1414 = vadd.f32 0.0, %v1413
        %v1415 = vpop.f32.mrb[0].mxu0
        %v1416 = vpop.f32.mrb[0].mxu0
        %v1417 = vadd.f32 0.0, %v1416
        %v1418 = vpop.f32.mrb[0].mxu0
        %1419 = vmatprep.mubr.bf16.mxu0 0
        %1420 = vmatmul.mubr.bf16.gmra.mrb[0].mxu0 %v1105
        %v1421 = vpop.f32.mrb[0].mxu0
        %v1422 = vadd.f32 0.0, %v1421
        %v1423 = vpop.f32.mrb[0].mxu0
        %v1424 = vpop.f32.mrb[0].mxu0
        %v1425 = vadd.f32 0.0, %v1424
        %v1426 = vpop.f32.mrb[0].mxu0
        %1427 = vmatprep.mubr.bf16.mxu0 0
        %1428 = vmatmul.mubr.bf16.gmra.mrb[0].mxu0 %v1108
        %v1429 = vpop.f32.mrb[0].mxu0
        %v1430 = vadd.f32 0.0, %v1429
        %v1431 = vpop.f32.mrb[0].mxu0
        %v1432 = vpop.f32.mrb[0].mxu0
        %v1433 = vadd.f32 0.0, %v1432
        %v1434 = vpop.f32.mrb[0].mxu0
        %1435 = vmatprep.mubr.bf16.mxu0 0
        %1436 = vmatmul.mubr.bf16.gmra.mrb[0].mxu0 %v1111
        %v1437 = vpop.f32.mrb[0].mxu0
        %v1438 = vadd.f32 0.0, %v1437
        %v1439 = vpop.f32.mrb[0].mxu0
        %v1440 = vpop.f32.mrb[0].mxu0
        %v1441 = vadd.f32 0.0, %v1440
        %v1442 = vpop.f32.mrb[0].mxu0
        %1443 = vmatprep.mubr.bf16.mxu0 0
        %1444 = vmatmul.mubr.bf16.gmra.mrb[0].mxu0 %v1114
        %v1445 = vpop.f32.mrb[0].mxu0
        %v1446 = vadd.f32 0.0, %v1445
        %v1447 = vpop.f32.mrb[0].mxu0
        %v1448 = vpop.f32.mrb[0].mxu0
        %v1449 = vadd.f32 0.0, %v1448
        %v1450 = vpop.f32.mrb[0].mxu0
        %1451 = vmatprep.mubr.bf16.mxu0 0
        %1452 = vmatmul.mubr.bf16.gmra.mrb[0].mxu0 %v1117
        %v1453 = vpop.f32.mrb[0].mxu0
        %v1454 = vadd.f32 0.0, %v1453
        %v1455 = vpop.f32.mrb[0].mxu0
        %v1456 = vpop.f32.mrb[0].mxu0
        %v1457 = vadd.f32 0.0, %v1456
        %v1458 = vpop.f32.mrb[0].mxu0
        %1459 = vmatprep.mubr.bf16.mxu0 0
        %1460 = vmatmul.mubr.bf16.gmra.mrb[0].mxu0 %v1120
        %v1461 = vpop.f32.mrb[0].mxu0
        %v1462 = vadd.f32 0.0, %v1461
        %v1463 = vpop.f32.mrb[0].mxu0
        %v1464 = vpop.f32.mrb[0].mxu0
        %v1465 = vadd.f32 0.0, %v1464
        %v1466 = vpop.f32.mrb[0].mxu0
        %1467 = vmatprep.mubr.bf16.mxu0 0
        %1468 = vmatmul.mubr.bf16.gmra.mrb[0].mxu0 %v1123
        %v1469 = vpop.f32.mrb[0].mxu0
        %v1470 = vadd.f32 0.0, %v1469
        %v1471 = vpop.f32.mrb[0].mxu0
        %v1472 = vpop.f32.mrb[0].mxu0
        %v1473 = vadd.f32 0.0, %v1472
        %v1474 = vpop.f32.mrb[0].mxu0
        %1475 = vmatprep.mubr.bf16.mxu0 0
        %1476 = vmatmul.mubr.bf16.gmra.mrb[0].mxu0 %v1126
        %v1477 = vpop.f32.mrb[0].mxu0
        %v1478 = vadd.f32 0.0, %v1477
        %v1479 = vpop.f32.mrb[0].mxu0
        %v1480 = vpop.f32.mrb[0].mxu0
        %v1481 = vadd.f32 0.0, %v1480
        %v1482 = vpop.f32.mrb[0].mxu0
        %1483 = vmatprep.mubr.bf16.mxu0 0
        %1484 = vmatmul.mubr.bf16.gmra.mrb[0].mxu0 %v1129
        %v1485 = vpop.f32.mrb[0].mxu0
        %v1486 = vadd.f32 0.0, %v1485
        %v1487 = vpop.f32.mrb[0].mxu0
        %v1488 = vpop.f32.mrb[0].mxu0
        %v1489 = vadd.f32 0.0, %v1488
        %v1490 = vpop.f32.mrb[0].mxu0
        %1491 = vmatprep.mubr.bf16.mxu0 0
        %1492 = vmatmul.mubr.bf16.gmra.mrb[0].mxu0 %v1132
        %v1493 = vpop.f32.mrb[0].mxu0
        %v1494 = vadd.f32 0.0, %v1493
        %v1495 = vpop.f32.mrb[0].mxu0
        %v1496 = vpop.f32.mrb[0].mxu0
        %v1497 = vadd.f32 0.0, %v1496
        %v1498 = vpop.f32.mrb[0].mxu0
        %1499 = vmatprep.mubr.bf16.mxu0 0
        %1500 = vmatmul.mubr.bf16.gmra.mrb[0].mxu0 %v1135
        %v1501 = vpop.f32.mrb[0].mxu0
        %v1502 = vadd.f32 0.0, %v1501
        %v1503 = vpop.f32.mrb[0].mxu0
        %v1504 = vpop.f32.mrb[0].mxu0
        %v1505 = vadd.f32 0.0, %v1504
        %v1506 = vpop.f32.mrb[0].mxu0
        %1507 = vmatprep.mubr.bf16.mxu0 0
        %1508 = vmatmul.mubr.bf16.gmra.mrb[0].mxu0 %v1138
        %v1509 = vpop.f32.mrb[0].mxu0
        %v1510 = vadd.f32 0.0, %v1509
        %v1511 = vpop.f32.mrb[0].mxu0
        %v1512 = vpop.f32.mrb[0].mxu0
        %v1513 = vadd.f32 0.0, %v1512
        %v1514 = vpop.f32.mrb[0].mxu0
        %1515 = vmatprep.mubr.bf16.mxu0 0
        %1516 = vmatmul.mubr.bf16.gmra.mrb[0].mxu0 %v1141
        %v1517 = vpop.f32.mrb[0].mxu0
        %v1518 = vadd.f32 0.0, %v1517
        %v1519 = vpop.f32.mrb[0].mxu0
        %v1520 = vpop.f32.mrb[0].mxu0
        %v1521 = vadd.f32 0.0, %v1520
        %v1522 = vpop.f32.mrb[0].mxu0
        %1523 = vmatprep.mubr.bf16.mxu0 0
        %1524 = vmatmul.mubr.bf16.gmra.mrb[0].mxu0 %v1144
        %v1525 = vpop.f32.mrb[0].mxu0
        %v1526 = vadd.f32 0.0, %v1525
        %v1527 = vpop.f32.mrb[0].mxu0
        %v1528 = vpop.f32.mrb[0].mxu0
        %v1529 = vadd.f32 0.0, %v1528
        %v1530 = vpop.f32.mrb[0].mxu0
        %1531 = vmatprep.mubr.bf16.mxu0 0
        %1532 = vmatmul.mubr.bf16.gmra.mrb[0].mxu0 %v1147
        %v1533 = vpop.f32.mrb[0].mxu0
        %v1534 = vadd.f32 0.0, %v1533
        %v1535 = vpop.f32.mrb[0].mxu0
        %v1536 = vpop.f32.mrb[0].mxu0
        %v1537 = vadd.f32 0.0, %v1536
        %v1538 = vpop.f32.mrb[0].mxu0
        %1539 = vmatprep.mubr.bf16.mxu0 0
        %1540 = vmatmul.mubr.bf16.gmra.mrb[0].mxu0 %v1150
        %v1541 = vpop.f32.mrb[0].mxu0
        %v1542 = vadd.f32 0.0, %v1541
        %v1543 = vpop.f32.mrb[0].mxu0
        %v1544 = vpop.f32.mrb[0].mxu0
        %v1545 = vadd.f32 0.0, %v1544
        %v1546 = vpop.f32.mrb[0].mxu0
        %1547 = vmatprep.mubr.bf16.mxu0 0
        %1548 = vmatmul.mubr.bf16.gmra.mrb[0].mxu0 %v1153
        %v1549 = vpop.f32.mrb[0].mxu0
        %v1550 = vadd.f32 0.0, %v1549
        %v1551 = vpop.f32.mrb[0].mxu0
        %v1552 = vpop.f32.mrb[0].mxu0
        %v1553 = vadd.f32 0.0, %v1552
        %v1554 = vpop.f32.mrb[0].mxu0
        %1555 = vmatprep.mubr.bf16.mxu0 0
        %1556 = vmatmul.mubr.bf16.gmra.mrb[0].mxu0 %v1156
        %v1557 = vpop.f32.mrb[0].mxu0
        %v1558 = vadd.f32 0.0, %v1557
        %v1559 = vpop.f32.mrb[0].mxu0
        %v1560 = vpop.f32.mrb[0].mxu0
        %v1561 = vadd.f32 0.0, %v1560
        %v1562 = vpop.f32.mrb[0].mxu0
        %1563 = vmatprep.mubr.bf16.mxu0 0
        %1564 = vmatmul.mubr.bf16.gmra.mrb[0].mxu0 %v1159
        %v1565 = vpop.f32.mrb[0].mxu0
        %v1566 = vadd.f32 0.0, %v1565
        %v1567 = vpop.f32.mrb[0].mxu0
        %v1568 = vpop.f32.mrb[0].mxu0
        %v1569 = vadd.f32 0.0, %v1568
        %v1570 = vpop.f32.mrb[0].mxu0
        %1571 = vmatprep.mubr.bf16.mxu0 0
        %1572 = vmatmul.mubr.bf16.gmra.mrb[0].mxu0 %v1162
        %v1573 = vpop.f32.mrb[0].mxu0
        %v1574 = vadd.f32 0.0, %v1573
        %v1575 = vpop.f32.mrb[0].mxu0
        %v1576 = vpop.f32.mrb[0].mxu0
        %v1577 = vadd.f32 0.0, %v1576
        %v1578 = vpop.f32.mrb[0].mxu0
        %1579 = vmatprep.mubr.bf16.mxu0 0
        %1580 = vmatmul.mubr.bf16.gmra.mrb[0].mxu0 %v1165
        %v1581 = vpop.f32.mrb[0].mxu0
        %v1582 = vadd.f32 0.0, %v1581
        %v1583 = vpop.f32.mrb[0].mxu0
        %v1584 = vpop.f32.mrb[0].mxu0
        %v1585 = vadd.f32 0.0, %v1584
        %v1586 = vpop.f32.mrb[0].mxu0
        %1587 = vmatprep.mubr.bf16.mxu0 0
        %1588 = vmatmul.mubr.bf16.gmra.mrb[0].mxu0 %v1168
        %v1589 = vpop.f32.mrb[0].mxu0
        %v1590 = vadd.f32 0.0, %v1589
        %v1591 = vpop.f32.mrb[0].mxu0
        %v1592 = vpop.f32.mrb[0].mxu0
        %v1593 = vadd.f32 0.0, %v1592
        %v1594 = vpop.f32.mrb[0].mxu0
        %1595 = vmatprep.mubr.bf16.mxu0 0
        %1596 = vmatmul.mubr.bf16.gmra.mrb[0].mxu0 %v1171
        %v1597 = vpop.f32.mrb[0].mxu0
        %v1598 = vadd.f32 0.0, %v1597
        %v1599 = vpop.f32.mrb[0].mxu0
        %v1600 = vpop.f32.mrb[0].mxu0
        %v1601 = vadd.f32 0.0, %v1600
        %v1602 = vpop.f32.mrb[0].mxu0
        %1603 = vmatprep.mubr.bf16.mxu0 0
        %1604 = vmatmul.mubr.bf16.gmra.mrb[0].mxu0 %v1174
        %v1605 = vpop.f32.mrb[0].mxu0
        %v1606 = vadd.f32 0.0, %v1605
        %v1607 = vpop.f32.mrb[0].mxu0
        %v1608 = vpop.f32.mrb[0].mxu0
        %v1609 = vadd.f32 0.0, %v1608
        %v1610 = vpop.f32.mrb[0].mxu0
        %1611 = vmatprep.mubr.bf16.mxu0 0
        %1612 = vmatmul.mubr.bf16.gmra.mrb[0].mxu0 %v1177
        %v1613 = vpop.f32.mrb[0].mxu0
        %v1614 = vadd.f32 0.0, %v1613
        %v1615 = vpop.f32.mrb[0].mxu0
        %v1616 = vpop.f32.mrb[0].mxu0
        %v1617 = vadd.f32 0.0, %v1616
        %v1618 = vpop.f32.mrb[0].mxu0
        %1619 = vmatprep.mubr.bf16.mxu0 0
        %1620 = vmatmul.mubr.bf16.gmra.mrb[0].mxu0 %v1180
        %v1621 = vpop.f32.mrb[0].mxu0
        %v1622 = vadd.f32 0.0, %v1621
        %v1623 = vpop.f32.mrb[0].mxu0
        %v1624 = vpop.f32.mrb[0].mxu0
        %v1625 = vadd.f32 0.0, %v1624
        %v1626 = vpop.f32.mrb[0].mxu0
        %1627 = vmatprep.mubr.bf16.mxu0 0
        %1628 = vmatmul.mubr.bf16.gmra.mrb[0].mxu0 %v1183
        %v1629 = vpop.f32.mrb[0].mxu0
        %v1630 = vadd.f32 0.0, %v1629
        %v1631 = vpop.f32.mrb[0].mxu0
        %v1632 = vpop.f32.mrb[0].mxu0
        %v1633 = vadd.f32 0.0, %v1632
        %v1634 = vpop.f32.mrb[0].mxu0
        %1635 = vmatprep.mubr.bf16.mxu0 0
        %1636 = vmatmul.mubr.bf16.gmra.mrb[0].mxu0 %v1186
        %v1637 = vpop.f32.mrb[0].mxu0
        %v1638 = vadd.f32 0.0, %v1637
        %v1639 = vpop.f32.mrb[0].mxu0
        %v1640 = vpop.f32.mrb[0].mxu0
        %v1641 = vadd.f32 0.0, %v1640
        %v1642 = vpop.f32.mrb[0].mxu0
        %1643 = vdwg.mxu0
        %v1644 = vmax.f32 %v1230, %v1334
        %v1645 = vmax.f32 %v1233, %v1337
        %v1646 = vmax.f32 %v1238, %v1342
        %v1647 = vmax.f32 %v1241, %v1345
        %v1648 = vmax.f32 %v1246, %v1350
        %v1649 = vmax.f32 %v1249, %v1353
        %v1650 = vmax.f32 %v1254, %v1358
        %v1651 = vmax.f32 %v1257, %v1361
        %v1652 = vmax.f32 %v1262, %v1366
        %v1653 = vmax.f32 %v1265, %v1369
        %v1654 = vmax.f32 %v1270, %v1374
        %v1655 = vmax.f32 %v1273, %v1377
        %v1656 = vmax.f32 %v1278, %v1382
        %v1657 = vmax.f32 %v1281, %v1385
        %v1658 = vmax.f32 %v1286, %v1390
        %v1659 = vmax.f32 %v1289, %v1393
        %v1660 = vmax.f32 %v1294, %v1398
        %v1661 = vmax.f32 %v1297, %v1401
        %v1662 = vmax.f32 %v1302, %v1406
        %v1663 = vmax.f32 %v1305, %v1409
        %v1664 = vmax.f32 %v1310, %v1414
        %v1665 = vmax.f32 %v1313, %v1417
        %v1666 = vmax.f32 %v1318, %v1422
        %v1667 = vmax.f32 %v1321, %v1425
        %v1668 = vmax.f32 %v1326, %v1430
        %v1669 = vmax.f32 %v1329, %v1433
        %v1670 = vmax.f32 %v1438, %v1542
        %v1671 = vmax.f32 %v1441, %v1545
        %v1672 = vmax.f32 %v1446, %v1550
        %v1673 = vmax.f32 %v1449, %v1553
        %v1674 = vmax.f32 %v1454, %v1558
        %v1675 = vmax.f32 %v1457, %v1561
        %v1676 = vmax.f32 %v1462, %v1566
        %v1677 = vmax.f32 %v1465, %v1569
        %v1678 = vmax.f32 %v1470, %v1574
        %v1679 = vmax.f32 %v1473, %v1577
        %v1680 = vmax.f32 %v1478, %v1582
        %v1681 = vmax.f32 %v1481, %v1585
        %v1682 = vmax.f32 %v1486, %v1590
        %v1683 = vmax.f32 %v1489, %v1593
        %v1684 = vmax.f32 %v1494, %v1598
        %v1685 = vmax.f32 %v1497, %v1601
        %v1686 = vmax.f32 %v1502, %v1606
        %v1687 = vmax.f32 %v1505, %v1609
        %v1688 = vmax.f32 %v1510, %v1614
        %v1689 = vmax.f32 %v1513, %v1617
        %v1690 = vmax.f32 %v1518, %v1622
        %v1691 = vmax.f32 %v1521, %v1625
        %v1692 = vmax.f32 %v1526, %v1630
        %v1693 = vmax.f32 %v1529, %v1633
        %v1694 = vmax.f32 %v1534, %v1638
        %v1695 = vmax.f32 %v1537, %v1641
        %v1696 = vmax.f32 %v1644, %v1670
        %v1697 = vmax.f32 %v1645, %v1671
        %v1698 = vmax.f32 %v1646, %v1672
        %v1699 = vmax.f32 %v1647, %v1673
        %v1700 = vmax.f32 %v1648, %v1674
        %v1701 = vmax.f32 %v1649, %v1675
        %v1702 = vmax.f32 %v1650, %v1676
        %v1703 = vmax.f32 %v1651, %v1677
        %v1704 = vmax.f32 %v1652, %v1678
        %v1705 = vmax.f32 %v1653, %v1679
        %v1706 = vmax.f32 %v1654, %v1680
        %v1707 = vmax.f32 %v1655, %v1681
        %v1708 = vmax.f32 %v1656, %v1682
        %v1709 = vmax.f32 %v1657, %v1683
        %v1710 = vmax.f32 %v1658, %v1684
        %v1711 = vmax.f32 %v1659, %v1685
        %v1712 = vmax.f32 %v1660, %v1686
        %v1713 = vmax.f32 %v1661, %v1687
        %v1714 = vmax.f32 %v1662, %v1688
        %v1715 = vmax.f32 %v1663, %v1689
        %v1716 = vmax.f32 %v1664, %v1690
        %v1717 = vmax.f32 %v1665, %v1691
        %v1718 = vmax.f32 %v1666, %v1692
        %v1719 = vmax.f32 %v1667, %v1693
        %v1720 = vmax.f32 %v1668, %v1694
        %v1721 = vmax.f32 %v1669, %v1695
        %v1722 = vld [vmem:[%s2] sm:$0x1]
        %v1724 = vlaneseq
        %v1725 = vshrl.u32 %v1724, 7
        %v1726 = vsub.s32 0, %v1725
        %v1727 = vrot.slane %v1722, %v1726
        %v1729 = vadd.f32 %v1696, %v1727
        %v1730 = vadd.f32 %v1697, %v1727
        %v1731 = vadd.f32 %v1698, %v1727
        %v1732 = vadd.f32 %v1699, %v1727
        %v1733 = vadd.f32 %v1700, %v1727
        %v1734 = vadd.f32 %v1701, %v1727
        %v1735 = vadd.f32 %v1702, %v1727
        %v1736 = vadd.f32 %v1703, %v1727
        %v1737 = vadd.f32 %v1704, %v1727
        %v1738 = vadd.f32 %v1705, %v1727
        %v1739 = vadd.f32 %v1706, %v1727
        %v1740 = vadd.f32 %v1707, %v1727
        %v1741 = vadd.f32 %v1708, %v1727
        %v1742 = vadd.f32 %v1709, %v1727
        %v1743 = vadd.f32 %v1710, %v1727
        %v1744 = vadd.f32 %v1711, %v1727
        %v1745 = vadd.f32 %v1712, %v1727
        %v1746 = vadd.f32 %v1713, %v1727
        %v1747 = vadd.f32 %v1714, %v1727
        %v1748 = vadd.f32 %v1715, %v1727
        %v1749 = vadd.f32 %v1716, %v1727
        %v1750 = vadd.f32 %v1717, %v1727
        %v1751 = vadd.f32 %v1718, %v1727
        %v1752 = vadd.f32 %v1719, %v1727
        %v1753 = vadd.f32 %v1720, %v1727
        %v1754 = vadd.f32 %v1721, %v1727
        %v1755 = vmax.f32 %v1729, 0.0
        %v1756 = vmax.f32 %v1730, 0.0
        %v1757 = vmax.f32 %v1731, 0.0
        %v1758 = vmax.f32 %v1732, 0.0
        %v1759 = vmax.f32 %v1733, 0.0
        %v1760 = vmax.f32 %v1734, 0.0
        %v1761 = vmax.f32 %v1735, 0.0
        %v1762 = vmax.f32 %v1736, 0.0
        %v1763 = vmax.f32 %v1737, 0.0
        %v1764 = vmax.f32 %v1738, 0.0
        %v1765 = vmax.f32 %v1739, 0.0
        %v1766 = vmax.f32 %v1740, 0.0
        %v1767 = vmax.f32 %v1741, 0.0
        %v1768 = vmax.f32 %v1742, 0.0
        %v1769 = vmax.f32 %v1743, 0.0
        %v1770 = vmax.f32 %v1744, 0.0
        %v1771 = vmax.f32 %v1745, 0.0
        %v1772 = vmax.f32 %v1746, 0.0
        %v1773 = vmax.f32 %v1747, 0.0
        %v1774 = vmax.f32 %v1748, 0.0
        %v1775 = vmax.f32 %v1749, 0.0
        %v1776 = vmax.f32 %v1750, 0.0
        %v1777 = vmax.f32 %v1751, 0.0
        %v1778 = vmax.f32 %v1752, 0.0
        %v1779 = vmax.f32 %v1753, 0.0
        %v1780 = vmax.f32 %v1754, 0.0
        %v1781 = vpack.c.bf16 %v1756, %v1755
        %v1782 = vpack.c.bf16 %v1758, %v1757
        %v1783 = vpack.c.bf16 %v1760, %v1759
        %v1784 = vpack.c.bf16 %v1762, %v1761
        %v1785 = vpack.c.bf16 %v1764, %v1763
        %v1786 = vpack.c.bf16 %v1766, %v1765
        %v1787 = vpack.c.bf16 %v1768, %v1767
        %v1788 = vpack.c.bf16 %v1770, %v1769
        %v1789 = vpack.c.bf16 %v1772, %v1771
        %v1790 = vpack.c.bf16 %v1774, %v1773
        %v1791 = vpack.c.bf16 %v1776, %v1775
        %v1792 = vpack.c.bf16 %v1778, %v1777
        %v1793 = vpack.c.bf16 %v1780, %v1779
        %v1807 = vunpack.c.l.b16 %v1781
        %v1808 = vunpack.c.h.b16 %v1781
        %v1809 = vunpack.c.l.b16 %v1782
        %v1810 = vunpack.c.h.b16 %v1782
        %v1811 = vunpack.c.l.b16 %v1783
        %v1812 = vunpack.c.h.b16 %v1783
        %v1813 = vunpack.c.l.b16 %v1784
        %v1814 = vunpack.c.h.b16 %v1784
        %v1815 = vunpack.c.l.b16 %v1785
        %v1816 = vunpack.c.h.b16 %v1785
        %v1817 = vunpack.c.l.b16 %v1786
        %v1818 = vunpack.c.h.b16 %v1786
        %v1819 = vunpack.c.l.b16 %v1787
        %v1820 = vunpack.c.h.b16 %v1787
        %v1821 = vunpack.c.l.b16 %v1788
        %v1822 = vunpack.c.h.b16 %v1788
        %v1823 = vunpack.c.l.b16 %v1789
        %v1824 = vunpack.c.h.b16 %v1789
        %v1825 = vunpack.c.l.b16 %v1790
        %v1826 = vunpack.c.h.b16 %v1790
        %v1827 = vunpack.c.l.b16 %v1791
        %v1828 = vunpack.c.h.b16 %v1791
        %v1829 = vunpack.c.l.b16 %v1792
        %v1830 = vunpack.c.h.b16 %v1792
        %v1831 = vunpack.c.l.b16 %v1793
        %v1832 = vunpack.c.h.b16 %v1793
        %v1833 = vpack.c.b16 %v1807, %v1807
        %v1834 = vpack.c.b16 %v1808, %v1808
        %v1835 = vpack.c.b16 %v1809, %v1809
        %v1836 = vpack.c.b16 %v1810, %v1810
        %v1837 = vpack.c.b16 %v1811, %v1811
        %v1838 = vpack.c.b16 %v1812, %v1812
        %v1839 = vpack.c.b16 %v1813, %v1813
        %v1840 = vpack.c.b16 %v1814, %v1814
        %v1841 = vpack.c.b16 %v1815, %v1815
        %v1842 = vpack.c.b16 %v1816, %v1816
        %v1843 = vpack.c.b16 %v1817, %v1817
        %v1844 = vpack.c.b16 %v1818, %v1818
        %v1845 = vpack.c.b16 %v1819, %v1819
        %v1846 = vpack.c.b16 %v1820, %v1820
        %v1847 = vpack.c.b16 %v1821, %v1821
        %v1848 = vpack.c.b16 %v1822, %v1822
        %v1849 = vpack.c.b16 %v1823, %v1823
        %v1850 = vpack.c.b16 %v1824, %v1824
        %v1851 = vpack.c.b16 %v1825, %v1825
        %v1852 = vpack.c.b16 %v1826, %v1826
        %v1853 = vpack.c.b16 %v1827, %v1827
        %v1854 = vpack.c.b16 %v1828, %v1828
        %v1855 = vpack.c.b16 %v1829, %v1829
        %v1856 = vpack.c.b16 %v1830, %v1830
        %v1857 = vpack.c.b16 %v1831, %v1831
        %v1858 = vpack.c.b16 %v1832, %v1832
        %vm1885 = vcmask 257024
        %1886 = vst.msk [vmem:[%s625] sm:$0xf] %vm1885, %v1833
        %1887 = vst.msk [vmem:[%s625 + $0x4] sm:$0xf] %vm1885, %v1834
        %1888 = vst.msk [vmem:[%s625 + $0x8] sm:$0xf] %vm1885, %v1835
        %1889 = vst.msk [vmem:[%s625 + $0xc] sm:$0xf] %vm1885, %v1836
        %1890 = vst.msk [vmem:[%s625 + $0x10] sm:$0xf] %vm1885, %v1837
        %1891 = vst.msk [vmem:[%s625 + $0x14] sm:$0xf] %vm1885, %v1838
        %1892 = vst.msk [vmem:[%s625 + $0x18] sm:$0xf] %vm1885, %v1839
        %1893 = vst.msk [vmem:[%s625 + $0x1c] sm:$0xf] %vm1885, %v1840
        %1894 = vst.msk [vmem:[%s625 + $0x20] sm:$0xf] %vm1885, %v1841
        %1895 = vst.msk [vmem:[%s625 + $0x24] sm:$0xf] %vm1885, %v1842
        %1896 = vst.msk [vmem:[%s625 + $0x28] sm:$0xf] %vm1885, %v1843
        %1897 = vst.msk [vmem:[%s625 + $0x2c] sm:$0xf] %vm1885, %v1844
        %1898 = vst.msk [vmem:[%s625 + $0x30] sm:$0xf] %vm1885, %v1845
        %1899 = vst.msk [vmem:[%s625 + $0x34] sm:$0xf] %vm1885, %v1846
        %1900 = vst.msk [vmem:[%s625 + $0x38] sm:$0xf] %vm1885, %v1847
        %1901 = vst.msk [vmem:[%s625 + $0x3c] sm:$0xf] %vm1885, %v1848
        %1902 = vst.msk [vmem:[%s625 + $0x40] sm:$0xf] %vm1885, %v1849
        %1903 = vst.msk [vmem:[%s625 + $0x44] sm:$0xf] %vm1885, %v1850
        %1904 = vst.msk [vmem:[%s625 + $0x48] sm:$0xf] %vm1885, %v1851
        %1905 = vst.msk [vmem:[%s625 + $0x4c] sm:$0xf] %vm1885, %v1852
        %1906 = vst.msk [vmem:[%s625 + $0x50] sm:$0xf] %vm1885, %v1853
        %1907 = vst.msk [vmem:[%s625 + $0x54] sm:$0xf] %vm1885, %v1854
        %1908 = vst.msk [vmem:[%s625 + $0x58] sm:$0xf] %vm1885, %v1855
        %1909 = vst.msk [vmem:[%s625 + $0x5c] sm:$0xf] %vm1885, %v1856
        %1910 = vst.msk [vmem:[%s625 + $0x60] sm:$0xf] %vm1885, %v1857
        %1911 = vst.msk [vmem:[%s625 + $0x64] sm:$0xf] %vm1885, %v1858
        %s1912 = smul.u32 26, %s14
        %p1913 = scmp.lt.s32.totalorder %s1912, 51
        %s1914 = scalar_select %p1913, %s1912, 51
        %s1915 = smul.addr %s1914, 4
        %s1916 = scalar_lea.vmem %s3, %s1915
        // Predicated region
        $region74: #{convnet_forward.3} parent=68 // pred_check
          %p1917 = pneg %p100
        $region75: #{convnet_forward.3} parent=68 // pred_check_branch
          %1919 = sbr.rel (%p1917) target = $region77
        $region76: #{convnet_forward.3} parent=68 // pred_region
          %s1920 = smul.u32 26, %s14
        $region77: #{convnet_forward.3} parent=68 // pred_fallthru
          _
      $region69: #{convnet_forward.3} parent=5 // pred_fallthru
        _
      %p1921 = scmp.le.s32.totalorder 2, %s9
      // Predicated region
      $region78: #{convnet_forward.3} parent=5 // pred_check
        %p1922 = pneg %p1921
      $region79: #{convnet_forward.3} parent=5 // pred_check_branch
        %1924 = sbr.rel (%p1922) target = $region81
      $region80: #{convnet_forward.3} parent=5 // pred_region
        %s1925 = ssub.s32 %s9, 2
        // Predicated region
        $region82: #{convnet_forward.3} parent=80 // pred_check
          %p1926 = pneg %p106
        $region83: #{convnet_forward.3} parent=80 // pred_check_branch
          %1928 = sbr.rel (%p1926) target = $region85
        $region84: #{convnet_forward.3} parent=80 // pred_region
          %s1929 = smul.u32 26, %s15
          %p1930 = scmp.lt.s32.totalorder %s1929, 51
          %s1931 = scalar_select %p1930, %s1929, 51
          %s1932 = smul.addr %s1931, 4
          %s1933 = scalar_lea.vmem %s3, %s1932
        $region85: #{convnet_forward.3} parent=80 // pred_fallthru
          _
      $region81: #{convnet_forward.3} parent=5 // pred_fallthru
        _
    $region6: #{convnet_forward.3} parent=1 // loop_footer
      %s13 = sadd.s32 1, %s9
    $region7: #{convnet_forward.3} parent=1 // loop_footer_branch
      %8 = sbr.rel target = $region3
    $region8: #{convnet_forward.3} parent=1 // loop_exit
      _

// kernel: convnet_forward.4
$region0: #{convnet_forward.4}
  #allocation0 [shape = 'u32[]', space=smem, size = 0x4, offset = 0x4, fixed_abs, tag = 'smem constant byte address 0x4 - core index']
  #allocation1 [shape = 'u32[144,128]{1,0:T(1,128)}', space=vmem, size = 0x12000, scoped, tag = 'internal scratch']
  %s0 = inlined_call_operand.vmem [shape: bf16[4,96,288], index: 0, kind: input, shape index: {}]
  %s1 = inlined_call_operand.vmem [shape: bf16[288,64], index: 1, kind: input, shape index: {}]
  %s2 = inlined_call_operand.vmem [shape: f32[1,64], index: 2, kind: input, shape index: {}]
  %s3 = inlined_call_operand.vmem [shape: bf16[96,64], index: 3, kind: output, shape index: {}]
  %s4 = sld [smem:[#allocation0]]
  $region71: #{convnet_forward.4} parent=0
    _
  %s6 = ssub.s32 1, %s4
  %s7 = scalar_select 0, %s6, %s4
  $region1: #{convnet_forward.4} parent=0
    #allocation2 [shape = 'u8[294912]{0}', space=vmem, size = 0x48000, scoped, tag = 'input window, operand 0']
    loop: start=0, step=1, limit=4
    $region2: #{convnet_forward.4} parent=1 // loop_pre_header
      _
    $region3: #{convnet_forward.4} parent=1 // loop_header
      %s9 = sphi 0, %s13
      %p10 = scmp.ge.s32.totalorder %s9, 4
      %s19 = sphi 0, %s21
      %s22 = sphi 0, %s19
      %s23 = sphi 0, %s22
      %s39 = sphi 0, %s23
      %s43 = sphi 0, %s43
      %s45 = sphi 0, %s43
      %s46 = sphi 0, %s45
      %s60 = sphi 0, %s46
      %s64 = sphi 0, %s64
      %s66 = sphi 0, %s64
      %s67 = sphi 0, %s66
      %s81 = sphi 0, %s67
      %s87 = sphi 0, %s89
      %s90 = sphi 0, %s87
      %s91 = sphi 0, %s90
      %s107 = sphi 0, %s91
    $region4: #{convnet_forward.4} parent=1 // loop_header_branch
      %12 = sbr.rel (%p10) target = $region8
    $region5: #{convnet_forward.4} parent=1 // loop_body
      %s14 = ssub.s32 %s9, 1
      %s15 = ssub.s32 %s9, 2
      %s16 = sadd.s32 %s9, 1
      %s17 = ssub.s32 %s9, %s16
      %p18 = scmp.eq.s32.totalorder %s17, 0
      %s20 = sadd.s32 %s19, 1
      %s21 = scalar_select %p18, %s19, %s20
      %p24 = pneg %p18
      %p25 = scmp.eq.s32.totalorder %s9, 1
      %p26 = por %p24, %p25
      %p27 = scmp.ne.s32.totalorder %s19, %s22
      %p28 = scmp.eq.s32.totalorder %s9, 0
      %p29 = por %p27, %p28
      %p30 = scmp.ne.s32.totalorder %s19, %s22
      %p31 = scmp.eq.s32.totalorder %s14, 1
      %p32 = por %p30, %p31
      %p33 = scmp.ne.s32.totalorder %s22, %s23
      %p34 = scmp.eq.s32.totalorder %s14, 0
      %p35 = por %p33, %p34
      %p36 = scmp.ne.s32.totalorder %s22, %s23
      %p37 = scmp.eq.s32.totalorder %s15, 1
      %p38 = por %p36, %p37
      %p40 = scmp.ne.s32.totalorder %s23, %s39
      %p41 = scmp.eq.s32.totalorder %s15, 0
      %p42 = por %p40, %p41
      %s44 = sadd.s32 %s43, 1
      %p47 = scmp.eq.s32.totalorder %s9, 1
      %p48 = scmp.ne.s32.totalorder %s43, %s45
      %p49 = scmp.eq.s32.totalorder %s9, 0
      %p50 = por %p48, %p49
      %p51 = scmp.ne.s32.totalorder %s43, %s45
      %p52 = scmp.eq.s32.totalorder %s14, 1
      %p53 = por %p51, %p52
      %p54 = scmp.ne.s32.totalorder %s45, %s46
      %p55 = scmp.eq.s32.totalorder %s14, 0
      %p56 = por %p54, %p55
      %p57 = scmp.ne.s32.totalorder %s45, %s46
      %p58 = scmp.eq.s32.totalorder %s15, 1
      %p59 = por %p57, %p58
      %p61 = scmp.ne.s32.totalorder %s46, %s60
      %p62 = scmp.eq.s32.totalorder %s15, 0
      %p63 = por %p61, %p62
      %s65 = sadd.s32 %s64, 1
      %p68 = scmp.eq.s32.totalorder %s9, 1
      %p69 = scmp.ne.s32.totalorder %s64, %s66
      %p70 = scmp.eq.s32.totalorder %s9, 0
      %p71 = por %p69, %p70
      %p72 = scmp.ne.s32.totalorder %s64, %s66
      %p73 = scmp.eq.s32.totalorder %s14, 1
      %p74 = por %p72, %p73
      %p75 = scmp.ne.s32.totalorder %s66, %s67
      %p76 = scmp.eq.s32.totalorder %s14, 0
      %p77 = por %p75, %p76
      %p78 = scmp.ne.s32.totalorder %s66, %s67
      %p79 = scmp.eq.s32.totalorder %s15, 1
      %p80 = por %p78, %p79
      %p82 = scmp.ne.s32.totalorder %s67, %s81
      %p83 = scmp.eq.s32.totalorder %s15, 0
      %p84 = por %p82, %p83
      %s85 = ssub.s32 %s9, %s16
      %p86 = scmp.eq.s32.totalorder %s85, 0
      %s88 = sadd.s32 %s87, 1
      %s89 = scalar_select %p86, %s87, %s88
      %p92 = pneg %p86
      %p93 = scmp.eq.s32.totalorder %s9, 1
      %p94 = por %p92, %p93
      %p95 = scmp.ne.s32.totalorder %s87, %s90
      %p96 = scmp.eq.s32.totalorder %s9, 0
      %p97 = por %p95, %p96
      %p98 = scmp.ne.s32.totalorder %s87, %s90
      %p99 = scmp.eq.s32.totalorder %s14, 1
      %p100 = por %p98, %p99
      %p101 = scmp.ne.s32.totalorder %s90, %s91
      %p102 = scmp.eq.s32.totalorder %s14, 0
      %p103 = por %p101, %p102
      %p104 = scmp.ne.s32.totalorder %s90, %s91
      %p105 = scmp.eq.s32.totalorder %s15, 1
      %p106 = por %p104, %p105
      %p108 = scmp.ne.s32.totalorder %s91, %s107
      %p109 = scmp.eq.s32.totalorder %s15, 0
      %p110 = por %p108, %p109
      %p111 = scmp.le.s32.totalorder 1, %s9
      %p112 = scmp.lt.s32.totalorder %s9, 3
      %p113 = pnand %p111, %p112
      %p114 = pneg %p113
      // Predicated region
      $region9: #{convnet_forward.4} parent=5 // pred_check
        _
      $region10: #{convnet_forward.4} parent=5 // pred_check_branch
        %116 = sbr.rel (%p113) target = $region12
      $region11: #{convnet_forward.4} parent=5 // pred_region
        %s117 = ssub.s32 %s9, 1
        // Predicated region
        $region13: #{convnet_forward.4} parent=11 // pred_check
          %p118 = pneg %p56
        $region14: #{convnet_forward.4} parent=11 // pred_check_branch
          %120 = sbr.rel (%p118) target = $region16
        $region15: #{convnet_forward.4} parent=11 // pred_region
          _
        $region16: #{convnet_forward.4} parent=11 // pred_fallthru
          _
        // Predicated region
        $region17: #{convnet_forward.4} parent=11 // pred_check
          %p121 = pneg %p77
        $region18: #{convnet_forward.4} parent=11 // pred_check_branch
          %123 = sbr.rel (%p121) target = $region20
        $region19: #{convnet_forward.4} parent=11 // pred_region
          _
        $region20: #{convnet_forward.4} parent=11 // pred_fallthru
          _
      $region12: #{convnet_forward.4} parent=5 // pred_fallthru
        _
      %p124 = scmp.lt.s32.totalorder %s9, 2
      // Predicated region
      $region21: #{convnet_forward.4} parent=5 // pred_check
        %p125 = pneg %p124
      $region22: #{convnet_forward.4} parent=5 // pred_check_branch
        %127 = sbr.rel (%p125) target = $region24
      $region23: #{convnet_forward.4} parent=5 // pred_region
        // Predicated region
        $region25: #{convnet_forward.4} parent=23 // pred_check
          %p128 = pneg %p29
        $region26: #{convnet_forward.4} parent=23 // pred_check_branch
          %130 = sbr.rel (%p128) target = $region28
        $region27: #{convnet_forward.4} parent=23 // pred_region
          %s131 = sand.u32 %s19, 1
          %s132 = sand.u32 %s19, 1
          %s133 = smul.addr %s132, 288
          %s134 = scalar_lea.vmem [#allocation2], %s133
          %s135 = smul.u32 6, %s9
          %s136 = smul.addr %s135, 3
          %s137 = smul.addr %s136, 4
          %s138 = scalar_lea.vmem %s0, %s137
          // Predicated region
          $region29: #{convnet_forward.4} parent=27 // pred_check
            _
          $region30: #{convnet_forward.4} parent=27 // pred_check_branch
            %140 = sbr.rel (0) target = $region32
          $region31: #{convnet_forward.4} parent=27 // pred_region
            // Predicated region
            $region33: #{convnet_forward.4} parent=31 // pred_check
              _
            $region34: #{convnet_forward.4} parent=31 // pred_check_branch
              %142 = sbr.rel (0) target = $region36
            $region35: #{convnet_forward.4} parent=31 // pred_region
              %s143 = scalar_lea.vmem %s138, 8
              %s144 = scalar_lea.vmem %s134, 8 [#allocation2]
              loop: start=0, step=1, limit=1
              $region37: #{convnet_forward.4} parent=35 // loop_pre_header
                _
              $region38: #{convnet_forward.4} parent=35 // loop_header
                %s146 = sphi 0, %s150
                %p147 = scmp.ge.s32.totalorder %s146, 1
                %s151 = sphi %s138, %s138
                %s152 = sphi %s134, %s134
              $region39: #{convnet_forward.4} parent=35 // loop_header_branch
                %149 = sbr.rel (%p147) target = $region43
              $region40: #{convnet_forward.4} parent=35 // loop_body
                %v153 = vld [vmem:[%s151] sm:$0xff]
                %154 = vst [vmem:[%s152] sm:$0xff] %v153
                %v155 = vld [vmem:[%s151 + $0xc] sm:$0xff]
                %156 = vst [vmem:[%s152 + $0xc] sm:$0xff] %v155
                %v157 = vld [vmem:[%s151 + $0x18] sm:$0xff]
                %158 = vst [vmem:[%s152 + $0x18] sm:$0xff] %v157
                %v159 = vld [vmem:[%s151 + $0x24] sm:$0xff]
                %160 = vst [vmem:[%s152 + $0x24] sm:$0xff] %v159
                %v161 = vld [vmem:[%s151 + $0x30] sm:$0xff]
                %162 = vst [vmem:[%s152 + $0x30] sm:$0xff] %v161
                %v163 = vld [vmem:[%s151 + $0x3c] sm:$0xff]
                %164 = vst [vmem:[%s152 + $0x3c] sm:$0xff] %v163
                %v165 = vld [vmem:[%s151 + $0x90] sm:$0xff]
                %166 = vst [vmem:[%s152 + $0x48] sm:$0xff] %v165
                %v167 = vld [vmem:[%s151 + $0x9c] sm:$0xff]
                %168 = vst [vmem:[%s152 + $0x54] sm:$0xff] %v167
                %v169 = vld [vmem:[%s151 + $0xa8] sm:$0xff]
                %170 = vst [vmem:[%s152 + $0x60] sm:$0xff] %v169
                %v171 = vld [vmem:[%s151 + $0xb4] sm:$0xff]
                %172 = vst [vmem:[%s152 + $0x6c] sm:$0xff] %v171
                %v173 = vld [vmem:[%s151 + $0xc0] sm:$0xff]
                %174 = vst [vmem:[%s152 + $0x78] sm:$0xff] %v173
                %v175 = vld [vmem:[%s151 + $0xcc] sm:$0xff]
                %176 = vst [vmem:[%s152 + $0x84] sm:$0xff] %v175
                %v177 = vld [vmem:[%s151 + $0x120] sm:$0xff]
                %178 = vst [vmem:[%s152 + $0x90] sm:$0xff] %v177
                %v179 = vld [vmem:[%s151 + $0x12c] sm:$0xff]
                %180 = vst [vmem:[%s152 + $0x9c] sm:$0xff] %v179
                %v181 = vld [vmem:[%s151 + $0x138] sm:$0xff]
                %182 = vst [vmem:[%s152 + $0xa8] sm:$0xff] %v181
                %v183 = vld [vmem:[%s151 + $0x144] sm:$0xff]
                %184 = vst [vmem:[%s152 + $0xb4] sm:$0xff] %v183
                %v185 = vld [vmem:[%s151 + $0x150] sm:$0xff]
                %186 = vst [vmem:[%s152 + $0xc0] sm:$0xff] %v185
                %v187 = vld [vmem:[%s151 + $0x15c] sm:$0xff]
                %188 = vst [vmem:[%s152 + $0xcc] sm:$0xff] %v187
                %v189 = vld [vmem:[%s151 + $0x1b0] sm:$0xff]
                %190 = vst [vmem:[%s152 + $0xd8] sm:$0xff] %v189
                %v191 = vld [vmem:[%s151 + $0x1bc] sm:$0xff]
                %192 = vst [vmem:[%s152 + $0xe4] sm:$0xff] %v191
                %v193 = vld [vmem:[%s151 + $0x1c8] sm:$0xff]
                %194 = vst [vmem:[%s152 + $0xf0] sm:$0xff] %v193
                %v195 = vld [vmem:[%s151 + $0x1d4] sm:$0xff]
                %196 = vst [vmem:[%s152 + $0xfc] sm:$0xff] %v195
                %v197 = vld [vmem:[%s151 + $0x1e0] sm:$0xff]
                %198 = vst [vmem:[%s152 + $0x108] sm:$0xff] %v197
                %v199 = vld [vmem:[%s151 + $0x1ec] sm:$0xff]
                %200 = vst [vmem:[%s152 + $0x114] sm:$0xff] %v199
              $region41: #{convnet_forward.4} parent=35 // loop_footer
                %s150 = sadd.s32 1, %s146
              $region42: #{convnet_forward.4} parent=35 // loop_footer_branch
                %145 = sbr.rel target = $region38
              $region43: #{convnet_forward.4} parent=35 // loop_exit
                _
              loop: start=0, step=1, limit=1
              $region44: #{convnet_forward.4} parent=35 // loop_pre_header
                _
              $region45: #{convnet_forward.4} parent=35 // loop_header
                %s203 = sphi 0, %s207
                %p204 = scmp.ge.s32.totalorder %s203, 1
                %s208 = sphi %s143, %s143
                %s209 = sphi %s144, %s144
              $region46: #{convnet_forward.4} parent=35 // loop_header_branch
                %206 = sbr.rel (%p204) target = $region50
              $region47: #{convnet_forward.4} parent=35 // loop_body
                %v210 = vld [vmem:[%s208] sm:$0xf]
                %211 = vst [vmem:[%s209] sm:$0xf] %v210
                %v212 = vld [vmem:[%s208 + $0xc] sm:$0xf]
                %213 = vst [vmem:[%s209 + $0xc] sm:$0xf] %v212
                %v214 = vld [vmem:[%s208 + $0x18] sm:$0xf]
                %215 = vst [vmem:[%s209 + $0x18] sm:$0xf] %v214
                %v216 = vld [vmem:[%s208 + $0x24] sm:$0xf]
                %217 = vst [vmem:[%s209 + $0x24] sm:$0xf] %v216
                %v218 = vld [vmem:[%s208 + $0x30] sm:$0xf]
                %219 = vst [vmem:[%s209 + $0x30] sm:$0xf] %v218
                %v220 = vld [vmem:[%s208 + $0x3c] sm:$0xf]
                %221 = vst [vmem:[%s209 + $0x3c] sm:$0xf] %v220
                %v222 = vld [vmem:[%s208 + $0x90] sm:$0xf]
                %223 = vst [vmem:[%s209 + $0x48] sm:$0xf] %v222
                %v224 = vld [vmem:[%s208 + $0x9c] sm:$0xf]
                %225 = vst [vmem:[%s209 + $0x54] sm:$0xf] %v224
                %v226 = vld [vmem:[%s208 + $0xa8] sm:$0xf]
                %227 = vst [vmem:[%s209 + $0x60] sm:$0xf] %v226
                %v228 = vld [vmem:[%s208 + $0xb4] sm:$0xf]
                %229 = vst [vmem:[%s209 + $0x6c] sm:$0xf] %v228
                %v230 = vld [vmem:[%s208 + $0xc0] sm:$0xf]
                %231 = vst [vmem:[%s209 + $0x78] sm:$0xf] %v230
                %v232 = vld [vmem:[%s208 + $0xcc] sm:$0xf]
                %233 = vst [vmem:[%s209 + $0x84] sm:$0xf] %v232
                %v234 = vld [vmem:[%s208 + $0x120] sm:$0xf]
                %235 = vst [vmem:[%s209 + $0x90] sm:$0xf] %v234
                %v236 = vld [vmem:[%s208 + $0x12c] sm:$0xf]
                %237 = vst [vmem:[%s209 + $0x9c] sm:$0xf] %v236
                %v238 = vld [vmem:[%s208 + $0x138] sm:$0xf]
                %239 = vst [vmem:[%s209 + $0xa8] sm:$0xf] %v238
                %v240 = vld [vmem:[%s208 + $0x144] sm:$0xf]
                %241 = vst [vmem:[%s209 + $0xb4] sm:$0xf] %v240
                %v242 = vld [vmem:[%s208 + $0x150] sm:$0xf]
                %243 = vst [vmem:[%s209 + $0xc0] sm:$0xf] %v242
                %v244 = vld [vmem:[%s208 + $0x15c] sm:$0xf]
                %245 = vst [vmem:[%s209 + $0xcc] sm:$0xf] %v244
                %v246 = vld [vmem:[%s208 + $0x1b0] sm:$0xf]
                %247 = vst [vmem:[%s209 + $0xd8] sm:$0xf] %v246
                %v248 = vld [vmem:[%s208 + $0x1bc] sm:$0xf]
                %249 = vst [vmem:[%s209 + $0xe4] sm:$0xf] %v248
                %v250 = vld [vmem:[%s208 + $0x1c8] sm:$0xf]
                %251 = vst [vmem:[%s209 + $0xf0] sm:$0xf] %v250
                %v252 = vld [vmem:[%s208 + $0x1d4] sm:$0xf]
                %253 = vst [vmem:[%s209 + $0xfc] sm:$0xf] %v252
                %v254 = vld [vmem:[%s208 + $0x1e0] sm:$0xf]
                %255 = vst [vmem:[%s209 + $0x108] sm:$0xf] %v254
                %v256 = vld [vmem:[%s208 + $0x1ec] sm:$0xf]
                %257 = vst [vmem:[%s209 + $0x114] sm:$0xf] %v256
              $region48: #{convnet_forward.4} parent=35 // loop_footer
                %s207 = sadd.s32 1, %s203
              $region49: #{convnet_forward.4} parent=35 // loop_footer_branch
                %202 = sbr.rel target = $region45
              $region50: #{convnet_forward.4} parent=35 // loop_exit
                _
            $region36: #{convnet_forward.4} parent=31 // pred_fallthru
              _
          $region32: #{convnet_forward.4} parent=27 // pred_fallthru
            _
          %258 = vnop
        $region28: #{convnet_forward.4} parent=23 // pred_fallthru
          _
      $region24: #{convnet_forward.4} parent=5 // pred_fallthru
        _
      %p259 = scmp.le.s32.totalorder 1, %s9
      %p260 = scmp.lt.s32.totalorder %s9, 3
      %p261 = pnand %p259, %p260
      %p262 = pneg %p261
      // Predicated region
      $region51: #{convnet_forward.4} parent=5 // pred_check
        _
      $region52: #{convnet_forward.4} parent=5 // pred_check_branch
        %264 = sbr.rel (%p261) target = $region54
      $region53: #{convnet_forward.4} parent=5 // pred_region
        %s265 = ssub.s32 %s9, 1
        %s266 = sand.u32 %s22, 1
        %s267 = sand.u32 %s22, 1
        %s268 = smul.addr %s267, 288
        %s269 = scalar_lea.vmem [#allocation2], %s268
        // Predicated region
        $region55: #{convnet_forward.4} parent=53 // pred_check
          %p270 = pneg %p35
        $region56: #{convnet_forward.4} parent=53 // pred_check_branch
          %272 = sbr.rel (%p270) target = $region58
        $region57: #{convnet_forward.4} parent=53 // pred_region
          _
        $region58: #{convnet_forward.4} parent=53 // pred_fallthru
          _
        %s273 = sand.u32 %s22, 1
        %s274 = sand.u32 %s22, 1
        %s275 = smul.addr %s274, 288
        %s276 = scalar_lea.vmem [#allocation2], %s275
        %p277 = pneg %p35
        %p278 = pneg %p32
        %p279 = pneg %p56
        %p280 = pneg %p53
        %p281 = pneg %p77
        %p282 = pneg %p74
        %p283 = pneg %p103
        %p284 = pneg %p100
        %s285 = smul.u32 6, %s14
        %p286 = scmp.lt.s32.totalorder %s285, 11
        %s287 = scalar_select %p286, %s285, 11
        %s288 = smul.addr %s287, 4
        %s289 = scalar_lea.vmem %s3, %s288
        %s290 = smul.u32 6, %s14
        %s291 = smul.u32 6, %s14
        %p292 = scmp.lt.s32.totalorder %s291, 11
        %s293 = scalar_select %p292, %s291, 11
        %s294 = smul.addr %s293, 4
        %s295 = scalar_lea.vmem %s3, %s294
        %s296 = smul.u32 6, %s14
        %v298 = vld [vmem:[%s269] sm:$0xff]
        %v299 = vld [vmem:[%s269 + $0x8] sm:$0xf]
        %v300 = vld [vmem:[%s269 + $0xc] sm:$0xff]
        %v301 = vld [vmem:[%s269 + $0x14] sm:$0xf]
        %v302 = vld [vmem:[%s269 + $0x18] sm:$0xff]
        %v303 = vld [vmem:[%s269 + $0x20] sm:$0xf]
        %v304 = vld [vmem:[%s269 + $0x24] sm:$0xff]
        %v305 = vld [vmem:[%s269 + $0x2c] sm:$0xf]
        %v306 = vld [vmem:[%s269 + $0x30] sm:$0xff]
        %v307 = vld [vmem:[%s269 + $0x38] sm:$0xf]
        %v308 = vld [vmem:[%s269 + $0x3c] sm:$0xff]
        %v309 = vld [vmem:[%s269 + $0x44] sm:$0xf]
        %v310 = vld [vmem:[%s269 + $0x48] sm:$0xff]
        %v311 = vld [vmem:[%s269 + $0x50] sm:$0xf]
        %v312 = vld [vmem:[%s269 + $0x54] sm:$0xff]
        %v313 = vld [vmem:[%s269 + $0x5c] sm:$0xf]
        %v314 = vld [vmem:[%s269 + $0x60] sm:$0xff]
        %v315 = vld [vmem:[%s269 + $0x68] sm:$0xf]
        %v316 = vld [vmem:[%s269 + $0x6c] sm:$0xff]
        %v317 = vld [vmem:[%s269 + $0x74] sm:$0xf]
        %v318 = vld [vmem:[%s269 + $0x78] sm:$0xff]
        %v319 = vld [vmem:[%s269 + $0x80] sm:$0xf]
        %v320 = vld [vmem:[%s269 + $0x84] sm:$0xff]
        %v321 = vld [vmem:[%s269 + $0x8c] sm:$0xf]
        %v322 = vld [vmem:[%s269 + $0x90] sm:$0xff]
        %v323 = vld [vmem:[%s269 + $0x98] sm:$0xf]
        %v324 = vld [vmem:[%s269 + $0x9c] sm:$0xff]
        %v325 = vld [vmem:[%s269 + $0xa4] sm:$0xf]
        %v326 = vld [vmem:[%s269 + $0xa8] sm:$0xff]
        %v327 = vld [vmem:[%s269 + $0xb0] sm:$0xf]
        %v328 = vld [vmem:[%s269 + $0xb4] sm:$0xff]
        %v329 = vld [vmem:[%s269 + $0xbc] sm:$0xf]
        %v330 = vld [vmem:[%s269 + $0xc0] sm:$0xff]
        %v331 = vld [vmem:[%s269 + $0xc8] sm:$0xf]
        %v332 = vld [vmem:[%s269 + $0xcc] sm:$0xff]
        %v333 = vld [vmem:[%s269 + $0xd4] sm:$0xf]
        %v334 = vld [vmem:[%s269 + $0xd8] sm:$0xff]
        %v335 = vld [vmem:[%s269 + $0xe0] sm:$0xf]
        %v336 = vld [vmem:[%s269 + $0xe4] sm:$0xff]
        %v337 = vld [vmem:[%s269 + $0xec] sm:$0xf]
        %v338 = vld [vmem:[%s269 + $0xf0] sm:$0xff]
        %v339 = vld [vmem:[%s269 + $0xf8] sm:$0xf]
        %v340 = vld [vmem:[%s269 + $0xfc] sm:$0xff]
        %v341 = vld [vmem:[%s269 + $0x104] sm:$0xf]
        %v342 = vld [vmem:[%s269 + $0x108] sm:$0xff]
        %v343 = vld [vmem:[%s269 + $0x110] sm:$0xf]
        %v344 = vld [vmem:[%s269 + $0x114] sm:$0xff]
        %v345 = vld [vmem:[%s269 + $0x11c] sm:$0xf]
        %v346 = vld [vmem:[%s1] sm:$0xf]
        %v347 = vld [vmem:[%s1 + $0x4] sm:$0xf]
        %v348 = vld [vmem:[%s1 + $0x8] sm:$0xf]
        %v349 = vld [vmem:[%s1 + $0xc] sm:$0xf]
        %v350 = vld [vmem:[%s1 + $0x10] sm:$0xf]
        %v351 = vld [vmem:[%s1 + $0x14] sm:$0xf]
        %v352 = vld [vmem:[%s1 + $0x18] sm:$0xf]
        %v353 = vld [vmem:[%s1 + $0x1c] sm:$0xf]
        %v354 = vld [vmem:[%s1 + $0x20] sm:$0xf]
        %v355 = vld [vmem:[%s1 + $0x24] sm:$0xf]
        %v356 = vld [vmem:[%s1 + $0x28] sm:$0xf]
        %v357 = vld [vmem:[%s1 + $0x2c] sm:$0xf]
        %v358 = vld [vmem:[%s1 + $0x30] sm:$0xf]
        %v359 = vld [vmem:[%s1 + $0x34] sm:$0xf]
        %v360 = vld [vmem:[%s1 + $0x38] sm:$0xf]
        %v361 = vld [vmem:[%s1 + $0x3c] sm:$0xf]
        %v362 = vld [vmem:[%s1 + $0x40] sm:$0xf]
        %v363 = vld [vmem:[%s1 + $0x44] sm:$0xf]
        %v364 = vld [vmem:[%s1 + $0x48] sm:$0xf]
        %v365 = vld [vmem:[%s1 + $0x4c] sm:$0xf]
        %v366 = vld [vmem:[%s1 + $0x50] sm:$0xf]
        %v367 = vld [vmem:[%s1 + $0x54] sm:$0xf]
        %v368 = vld [vmem:[%s1 + $0x58] sm:$0xf]
        %v369 = vld [vmem:[%s1 + $0x5c] sm:$0xf]
        %v370 = vld [vmem:[%s1 + $0x60] sm:$0xf]
        %v371 = vld [vmem:[%s1 + $0x64] sm:$0xf]
        %v372 = vld [vmem:[%s1 + $0x68] sm:$0xf]
        %v373 = vld [vmem:[%s1 + $0x6c] sm:$0xf]
        %v374 = vld [vmem:[%s1 + $0x70] sm:$0xf]
        %v375 = vld [vmem:[%s1 + $0x74] sm:$0xf]
        %v376 = vld [vmem:[%s1 + $0x78] sm:$0xf]
        %v377 = vld [vmem:[%s1 + $0x7c] sm:$0xf]
        %v378 = vld [vmem:[%s1 + $0x80] sm:$0xf]
        %v379 = vld [vmem:[%s1 + $0x84] sm:$0xf]
        %v380 = vld [vmem:[%s1 + $0x88] sm:$0xf]
        %v381 = vld [vmem:[%s1 + $0x8c] sm:$0xf]
        %v430 = vunpack.c.l.b16 %v298
        %v431 = vunpack.c.h.b16 %v298
        %v432 = vunpack.c.l.b16 %v299
        %v433 = vunpack.c.l.b16 %v300
        %v434 = vunpack.c.h.b16 %v300
        %v435 = vunpack.c.l.b16 %v301
        %v436 = vunpack.c.l.b16 %v302
        %v437 = vunpack.c.h.b16 %v302
        %v438 = vunpack.c.l.b16 %v303
        %v439 = vunpack.c.l.b16 %v304
        %v440 = vunpack.c.h.b16 %v304
        %v441 = vunpack.c.l.b16 %v305
        %v442 = vunpack.c.l.b16 %v306
        %v443 = vunpack.c.h.b16 %v306
        %v444 = vunpack.c.l.b16 %v307
        %v445 = vunpack.c.l.b16 %v308
        %v446 = vunpack.c.h.b16 %v308
        %v447 = vunpack.c.l.b16 %v309
        %v448 = vunpack.c.l.b16 %v310
        %v449 = vunpack.c.h.b16 %v310
        %v450 = vunpack.c.l.b16 %v311
        %v451 = vunpack.c.l.b16 %v312
        %v452 = vunpack.c.h.b16 %v312
        %v453 = vunpack.c.l.b16 %v313
        %v454 = vunpack.c.l.b16 %v314
        %v455 = vunpack.c.h.b16 %v314
        %v456 = vunpack.c.l.b16 %v315
        %v457 = vunpack.c.l.b16 %v316
        %v458 = vunpack.c.h.b16 %v316
        %v459 = vunpack.c.l.b16 %v317
        %v460 = vunpack.c.l.b16 %v318
        %v461 = vunpack.c.h.b16 %v318
        %v462 = vunpack.c.l.b16 %v319
        %v463 = vunpack.c.l.b16 %v320
        %v464 = vunpack.c.h.b16 %v320
        %v465 = vunpack.c.l.b16 %v321
        %v466 = vunpack.c.l.b16 %v322
        %v467 = vunpack.c.h.b16 %v322
        %v468 = vunpack.c.l.b16 %v323
        %v469 = vunpack.c.l.b16 %v324
        %v470 = vunpack.c.h.b16 %v324
        %v471 = vunpack.c.l.b16 %v325
        %v472 = vunpack.c.l.b16 %v326
        %v473 = vunpack.c.h.b16 %v326
        %v474 = vunpack.c.l.b16 %v327
        %v475 = vunpack.c.l.b16 %v328
        %v476 = vunpack.c.h.b16 %v328
        %v477 = vunpack.c.l.b16 %v329
        %v478 = vunpack.c.l.b16 %v330
        %v479 = vunpack.c.h.b16 %v330
        %v480 = vunpack.c.l.b16 %v331
        %v481 = vunpack.c.l.b16 %v332
        %v482 = vunpack.c.h.b16 %v332
        %v483 = vunpack.c.l.b16 %v333
        %v484 = vunpack.c.l.b16 %v334
        %v485 = vunpack.c.h.b16 %v334
        %v486 = vunpack.c.l.b16 %v335
        %v487 = vunpack.c.l.b16 %v336
        %v488 = vunpack.c.h.b16 %v336
        %v489 = vunpack.c.l.b16 %v337
        %v490 = vunpack.c.l.b16 %v338
        %v491 = vunpack.c.h.b16 %v338
        %v492 = vunpack.c.l.b16 %v339
        %v493 = vunpack.c.l.b16 %v340
        %v494 = vunpack.c.h.b16 %v340
        %v495 = vunpack.c.l.b16 %v341
        %v496 = vunpack.c.l.b16 %v342
        %v497 = vunpack.c.h.b16 %v342
        %v498 = vunpack.c.l.b16 %v343
        %v499 = vunpack.c.l.b16 %v344
        %v500 = vunpack.c.h.b16 %v344
        %v501 = vunpack.c.l.b16 %v345
        %v502 = vpack.c.b16 %v433, %v430
        %v503 = vpack.c.b16 %v434, %v431
        %v504 = vpack.c.b16 %v435, %v432
        %v505 = vpack.c.b16 %v439, %v436
        %v506 = vpack.c.b16 %v440, %v437
        %v507 = vpack.c.b16 %v441, %v438
        %v508 = vpack.c.b16 %v445, %v442
        %v509 = vpack.c.b16 %v446, %v443
        %v510 = vpack.c.b16 %v447, %v444
        %v511 = vpack.c.b16 %v451, %v448
        %v512 = vpack.c.b16 %v452, %v449
        %v513 = vpack.c.b16 %v453, %v450
        %v514 = vpack.c.b16 %v457, %v454
        %v515 = vpack.c.b16 %v458, %v455
        %v516 = vpack.c.b16 %v459, %v456
        %v517 = vpack.c.b16 %v463, %v460
        %v518 = vpack.c.b16 %v464, %v461
        %v519 = vpack.c.b16 %v465, %v462
        %v520 = vpack.c.b16 %v469, %v466
        %v521 = vpack.c.b16 %v470, %v467
        %v522 = vpack.c.b16 %v471, %v468
        %v523 = vpack.c.b16 %v475, %v472
        %v524 = vpack.c.b16 %v476, %v473
        %v525 = vpack.c.b16 %v477, %v474
        %v526 = vpack.c.b16 %v481, %v478
        %v527 = vpack.c.b16 %v482, %v479
        %v528 = vpack.c.b16 %v483, %v480
        %v529 = vpack.c.b16 %v487, %v484
        %v530 = vpack.c.b16 %v488, %v485
        %v531 = vpack.c.b16 %v489, %v486
        %v532 = vpack.c.b16 %v493, %v490
        %v533 = vpack.c.b16 %v494, %v491
        %v534 = vpack.c.b16 %v495, %v492
        %v535 = vpack.c.b16 %v499, %v496
        %v536 = vpack.c.b16 %v500, %v497
        %v537 = vpack.c.b16 %v501, %v498
        %v598 = vunpack.c.l.b16 %v346
        %v599 = vunpack.c.l.b16 %v347
        %v600 = vunpack.c.l.b16 %v348
        %v601 = vunpack.c.l.b16 %v349
        %v602 = vunpack.c.l.b16 %v350
        %v603 = vunpack.c.l.b16 %v351
        %v604 = vunpack.c.l.b16 %v352
        %v605 = vunpack.c.l.b16 %v353
        %v606 = vunpack.c.l.b16 %v354
        %v607 = vunpack.c.l.b16 %v355
        %v608 = vunpack.c.l.b16 %v356
        %v609 = vunpack.c.l.b16 %v357
        %v610 = vunpack.c.l.b16 %v358
        %v611 = vunpack.c.l.b16 %v359
        %v612 = vunpack.c.l.b16 %v360
        %v613 = vunpack.c.l.b16 %v361
        %v614 = vunpack.c.l.b16 %v362
        %v615 = vunpack.c.l.b16 %v363
        %v616 = vunpack.c.l.b16 %v364
        %v617 = vunpack.c.l.b16 %v365
        %v618 = vunpack.c.l.b16 %v366
        %v619 = vunpack.c.l.b16 %v367
        %v620 = vunpack.c.l.b16 %v368
        %v621 = vunpack.c.l.b16 %v369
        %v622 = vunpack.c.l.b16 %v370
        %v623 = vunpack.c.l.b16 %v371
        %v624 = vunpack.c.l.b16 %v372
        %v625 = vunpack.c.l.b16 %v373
        %v626 = vunpack.c.l.b16 %v374
        %v627 = vunpack.c.l.b16 %v375
        %v628 = vunpack.c.l.b16 %v376
        %v629 = vunpack.c.l.b16 %v377
        %v630 = vunpack.c.l.b16 %v378
        %v631 = vunpack.c.l.b16 %v379
        %v632 = vunpack.c.l.b16 %v380
        %v633 = vunpack.c.l.b16 %v381
        %v634 = vpack.c.b16 %v599, %v598
        %v635 = vpack.c.b16 %v601, %v600
        %v636 = vpack.c.b16 %v603, %v602
        %v637 = vpack.c.b16 %v605, %v604
        %v638 = vpack.c.b16 %v607, %v606
        %v639 = vpack.c.b16 %v609, %v608
        %v640 = vpack.c.b16 %v611, %v610
        %v641 = vpack.c.b16 %v613, %v612
        %v642 = vpack.c.b16 %v615, %v614
        %v643 = vpack.c.b16 %v617, %v616
        %v644 = vpack.c.b16 %v619, %v618
        %v645 = vpack.c.b16 %v621, %v620
        %v646 = vpack.c.b16 %v623, %v622
        %v647 = vpack.c.b16 %v625, %v624
        %v648 = vpack.c.b16 %v627, %v626
        %v649 = vpack.c.b16 %v629, %v628
        %v650 = vpack.c.b16 %v631, %v630
        %v651 = vpack.c.b16 %v633, %v632
        %vm670 = vcmask 261120
        %v672 = vsel %vm670, %v504, 0
        %v675 = vsel %vm670, %v507, 0
        %v678 = vsel %vm670, %v510, 0
        %v681 = vsel %vm670, %v513, 0
        %v684 = vsel %vm670, %v516, 0
        %v687 = vsel %vm670, %v519, 0
        %v690 = vsel %vm670, %v522, 0
        %v693 = vsel %vm670, %v525, 0
        %v696 = vsel %vm670, %v528, 0
        %v699 = vsel %vm670, %v531, 0
        %v702 = vsel %vm670, %v534, 0
        %v705 = vsel %vm670, %v537, 0
        %707 = vmatprep.subr.bf16.mxu0 0
        %708 = vmatpush1.bf16.msra.mxu0 %v634
        %709 = vmatprep.subr.bf16.mxu0 0
        %710 = vmatpush1.bf16.msra.mxu0 %v635
        %711 = vmatprep.subr.bf16.mxu0 0
        %712 = vmatpush1.bf16.msra.mxu0 %v636
        %713 = vmatprep.subr.bf16.mxu0 0
        %714 = vmatpush1.bf16.msra.mxu0 %v637
        %715 = vmatprep.subr.bf16.mxu0 0
        %716 = vmatpush1.bf16.msra.mxu0 %v638
        %717 = vmatprep.subr.bf16.mxu0 0
        %718 = vmatpush1.bf16.msra.mxu0 %v639
        %719 = vmatprep.subr.bf16.mxu0 0
        %720 = vmatpush1.bf16.msra.mxu0 %v640
        %721 = vmatprep.subr.bf16.mxu0 0
        %722 = vmatpush1.bf16.msra.mxu0 %v641
        %723 = vmatprep.subr.bf16.mxu0 0
        %724 = vmatpush1.bf16.msra.mxu0 %v642
        %725 = vmatprep.subr.bf16.mxu0 0
        %726 = vmatpush1.bf16.msra.mxu0 %v643
        %727 = vmatprep.subr.bf16.mxu0 0
        %728 = vmatpush1.bf16.msra.mxu0 %v644
        %729 = vmatprep.subr.bf16.mxu0 0
        %730 = vmatpush1.bf16.msra.mxu0 %v645
        %731 = vmatprep.subr.bf16.mxu0 0
        %732 = vmatpush1.bf16.msra.mxu0 %v646
        %733 = vmatprep.subr.bf16.mxu0 0
        %734 = vmatpush1.bf16.msra.mxu0 %v647
        %735 = vmatprep.subr.bf16.mxu0 0
        %736 = vmatpush1.bf16.msra.mxu0 %v648
        %737 = vmatprep.subr.bf16.mxu0 0
        %738 = vmatpush1.bf16.msra.mxu0 %v649
        %739 = vmatprep.mubr.bf16.mxu0 %v503
        %740 = vmatmul.mubr.bf16.gmra.mrb[0].mxu0 %v502
        %v741 = vpop.f32.mrb[0].mxu0
        %v742 = vadd.f32 0.0, %v741
        %v743 = vpop.f32.mrb[0].mxu0
        %v744 = vpop.f32.mrb[0].mxu0
        %v745 = vadd.f32 0.0, %v744
        %v746 = vpop.f32.mrb[0].mxu0
        %747 = vmatprep.mubr.bf16.mxu0 %v506
        %748 = vmatmul.mubr.bf16.gmra.mrb[0].mxu0 %v505
        %v749 = vpop.f32.mrb[0].mxu0
        %v750 = vadd.f32 0.0, %v749
        %v751 = vpop.f32.mrb[0].mxu0
        %v752 = vpop.f32.mrb[0].mxu0
        %v753 = vadd.f32 0.0, %v752
        %v754 = vpop.f32.mrb[0].mxu0
        %755 = vmatprep.mubr.bf16.mxu0 %v509
        %756 = vmatmul.mubr.bf16.gmra.mrb[0].mxu0 %v508
        %v757 = vpop.f32.mrb[0].mxu0
        %v758 = vadd.f32 0.0, %v757
        %v759 = vpop.f32.mrb[0].mxu0
        %v760 = vpop.f32.mrb[0].mxu0
        %v761 = vadd.f32 0.0, %v760
        %v762 = vpop.f32.mrb[0].mxu0
        %763 = vmatprep.mubr.bf16.mxu0 %v512
        %764 = vmatmul.mubr.bf16.gmra.mrb[0].mxu0 %v511
        %v765 = vpop.f32.mrb[0].mxu0
        %v766 = vadd.f32 0.0, %v765
        %v767 = vpop.f32.mrb[0].mxu0
        %v768 = vpop.f32.mrb[0].mxu0
        %v769 = vadd.f32 0.0, %v768
        %v770 = vpop.f32.mrb[0].mxu0
        %771 = vmatprep.mubr.bf16.mxu0 %v515
        %772 = vmatmul.mubr.bf16.gmra.mrb[0].mxu0 %v514
        %v773 = vpop.f32.mrb[0].mxu0
        %v774 = vadd.f32 0.0, %v773
        %v775 = vpop.f32.mrb[0].mxu0
        %v776 = vpop.f32.mrb[0].mxu0
        %v777 = vadd.f32 0.0, %v776
        %v778 = vpop.f32.mrb[0].mxu0
        %779 = vmatprep.mubr.bf16.mxu0 %v518
        %780 = vmatmul.mubr.bf16.gmra.mrb[0].mxu0 %v517
        %v781 = vpop.f32.mrb[0].mxu0
        %v782 = vadd.f32 0.0, %v781
        %v783 = vpop.f32.mrb[0].mxu0
        %v784 = vpop.f32.mrb[0].mxu0
        %v785 = vadd.f32 0.0, %v784
        %v786 = vpop.f32.mrb[0].mxu0
        %787 = vmatprep.mubr.bf16.mxu0 %v521
        %788 = vmatmul.mubr.bf16.gmra.mrb[0].mxu0 %v520
        %v789 = vpop.f32.mrb[0].mxu0
        %v790 = vadd.f32 0.0, %v789
        %v791 = vpop.f32.mrb[0].mxu0
        %v792 = vpop.f32.mrb[0].mxu0
        %v793 = vadd.f32 0.0, %v792
        %v794 = vpop.f32.mrb[0].mxu0
        %795 = vmatprep.mubr.bf16.mxu0 %v524
        %796 = vmatmul.mubr.bf16.gmra.mrb[0].mxu0 %v523
        %v797 = vpop.f32.mrb[0].mxu0
        %v798 = vadd.f32 0.0, %v797
        %v799 = vpop.f32.mrb[0].mxu0
        %v800 = vpop.f32.mrb[0].mxu0
        %v801 = vadd.f32 0.0, %v800
        %v802 = vpop.f32.mrb[0].mxu0
        %803 = vmatprep.mubr.bf16.mxu0 %v527
        %804 = vmatmul.mubr.bf16.gmra.mrb[0].mxu0 %v526
        %v805 = vpop.f32.mrb[0].mxu0
        %v806 = vadd.f32 0.0, %v805
        %v807 = vpop.f32.mrb[0].mxu0
        %v808 = vpop.f32.mrb[0].mxu0
        %v809 = vadd.f32 0.0, %v808
        %v810 = vpop.f32.mrb[0].mxu0
        %811 = vmatprep.mubr.bf16.mxu0 %v530
        %812 = vmatmul.mubr.bf16.gmra.mrb[0].mxu0 %v529
        %v813 = vpop.f32.mrb[0].mxu0
        %v814 = vadd.f32 0.0, %v813
        %v815 = vpop.f32.mrb[0].mxu0
        %v816 = vpop.f32.mrb[0].mxu0
        %v817 = vadd.f32 0.0, %v816
        %v818 = vpop.f32.mrb[0].mxu0
        %819 = vmatprep.mubr.bf16.mxu0 %v533
        %820 = vmatmul.mubr.bf16.gmra.mrb[0].mxu0 %v532
        %v821 = vpop.f32.mrb[0].mxu0
        %v822 = vadd.f32 0.0, %v821
        %v823 = vpop.f32.mrb[0].mxu0
        %v824 = vpop.f32.mrb[0].mxu0
        %v825 = vadd.f32 0.0, %v824
        %v826 = vpop.f32.mrb[0].mxu0
        %827 = vmatprep.mubr.bf16.mxu0 %v536
        %828 = vmatmul.mubr.bf16.gmra.mrb[0].mxu0 %v535
        %v829 = vpop.f32.mrb[0].mxu0
        %v830 = vadd.f32 0.0, %v829
        %v831 = vpop.f32.mrb[0].mxu0
        %v832 = vpop.f32.mrb[0].mxu0
        %v833 = vadd.f32 0.0, %v832
        %v834 = vpop.f32.mrb[0].mxu0
        %835 = vdwg.mxu0
        %836 = vmatprep.subr.bf16.mxu0 0
        %837 = vmatpush1.bf16.msra.mxu0 %v650
        %838 = vmatprep.subr.bf16.mxu0 0
        %839 = vmatpush1.bf16.msra.mxu0 %v651
        %840 = vmatprep.subr.bf16.mxu0 0
        %841 = vmatpush1.bf16.msra.mxu0 0
        %842 = vmatprep.subr.bf16.mxu0 0
        %843 = vmatpush1.bf16.msra.mxu0 0
        %844 = vmatprep.subr.bf16.mxu0 0
        %845 = vmatpush1.bf16.msra.mxu0 0
        %846 = vmatprep.subr.bf16.mxu0 0
        %847 = vmatpush1.bf16.msra.mxu0 0
        %848 = vmatprep.subr.bf16.mxu0 0
        %849 = vmatpush1.bf16.msra.mxu0 0
        %850 = vmatprep.subr.bf16.mxu0 0
        %851 = vmatpush1.bf16.msra.mxu0 0
        %852 = vmatprep.subr.bf16.mxu0 0
        %853 = vmatpush1.bf16.msra.mxu0 0
        %854 = vmatprep.subr.bf16.mxu0 0
        %855 = vmatpush1.bf16.msra.mxu0 0
        %856 = vmatprep.subr.bf16.mxu0 0
        %857 = vmatpush1.bf16.msra.mxu0 0
        %858 = vmatprep.subr.bf16.mxu0 0
        %859 = vmatpush1.bf16.msra.mxu0 0
        %860 = vmatprep.subr.bf16.mxu0 0
        %861 = vmatpush1.bf16.msra.mxu0 0
        %862 = vmatprep.subr.bf16.mxu0 0
        %863 = vmatpush1.bf16.msra.mxu0 0
        %864 = vmatprep.subr.bf16.mxu0 0
        %865 = vmatpush1.bf16.msra.mxu0 0
        %866 = vmatprep.subr.bf16.mxu0 0
        %867 = vmatpush1.bf16.msra.mxu0 0
        %868 = vmatprep.mubr.bf16.mxu0 0
        %869 = vmatmul.mubr.bf16.gmra.mrb[0].mxu0 %v672
        %v870 = vpop.f32.mrb[0].mxu0
        %v871 = vadd.f32 %v742, %v870
        %v872 = vpop.f32.mrb[0].mxu0
        %v873 = vpop.f32.mrb[0].mxu0
        %v874 = vadd.f32 %v745, %v873
        %v875 = vpop.f32.mrb[0].mxu0
        %876 = vmatprep.mubr.bf16.mxu0 0
        %877 = vmatmul.mubr.bf16.gmra.mrb[0].mxu0 %v675
        %v878 = vpop.f32.mrb[0].mxu0
        %v879 = vadd.f32 %v750, %v878
        %v880 = vpop.f32.mrb[0].mxu0
        %v881 = vpop.f32.mrb[0].mxu0
        %v882 = vadd.f32 %v753, %v881
        %v883 = vpop.f32.mrb[0].mxu0
        %884 = vmatprep.mubr.bf16.mxu0 0
        %885 = vmatmul.mubr.bf16.gmra.mrb[0].mxu0 %v678
        %v886 = vpop.f32.mrb[0].mxu0
        %v887 = vadd.f32 %v758, %v886
        %v888 = vpop.f32.mrb[0].mxu0
        %v889 = vpop.f32.mrb[0].mxu0
        %v890 = vadd.f32 %v761, %v889
        %v891 = vpop.f32.mrb[0].mxu0
        %892 = vmatprep.mubr.bf16.mxu0 0
        %893 = vmatmul.mubr.bf16.gmra.mrb[0].mxu0 %v681
        %v894 = vpop.f32.mrb[0].mxu0
        %v895 = vadd.f32 %v766, %v894
        %v896 = vpop.f32.mrb[0].mxu0
        %v897 = vpop.f32.mrb[0].mxu0
        %v898 = vadd.f32 %v769, %v897
        %v899 = vpop.f32.mrb[0].mxu0
        %900 = vmatprep.mubr.bf16.mxu0 0
        %901 = vmatmul.mubr.bf16.gmra.mrb[0].mxu0 %v684
        %v902 = vpop.f32.mrb[0].mxu0
        %v903 = vadd.f32 %v774, %v902
        %v904 = vpop.f32.mrb[0].mxu0
        %v905 = vpop.f32.mrb[0].mxu0
        %v906 = vadd.f32 %v777, %v905
        %v907 = vpop.f32.mrb[0].mxu0
        %908 = vmatprep.mubr.bf16.mxu0 0
        %909 = vmatmul.mubr.bf16.gmra.mrb[0].mxu0 %v687
        %v910 = vpop.f32.mrb[0].mxu0
        %v911 = vadd.f32 %v782, %v910
        %v912 = vpop.f32.mrb[0].mxu0
        %v913 = vpop.f32.mrb[0].mxu0
        %v914 = vadd.f32 %v785, %v913
        %v915 = vpop.f32.mrb[0].mxu0
        %916 = vmatprep.mubr.bf16.mxu0 0
        %917 = vmatmul.mubr.bf16.gmra.mrb[0].mxu0 %v690
        %v918 = vpop.f32.mrb[0].mxu0
        %v919 = vadd.f32 %v790, %v918
        %v920 = vpop.f32.mrb[0].mxu0
        %v921 = vpop.f32.mrb[0].mxu0
        %v922 = vadd.f32 %v793, %v921
        %v923 = vpop.f32.mrb[0].mxu0
        %924 = vmatprep.mubr.bf16.mxu0 0
        %925 = vmatmul.mubr.bf16.gmra.mrb[0].mxu0 %v693
        %v926 = vpop.f32.mrb[0].mxu0
        %v927 = vadd.f32 %v798, %v926
        %v928 = vpop.f32.mrb[0].mxu0
        %v929 = vpop.f32.mrb[0].mxu0
        %v930 = vadd.f32 %v801, %v929
        %v931 = vpop.f32.mrb[0].mxu0
        %932 = vmatprep.mubr.bf16.mxu0 0
        %933 = vmatmul.mubr.bf16.gmra.mrb[0].mxu0 %v696
        %v934 = vpop.f32.mrb[0].mxu0
        %v935 = vadd.f32 %v806, %v934
        %v936 = vpop.f32.mrb[0].mxu0
        %v937 = vpop.f32.mrb[0].mxu0
        %v938 = vadd.f32 %v809, %v937
        %v939 = vpop.f32.mrb[0].mxu0
        %940 = vmatprep.mubr.bf16.mxu0 0
        %941 = vmatmul.mubr.bf16.gmra.mrb[0].mxu0 %v699
        %v942 = vpop.f32.mrb[0].mxu0
        %v943 = vadd.f32 %v814, %v942
        %v944 = vpop.f32.mrb[0].mxu0
        %v945 = vpop.f32.mrb[0].mxu0
        %v946 = vadd.f32 %v817, %v945
        %v947 = vpop.f32.mrb[0].mxu0
        %948 = vmatprep.mubr.bf16.mxu0 0
        %949 = vmatmul.mubr.bf16.gmra.mrb[0].mxu0 %v702
        %v950 = vpop.f32.mrb[0].mxu0
        %v951 = vadd.f32 %v822, %v950
        %v952 = vpop.f32.mrb[0].mxu0
        %v953 = vpop.f32.mrb[0].mxu0
        %v954 = vadd.f32 %v825, %v953
        %v955 = vpop.f32.mrb[0].mxu0
        %956 = vmatprep.mubr.bf16.mxu0 0
        %957 = vmatmul.mubr.bf16.gmra.mrb[0].mxu0 %v705
        %v958 = vpop.f32.mrb[0].mxu0
        %v959 = vadd.f32 %v830, %v958
        %v960 = vpop.f32.mrb[0].mxu0
        %v961 = vpop.f32.mrb[0].mxu0
        %v962 = vadd.f32 %v833, %v961
        %v963 = vpop.f32.mrb[0].mxu0
        %964 = vdwg.mxu0
        %v965 = vmax.f32 %v871, %v895
        %v966 = vmax.f32 %v874, %v898
        %v967 = vmax.f32 %v879, %v903
        %v968 = vmax.f32 %v882, %v906
        %v969 = vmax.f32 %v887, %v911
        %v970 = vmax.f32 %v890, %v914
        %v971 = vmax.f32 %v919, %v943
        %v972 = vmax.f32 %v922, %v946
        %v973 = vmax.f32 %v927, %v951
        %v974 = vmax.f32 %v930, %v954
        %v975 = vmax.f32 %v935, %v959
        %v976 = vmax.f32 %v938, %v962
        %v977 = vmax.f32 %v965, %v971
        %v978 = vmax.f32 %v966, %v972
        %v979 = vmax.f32 %v967, %v973
        %v980 = vmax.f32 %v968, %v974
        %v981 = vmax.f32 %v969, %v975
        %v982 = vmax.f32 %v970, %v976
        %v983 = vld [vmem:[%s2] sm:$0x1]
        %v985 = vlaneseq
        %v986 = vshrl.u32 %v985, 7
        %v987 = vsub.s32 0, %v986
        %v988 = vrot.slane %v983, %v987
        %v990 = vadd.f32 %v977, %v988
        %v991 = vadd.f32 %v978, %v988
        %v992 = vadd.f32 %v979, %v988
        %v993 = vadd.f32 %v980, %v988
        %v994 = vadd.f32 %v981, %v988
        %v995 = vadd.f32 %v982, %v988
        %v996 = vmax.f32 %v990, 0.0
        %v997 = vmax.f32 %v991, 0.0
        %v998 = vmax.f32 %v992, 0.0
        %v999 = vmax.f32 %v993, 0.0
        %v1000 = vmax.f32 %v994, 0.0
        %v1001 = vmax.f32 %v995, 0.0
        %v1002 = vpack.c.bf16 %v997, %v996
        %v1003 = vpack.c.bf16 %v999, %v998
        %v1004 = vpack.c.bf16 %v1001, %v1000
        %v1008 = vunpack.c.l.b16 %v1002
        %v1009 = vunpack.c.h.b16 %v1002
        %v1010 = vunpack.c.l.b16 %v1003
        %v1011 = vunpack.c.h.b16 %v1003
        %v1012 = vunpack.c.l.b16 %v1004
        %v1013 = vunpack.c.h.b16 %v1004
        %v1014 = vpack.c.b16 %v1008, %v1008
        %v1015 = vpack.c.b16 %v1009, %v1009
        %v1016 = vpack.c.b16 %v1010, %v1010
        %v1017 = vpack.c.b16 %v1011, %v1011
        %v1018 = vpack.c.b16 %v1012, %v1012
        %v1019 = vpack.c.b16 %v1013, %v1013
        %vm1026 = vcmask 519168
        %1027 = vst.msk [vmem:[%s295] sm:$0xf] %vm1026, %v1014
        %1028 = vst.msk [vmem:[%s295 + $0x4] sm:$0xf] %vm1026, %v1015
        %1029 = vst.msk [vmem:[%s295 + $0x8] sm:$0xf] %vm1026, %v1016
        %1030 = vst.msk [vmem:[%s295 + $0xc] sm:$0xf] %vm1026, %v1017
        %1031 = vst.msk [vmem:[%s295 + $0x10] sm:$0xf] %vm1026, %v1018
        %1032 = vst.msk [vmem:[%s295 + $0x14] sm:$0xf] %vm1026, %v1019
        %s1033 = smul.u32 6, %s14
        %p1034 = scmp.lt.s32.totalorder %s1033, 11
        %s1035 = scalar_select %p1034, %s1033, 11
        %s1036 = smul.addr %s1035, 4
        %s1037 = scalar_lea.vmem %s3, %s1036
        // Predicated region
        $region59: #{convnet_forward.4} parent=53 // pred_check
          %p1038 = pneg %p100
        $region60: #{convnet_forward.4} parent=53 // pred_check_branch
          %1040 = sbr.rel (%p1038) target = $region62
        $region61: #{convnet_forward.4} parent=53 // pred_region
          %s1041 = smul.u32 6, %s14
        $region62: #{convnet_forward.4} parent=53 // pred_fallthru
          _
      $region54: #{convnet_forward.4} parent=5 // pred_fallthru
        _
      %p1042 = scmp.le.s32.totalorder 2, %s9
      // Predicated region
      $region63: #{convnet_forward.4} parent=5 // pred_check
        %p1043 = pneg %p1042
      $region64: #{convnet_forward.4} parent=5 // pred_check_branch
        %1045 = sbr.rel (%p1043) target = $region66
      $region65: #{convnet_forward.4} parent=5 // pred_region
        %s1046 = ssub.s32 %s9, 2
        // Predicated region
        $region67: #{convnet_forward.4} parent=65 // pred_check
          %p1047 = pneg %p106
        $region68: #{convnet_forward.4} parent=65 // pred_check_branch
          %1049 = sbr.rel (%p1047) target = $region70
        $region69: #{convnet_forward.4} parent=65 // pred_region
          %s1050 = smul.u32 6, %s15
          %p1051 = scmp.lt.s32.totalorder %s1050, 11
          %s1052 = scalar_select %p1051, %s1050, 11
          %s1053 = smul.addr %s1052, 4
          %s1054 = scalar_lea.vmem %s3, %s1053
        $region70: #{convnet_forward.4} parent=65 // pred_fallthru
          _
      $region66: #{convnet_forward.4} parent=5 // pred_fallthru
        _
    $region6: #{convnet_forward.4} parent=1 // loop_footer
      %s13 = sadd.s32 1, %s9
    $region7: #{convnet_forward.4} parent=1 // loop_footer_branch
      %8 = sbr.rel target = $region3
    $region8: #{convnet_forward.4} parent=1 // loop_exit
      _

// kernel: convnet_forward.5
$region0: #{convnet_forward.5}
  #allocation0 [shape = 'u32[]', space=smem, size = 0x4, offset = 0x4, fixed_abs, tag = 'smem constant byte address 0x4 - core index']
  #allocation1 [shape = 'u32[144,128]{1,0:T(1,128)}', space=vmem, size = 0x12000, scoped, tag = 'internal scratch']
  %s0 = inlined_call_operand.vmem [shape: bf16[2,4,4,576], index: 0, kind: input, shape index: {}]
  %s1 = inlined_call_operand.vmem [shape: bf16[576,128], index: 1, kind: input, shape index: {}]
  %s2 = inlined_call_operand.vmem [shape: f32[1,128], index: 2, kind: input, shape index: {}]
  %s3 = inlined_call_operand.vmem [shape: bf16[4,128,128], index: 3, kind: input, shape index: {}]
  %s4 = inlined_call_operand.vmem [shape: f32[1,128], index: 4, kind: input, shape index: {}]
  %s5 = inlined_call_operand.vmem [shape: bf16[128,128], index: 5, kind: input, shape index: {}]
  %s6 = inlined_call_operand.vmem [shape: f32[1,128], index: 6, kind: input, shape index: {}]
  %s7 = inlined_call_operand.vmem [shape: bf16[128,128], index: 7, kind: input, shape index: {}]
  %s8 = inlined_call_operand.vmem [shape: f32[1,128], index: 8, kind: input, shape index: {}]
  %s9 = inlined_call_operand.vmem [shape: f32[2,4,128], index: 9, kind: output, shape index: {0}]
  %s10 = inlined_call_operand.hbm [shape: f32[2,1,128], index: 10, kind: output, shape index: {1}]
  %s11 = inlined_call_operand.hbm [shape: f32[2,1,128], index: 11, kind: output, shape index: {2}]
  %s12 = inlined_call_operand.hbm [shape: f32[2,1,128], index: 12, kind: output, shape index: {3}]
  %13 = xla_tuple %s9, %s10, %s11, %s12
  %s14 = sld [smem:[#allocation0]]
  $region93: #{convnet_forward.5} parent=0
    _
  %s16 = ssub.s32 1, %s14
  %s17 = scalar_select 0, %s16, %s14
  $region1: #{convnet_forward.5} parent=0
    #allocation2 [shape = 'u8[1024]{0}', space=vmem, size = 0x400, scoped, tag = 'output window, operand 1']
    #allocation3 [shape = 's32[2]{0}', space=sflag, size = 0x8, scoped, tag = 'scoped memory for convnet_forward.5']
    #allocation4 [shape = 'u8[1024]{0}', space=vmem, size = 0x400, scoped, tag = 'output window, operand 2']
    #allocation5 [shape = 's32[2]{0}', space=sflag, size = 0x8, scoped, tag = 'scoped memory for convnet_forward.5']
    #allocation6 [shape = 'u8[1024]{0}', space=vmem, size = 0x400, scoped, tag = 'output window, operand 3']
    %18 = vsyncpa [#allocation3], 0
    %s19 = scalar_lea.sflag [#allocation3], 1
    %20 = vsyncpa %s19, 0
    %21 = vsyncpa [#allocation5], 0
    %s22 = scalar_lea.sflag [#allocation5], 1
    %23 = vsyncpa %s22, 0
    loop: start=0, step=1, limit=4
    $region2: #{convnet_forward.5} parent=1 // loop_pre_header
      _
    $region3: #{convnet_forward.5} parent=1 // loop_header
      %s25 = sphi 0, %s29
      %p26 = scmp.ge.s32.totalorder %s25, 4
      %s35 = sphi 0, %s37
      %s38 = sphi 0, %s35
      %s39 = sphi 0, %s38
      %s55 = sphi 0, %s39
      %s59 = sphi 0, %s59
      %s61 = sphi 0, %s59
      %s62 = sphi 0, %s61
      %s76 = sphi 0, %s62
      %s80 = sphi 0, %s80
      %s82 = sphi 0, %s80
      %s83 = sphi 0, %s82
      %s97 = sphi 0, %s83
      %s101 = sphi 0, %s101
      %s103 = sphi 0, %s101
      %s104 = sphi 0, %s103
      %s118 = sphi 0, %s104
      %s122 = sphi 0, %s122
      %s124 = sphi 0, %s122
      %s125 = sphi 0, %s124
      %s139 = sphi 0, %s125
      %s143 = sphi 0, %s143
      %s145 = sphi 0, %s143
      %s146 = sphi 0, %s145
      %s160 = sphi 0, %s146
      %s164 = sphi 0, %s164
      %s166 = sphi 0, %s164
      %s167 = sphi 0, %s166
      %s181 = sphi 0, %s167
      %s185 = sphi 0, %s185
      %s187 = sphi 0, %s185
      %s188 = sphi 0, %s187
      %s202 = sphi 0, %s188
      %s206 = sphi 0, %s206
      %s208 = sphi 0, %s206
      %s209 = sphi 0, %s208
      %s223 = sphi 0, %s209
      %s229 = sphi 0, %s231
      %s232 = sphi 0, %s229
      %s233 = sphi 0, %s232
      %s249 = sphi 0, %s233
      %s255 = sphi 0, %s257
      %s258 = sphi 0, %s255
      %s259 = sphi 0, %s258
      %s275 = sphi 0, %s259
      %s281 = sphi 0, %s283
      %s284 = sphi 0, %s281
      %s285 = sphi 0, %s284
      %s301 = sphi 0, %s285
      %s307 = sphi 0, %s309
      %s310 = sphi 0, %s307
      %s311 = sphi 0, %s310
      %s327 = sphi 0, %s311
    $region4: #{convnet_forward.5} parent=1 // loop_header_branch
      %28 = sbr.rel (%p26) target = $region8
    $region5: #{convnet_forward.5} parent=1 // loop_body
      %s30 = ssub.s32 %s25, 1
      %s31 = ssub.s32 %s25, 2
      %s32 = sadd.s32 %s25, 1
      %s33 = ssub.s32 %s25, %s32
      %p34 = scmp.eq.s32.totalorder %s33, 0
      %s36 = sadd.s32 %s35, 1
      %s37 = scalar_select %p34, %s35, %s36
      %p40 = pneg %p34
      %p41 = scmp.eq.s32.totalorder %s25, 1
      %p42 = por %p40, %p41
      %p43 = scmp.ne.s32.totalorder %s35, %s38
      %p44 = scmp.eq.s32.totalorder %s25, 0
      %p45 = por %p43, %p44
      %p46 = scmp.ne.s32.totalorder %s35, %s38
      %p47 = scmp.eq.s32.totalorder %s30, 1
      %p48 = por %p46, %p47
      %p49 = scmp.ne.s32.totalorder %s38, %s39
      %p50 = scmp.eq.s32.totalorder %s30, 0
      %p51 = por %p49, %p50
      %p52 = scmp.ne.s32.totalorder %s38, %s39
      %p53 = scmp.eq.s32.totalorder %s31, 1
      %p54 = por %p52, %p53
      %p56 = scmp.ne.s32.totalorder %s39, %s55
      %p57 = scmp.eq.s32.totalorder %s31, 0
      %p58 = por %p56, %p57
      %s60 = sadd.s32 %s59, 1
      %p63 = scmp.eq.s32.totalorder %s25, 1
      %p64 = scmp.ne.s32.totalorder %s59, %s61
      %p65 = scmp.eq.s32.totalorder %s25, 0
      %p66 = por %p64, %p65
      %p67 = scmp.ne.s32.totalorder %s59, %s61
      %p68 = scmp.eq.s32.totalorder %s30, 1
      %p69 = por %p67, %p68
      %p70 = scmp.ne.s32.totalorder %s61, %s62
      %p71 = scmp.eq.s32.totalorder %s30, 0
      %p72 = por %p70, %p71
      %p73 = scmp.ne.s32.totalorder %s61, %s62
      %p74 = scmp.eq.s32.totalorder %s31, 1
      %p75 = por %p73, %p74
      %p77 = scmp.ne.s32.totalorder %s62, %s76
      %p78 = scmp.eq.s32.totalorder %s31, 0
      %p79 = por %p77, %p78
      %s81 = sadd.s32 %s80, 1
      %p84 = scmp.eq.s32.totalorder %s25, 1
      %p85 = scmp.ne.s32.totalorder %s80, %s82
      %p86 = scmp.eq.s32.totalorder %s25, 0
      %p87 = por %p85, %p86
      %p88 = scmp.ne.s32.totalorder %s80, %s82
      %p89 = scmp.eq.s32.totalorder %s30, 1
      %p90 = por %p88, %p89
      %p91 = scmp.ne.s32.totalorder %s82, %s83
      %p92 = scmp.eq.s32.totalorder %s30, 0
      %p93 = por %p91, %p92
      %p94 = scmp.ne.s32.totalorder %s82, %s83
      %p95 = scmp.eq.s32.totalorder %s31, 1
      %p96 = por %p94, %p95
      %p98 = scmp.ne.s32.totalorder %s83, %s97
      %p99 = scmp.eq.s32.totalorder %s31, 0
      %p100 = por %p98, %p99
      %s102 = sadd.s32 %s101, 1
      %p105 = scmp.eq.s32.totalorder %s25, 1
      %p106 = scmp.ne.s32.totalorder %s101, %s103
      %p107 = scmp.eq.s32.totalorder %s25, 0
      %p108 = por %p106, %p107
      %p109 = scmp.ne.s32.totalorder %s101, %s103
      %p110 = scmp.eq.s32.totalorder %s30, 1
      %p111 = por %p109, %p110
      %p112 = scmp.ne.s32.totalorder %s103, %s104
      %p113 = scmp.eq.s32.totalorder %s30, 0
      %p114 = por %p112, %p113
      %p115 = scmp.ne.s32.totalorder %s103, %s104
      %p116 = scmp.eq.s32.totalorder %s31, 1
      %p117 = por %p115, %p116
      %p119 = scmp.ne.s32.totalorder %s104, %s118
      %p120 = scmp.eq.s32.totalorder %s31, 0
      %p121 = por %p119, %p120
      %s123 = sadd.s32 %s122, 1
      %p126 = scmp.eq.s32.totalorder %s25, 1
      %p127 = scmp.ne.s32.totalorder %s122, %s124
      %p128 = scmp.eq.s32.totalorder %s25, 0
      %p129 = por %p127, %p128
      %p130 = scmp.ne.s32.totalorder %s122, %s124
      %p131 = scmp.eq.s32.totalorder %s30, 1
      %p132 = por %p130, %p131
      %p133 = scmp.ne.s32.totalorder %s124, %s125
      %p134 = scmp.eq.s32.totalorder %s30, 0
      %p135 = por %p133, %p134
      %p136 = scmp.ne.s32.totalorder %s124, %s125
      %p137 = scmp.eq.s32.totalorder %s31, 1
      %p138 = por %p136, %p137
      %p140 = scmp.ne.s32.totalorder %s125, %s139
      %p141 = scmp.eq.s32.totalorder %s31, 0
      %p142 = por %p140, %p141
      %s144 = sadd.s32 %s143, 1
      %p147 = scmp.eq.s32.totalorder %s25, 1
      %p148 = scmp.ne.s32.totalorder %s143, %s145
      %p149 = scmp.eq.s32.totalorder %s25, 0
      %p150 = por %p148, %p149
      %p151 = scmp.ne.s32.totalorder %s143, %s145
      %p152 = scmp.eq.s32.totalorder %s30, 1
      %p153 = por %p151, %p152
      %p154 = scmp.ne.s32.totalorder %s145, %s146
      %p155 = scmp.eq.s32.totalorder %s30, 0
      %p156 = por %p154, %p155
      %p157 = scmp.ne.s32.totalorder %s145, %s146
      %p158 = scmp.eq.s32.totalorder %s31, 1
      %p159 = por %p157, %p158
      %p161 = scmp.ne.s32.totalorder %s146, %s160
      %p162 = scmp.eq.s32.totalorder %s31, 0
      %p163 = por %p161, %p162
      %s165 = sadd.s32 %s164, 1
      %p168 = scmp.eq.s32.totalorder %s25, 1
      %p169 = scmp.ne.s32.totalorder %s164, %s166
      %p170 = scmp.eq.s32.totalorder %s25, 0
      %p171 = por %p169, %p170
      %p172 = scmp.ne.s32.totalorder %s164, %s166
      %p173 = scmp.eq.s32.totalorder %s30, 1
      %p174 = por %p172, %p173
      %p175 = scmp.ne.s32.totalorder %s166, %s167
      %p176 = scmp.eq.s32.totalorder %s30, 0
      %p177 = por %p175, %p176
      %p178 = scmp.ne.s32.totalorder %s166, %s167
      %p179 = scmp.eq.s32.totalorder %s31, 1
      %p180 = por %p178, %p179
      %p182 = scmp.ne.s32.totalorder %s167, %s181
      %p183 = scmp.eq.s32.totalorder %s31, 0
      %p184 = por %p182, %p183
      %s186 = sadd.s32 %s185, 1
      %p189 = scmp.eq.s32.totalorder %s25, 1
      %p190 = scmp.ne.s32.totalorder %s185, %s187
      %p191 = scmp.eq.s32.totalorder %s25, 0
      %p192 = por %p190, %p191
      %p193 = scmp.ne.s32.totalorder %s185, %s187
      %p194 = scmp.eq.s32.totalorder %s30, 1
      %p195 = por %p193, %p194
      %p196 = scmp.ne.s32.totalorder %s187, %s188
      %p197 = scmp.eq.s32.totalorder %s30, 0
      %p198 = por %p196, %p197
      %p199 = scmp.ne.s32.totalorder %s187, %s188
      %p200 = scmp.eq.s32.totalorder %s31, 1
      %p201 = por %p199, %p200
      %p203 = scmp.ne.s32.totalorder %s188, %s202
      %p204 = scmp.eq.s32.totalorder %s31, 0
      %p205 = por %p203, %p204
      %s207 = sadd.s32 %s206, 1
      %p210 = scmp.eq.s32.totalorder %s25, 1
      %p211 = scmp.ne.s32.totalorder %s206, %s208
      %p212 = scmp.eq.s32.totalorder %s25, 0
      %p213 = por %p211, %p212
      %p214 = scmp.ne.s32.totalorder %s206, %s208
      %p215 = scmp.eq.s32.totalorder %s30, 1
      %p216 = por %p214, %p215
      %p217 = scmp.ne.s32.totalorder %s208, %s209
      %p218 = scmp.eq.s32.totalorder %s30, 0
      %p219 = por %p217, %p218
      %p220 = scmp.ne.s32.totalorder %s208, %s209
      %p221 = scmp.eq.s32.totalorder %s31, 1
      %p222 = por %p220, %p221
      %p224 = scmp.ne.s32.totalorder %s209, %s223
      %p225 = scmp.eq.s32.totalorder %s31, 0
      %p226 = por %p224, %p225
      %s227 = ssub.s32 %s25, %s32
      %p228 = scmp.eq.s32.totalorder %s227, 0
      %s230 = sadd.s32 %s229, 1
      %s231 = scalar_select %p228, %s229, %s230
      %p234 = pneg %p228
      %p235 = scmp.eq.s32.totalorder %s25, 1
      %p236 = por %p234, %p235
      %p237 = scmp.ne.s32.totalorder %s229, %s232
      %p238 = scmp.eq.s32.totalorder %s25, 0
      %p239 = por %p237, %p238
      %p240 = scmp.ne.s32.totalorder %s229, %s232
      %p241 = scmp.eq.s32.totalorder %s30, 1
      %p242 = por %p240, %p241
      %p243 = scmp.ne.s32.totalorder %s232, %s233
      %p244 = scmp.eq.s32.totalorder %s30, 0
      %p245 = por %p243, %p244
      %p246 = scmp.ne.s32.totalorder %s232, %s233
      %p247 = scmp.eq.s32.totalorder %s31, 1
      %p248 = por %p246, %p247
      %p250 = scmp.ne.s32.totalorder %s233, %s249
      %p251 = scmp.eq.s32.totalorder %s31, 0
      %p252 = por %p250, %p251
      %s253 = ssub.s32 %s25, %s32
      %p254 = scmp.eq.s32.totalorder %s253, 0
      %s256 = sadd.s32 %s255, 1
      %s257 = scalar_select %p254, %s255, %s256
      %p260 = pneg %p254
      %p261 = scmp.eq.s32.totalorder %s25, 1
      %p262 = por %p260, %p261
      %p263 = scmp.ne.s32.totalorder %s255, %s258
      %p264 = scmp.eq.s32.totalorder %s25, 0
      %p265 = por %p263, %p264
      %p266 = scmp.ne.s32.totalorder %s255, %s258
      %p267 = scmp.eq.s32.totalorder %s30, 1
      %p268 = por %p266, %p267
      %p269 = scmp.ne.s32.totalorder %s258, %s259
      %p270 = scmp.eq.s32.totalorder %s30, 0
      %p271 = por %p269, %p270
      %p272 = scmp.ne.s32.totalorder %s258, %s259
      %p273 = scmp.eq.s32.totalorder %s31, 1
      %p274 = por %p272, %p273
      %p276 = scmp.ne.s32.totalorder %s259, %s275
      %p277 = scmp.eq.s32.totalorder %s31, 0
      %p278 = por %p276, %p277
      %s279 = ssub.s32 %s25, %s32
      %p280 = scmp.eq.s32.totalorder %s279, 0
      %s282 = sadd.s32 %s281, 1
      %s283 = scalar_select %p280, %s281, %s282
      %p286 = pneg %p280
      %p287 = scmp.eq.s32.totalorder %s25, 1
      %p288 = por %p286, %p287
      %p289 = scmp.ne.s32.totalorder %s281, %s284
      %p290 = scmp.eq.s32.totalorder %s25, 0
      %p291 = por %p289, %p290
      %p292 = scmp.ne.s32.totalorder %s281, %s284
      %p293 = scmp.eq.s32.totalorder %s30, 1
      %p294 = por %p292, %p293
      %p295 = scmp.ne.s32.totalorder %s284, %s285
      %p296 = scmp.eq.s32.totalorder %s30, 0
      %p297 = por %p295, %p296
      %p298 = scmp.ne.s32.totalorder %s284, %s285
      %p299 = scmp.eq.s32.totalorder %s31, 1
      %p300 = por %p298, %p299
      %p302 = scmp.ne.s32.totalorder %s285, %s301
      %p303 = scmp.eq.s32.totalorder %s31, 0
      %p304 = por %p302, %p303
      %s305 = ssub.s32 %s25, %s32
      %p306 = scmp.eq.s32.totalorder %s305, 0
      %s308 = sadd.s32 %s307, 1
      %s309 = scalar_select %p306, %s307, %s308
      %p312 = pneg %p306
      %p313 = scmp.eq.s32.totalorder %s25, 1
      %p314 = por %p312, %p313
      %p315 = scmp.ne.s32.totalorder %s307, %s310
      %p316 = scmp.eq.s32.totalorder %s25, 0
      %p317 = por %p315, %p316
      %p318 = scmp.ne.s32.totalorder %s307, %s310
      %p319 = scmp.eq.s32.totalorder %s30, 1
      %p320 = por %p318, %p319
      %p321 = scmp.ne.s32.totalorder %s310, %s311
      %p322 = scmp.eq.s32.totalorder %s30, 0
      %p323 = por %p321, %p322
      %p324 = scmp.ne.s32.totalorder %s310, %s311
      %p325 = scmp.eq.s32.totalorder %s31, 1
      %p326 = por %p324, %p325
      %p328 = scmp.ne.s32.totalorder %s311, %s327
      %p329 = scmp.eq.s32.totalorder %s31, 0
      %p330 = por %p328, %p329
      %p331 = scmp.le.s32.totalorder 1, %s25
      %p332 = scmp.lt.s32.totalorder %s25, 3
      %p333 = pnand %p331, %p332
      %p334 = pneg %p333
      // Predicated region
      $region9: #{convnet_forward.5} parent=5 // pred_check
        _
      $region10: #{convnet_forward.5} parent=5 // pred_check_branch
        %336 = sbr.rel (%p333) target = $region12
      $region11: #{convnet_forward.5} parent=5 // pred_region
        %s337 = ssub.s32 %s25, 1
        // Predicated region
        $region13: #{convnet_forward.5} parent=11 // pred_check
          %p338 = pneg %p72
        $region14: #{convnet_forward.5} parent=11 // pred_check_branch
          %340 = sbr.rel (%p338) target = $region16
        $region15: #{convnet_forward.5} parent=11 // pred_region
          _
        $region16: #{convnet_forward.5} parent=11 // pred_fallthru
          _
        // Predicated region
        $region17: #{convnet_forward.5} parent=11 // pred_check
          %p341 = pneg %p93
        $region18: #{convnet_forward.5} parent=11 // pred_check_branch
          %343 = sbr.rel (%p341) target = $region20
        $region19: #{convnet_forward.5} parent=11 // pred_region
          _
        $region20: #{convnet_forward.5} parent=11 // pred_fallthru
          _
        // Predicated region
        $region21: #{convnet_forward.5} parent=11 // pred_check
          %p344 = pneg %p114
        $region22: #{convnet_forward.5} parent=11 // pred_check_branch
          %346 = sbr.rel (%p344) target = $region24
        $region23: #{convnet_forward.5} parent=11 // pred_region
          _
        $region24: #{convnet_forward.5} parent=11 // pred_fallthru
          _
        // Predicated region
        $region25: #{convnet_forward.5} parent=11 // pred_check
          %p347 = pneg %p135
        $region26: #{convnet_forward.5} parent=11 // pred_check_branch
          %349 = sbr.rel (%p347) target = $region28
        $region27: #{convnet_forward.5} parent=11 // pred_region
          _
        $region28: #{convnet_forward.5} parent=11 // pred_fallthru
          _
        // Predicated region
        $region29: #{convnet_forward.5} parent=11 // pred_check
          %p350 = pneg %p156
        $region30: #{convnet_forward.5} parent=11 // pred_check_branch
          %352 = sbr.rel (%p350) target = $region32
        $region31: #{convnet_forward.5} parent=11 // pred_region
          _
        $region32: #{convnet_forward.5} parent=11 // pred_fallthru
          _
        // Predicated region
        $region33: #{convnet_forward.5} parent=11 // pred_check
          %p353 = pneg %p177
        $region34: #{convnet_forward.5} parent=11 // pred_check_branch
          %355 = sbr.rel (%p353) target = $region36
        $region35: #{convnet_forward.5} parent=11 // pred_region
          _
        $region36: #{convnet_forward.5} parent=11 // pred_fallthru
          _
        // Predicated region
        $region37: #{convnet_forward.5} parent=11 // pred_check
          %p356 = pneg %p198
        $region38: #{convnet_forward.5} parent=11 // pred_check_branch
          %358 = sbr.rel (%p356) target = $region40
        $region39: #{convnet_forward.5} parent=11 // pred_region
          _
        $region40: #{convnet_forward.5} parent=11 // pred_fallthru
          _
        // Predicated region
        $region41: #{convnet_forward.5} parent=11 // pred_check
          %p359 = pneg %p219
        $region42: #{convnet_forward.5} parent=11 // pred_check_branch
          %361 = sbr.rel (%p359) target = $region44
        $region43: #{convnet_forward.5} parent=11 // pred_region
          _
        $region44: #{convnet_forward.5} parent=11 // pred_fallthru
          _
      $region12: #{convnet_forward.5} parent=5 // pred_fallthru
        _
      %p362 = scmp.lt.s32.totalorder %s25, 2
      // Predicated region
      $region45: #{convnet_forward.5} parent=5 // pred_check
        %p363 = pneg %p362
      $region46: #{convnet_forward.5} parent=5 // pred_check_branch
        %365 = sbr.rel (%p363) target = $region48
      $region47: #{convnet_forward.5} parent=5 // pred_region
        // Predicated region
        $region49: #{convnet_forward.5} parent=47 // pred_check
          %p366 = pneg %p45
        $region50: #{convnet_forward.5} parent=47 // pred_check_branch
          %368 = sbr.rel (%p366) target = $region52
        $region51: #{convnet_forward.5} parent=47 // pred_region
          %p369 = scmp.lt.s32.totalorder %s25, 1
          %s370 = scalar_select %p369, %s25, 1
          %s371 = smul.addr %s370, 20
          %s372 = smul.addr %s371, 2
          %s373 = scalar_lea.vmem %s0, %s372
        $region52: #{convnet_forward.5} parent=47 // pred_fallthru
          _
      $region48: #{convnet_forward.5} parent=5 // pred_fallthru
        _
      %p374 = scmp.le.s32.totalorder 1, %s25
      %p375 = scmp.lt.s32.totalorder %s25, 3
      %p376 = pnand %p374, %p375
      %p377 = pneg %p376
      // Predicated region
      $region53: #{convnet_forward.5} parent=5 // pred_check
        _
      $region54: #{convnet_forward.5} parent=5 // pred_check_branch
        %379 = sbr.rel (%p376) target = $region56
      $region55: #{convnet_forward.5} parent=5 // pred_region
        %s380 = ssub.s32 %s25, 1
        %p381 = scmp.lt.s32.totalorder %s30, 1
        %s382 = scalar_select %p381, %s30, 1
        %s383 = smul.addr %s382, 20
        %s384 = smul.addr %s383, 2
        %s385 = scalar_lea.vmem %s0, %s384
        %p386 = pneg %p51
        %p387 = pneg %p48
        %p388 = pneg %p72
        %p389 = pneg %p69
        %p390 = pneg %p93
        %p391 = pneg %p90
        %p392 = pneg %p114
        %p393 = pneg %p111
        %p394 = pneg %p135
        %p395 = pneg %p132
        %p396 = pneg %p156
        %p397 = pneg %p153
        %p398 = pneg %p177
        %p399 = pneg %p174
        %p400 = pneg %p198
        %p401 = pneg %p195
        %p402 = pneg %p219
        %p403 = pneg %p216
        %p404 = pneg %p245
        %p405 = pneg %p242
        %p406 = scmp.lt.s32.totalorder %s30, 1
        %s407 = scalar_select %p406, %s30, 1
        %s408 = smul.addr %s407, 4
        %s409 = scalar_lea.vmem %s9, %s408
        %p410 = pneg %p271
        %p411 = pneg %p268
        %s412 = sand.u32 %s258, 1
        %s413 = scalar_lea.sflag [#allocation3], %s412
        %s414 = sand.u32 %s258, 1
        %s415 = scalar_lea.vmem [#allocation2], %s414
        %p416 = pneg %p297
        %p417 = pneg %p294
        %s418 = sand.u32 %s30, 1
        %s419 = scalar_lea.sflag [#allocation5], %s418
        %s420 = sand.u32 %s284, 1
        %s421 = scalar_lea.vmem [#allocation4], %s420
        %p422 = pneg %p323
        %p423 = pneg %p320
        %s424 = sand.u32 %s30, 1
        %s425 = scalar_lea.sflag [#allocation5], %s424
        %s426 = sand.u32 %s310, 1
        %s427 = scalar_lea.vmem [#allocation6], %s426
        %p428 = scmp.lt.s32.totalorder %s30, 1
        %s429 = scalar_select %p428, %s30, 1
        %s430 = smul.addr %s429, 20
        %s431 = smul.addr %s430, 2
        %s432 = scalar_lea.vmem %s0, %s431
        %p433 = scmp.lt.s32.totalorder %s30, 1
        %s434 = scalar_select %p433, %s30, 1
        %s435 = smul.addr %s434, 4
        %s436 = scalar_lea.vmem %s9, %s435
        %v438 = vld [vmem:[%s432] sm:$0xff]
        %v439 = vld [vmem:[%s432 + $0x8] sm:$0x3]
        %v440 = vld [vmem:[%s432 + $0xa] sm:$0xff]
        %v441 = vld [vmem:[%s432 + $0x12] sm:$0x3]
        %v442 = vld [vmem:[%s432 + $0x14] sm:$0xff]
        %v443 = vld [vmem:[%s432 + $0x1c] sm:$0x3]
        %v444 = vld [vmem:[%s432 + $0x1e] sm:$0xff]
        %v445 = vld [vmem:[%s432 + $0x26] sm:$0x3]
        %v446 = vld [vmem:[%s1] sm:$0xf]
        %v447 = vld [vmem:[%s1 + $0x4] sm:$0xf]
        %v448 = vld [vmem:[%s1 + $0x8] sm:$0xf]
        %v449 = vld [vmem:[%s1 + $0xc] sm:$0xf]
        %v450 = vld [vmem:[%s1 + $0x10] sm:$0xf]
        %v451 = vld [vmem:[%s1 + $0x14] sm:$0xf]
        %v452 = vld [vmem:[%s1 + $0x18] sm:$0xf]
        %v453 = vld [vmem:[%s1 + $0x1c] sm:$0xf]
        %v454 = vld [vmem:[%s1 + $0x20] sm:$0xf]
        %v455 = vld [vmem:[%s1 + $0x24] sm:$0xf]
        %v456 = vld [vmem:[%s1 + $0x28] sm:$0xf]
        %v457 = vld [vmem:[%s1 + $0x2c] sm:$0xf]
        %v458 = vld [vmem:[%s1 + $0x30] sm:$0xf]
        %v459 = vld [vmem:[%s1 + $0x34] sm:$0xf]
        %v460 = vld [vmem:[%s1 + $0x38] sm:$0xf]
        %v461 = vld [vmem:[%s1 + $0x3c] sm:$0xf]
        %v462 = vld [vmem:[%s1 + $0x40] sm:$0xf]
        %v463 = vld [vmem:[%s1 + $0x44] sm:$0xf]
        %v464 = vld [vmem:[%s1 + $0x48] sm:$0xf]
        %v465 = vld [vmem:[%s1 + $0x4c] sm:$0xf]
        %v466 = vld [vmem:[%s1 + $0x50] sm:$0xf]
        %v467 = vld [vmem:[%s1 + $0x54] sm:$0xf]
        %v468 = vld [vmem:[%s1 + $0x58] sm:$0xf]
        %v469 = vld [vmem:[%s1 + $0x5c] sm:$0xf]
        %v470 = vld [vmem:[%s1 + $0x60] sm:$0xf]
        %v471 = vld [vmem:[%s1 + $0x64] sm:$0xf]
        %v472 = vld [vmem:[%s1 + $0x68] sm:$0xf]
        %v473 = vld [vmem:[%s1 + $0x6c] sm:$0xf]
        %v474 = vld [vmem:[%s1 + $0x70] sm:$0xf]
        %v475 = vld [vmem:[%s1 + $0x74] sm:$0xf]
        %v476 = vld [vmem:[%s1 + $0x78] sm:$0xf]
        %v477 = vld [vmem:[%s1 + $0x7c] sm:$0xf]
        %v478 = vld [vmem:[%s1 + $0x80] sm:$0xf]
        %v479 = vld [vmem:[%s1 + $0x84] sm:$0xf]
        %v480 = vld [vmem:[%s1 + $0x88] sm:$0xf]
        %v481 = vld [vmem:[%s1 + $0x8c] sm:$0xf]
        %v482 = vld [vmem:[%s1 + $0x90] sm:$0xf]
        %v483 = vld [vmem:[%s1 + $0x94] sm:$0xf]
        %v484 = vld [vmem:[%s1 + $0x98] sm:$0xf]
        %v485 = vld [vmem:[%s1 + $0x9c] sm:$0xf]
        %v486 = vld [vmem:[%s1 + $0xa0] sm:$0xf]
        %v487 = vld [vmem:[%s1 + $0xa4] sm:$0xf]
        %v488 = vld [vmem:[%s1 + $0xa8] sm:$0xf]
        %v489 = vld [vmem:[%s1 + $0xac] sm:$0xf]
        %v490 = vld [vmem:[%s1 + $0xb0] sm:$0xf]
        %v491 = vld [vmem:[%s1 + $0xb4] sm:$0xf]
        %v492 = vld [vmem:[%s1 + $0xb8] sm:$0xf]
        %v493 = vld [vmem:[%s1 + $0xbc] sm:$0xf]
        %v494 = vld [vmem:[%s1 + $0xc0] sm:$0xf]
        %v495 = vld [vmem:[%s1 + $0xc4] sm:$0xf]
        %v496 = vld [vmem:[%s1 + $0xc8] sm:$0xf]
        %v497 = vld [vmem:[%s1 + $0xcc] sm:$0xf]
        %v498 = vld [vmem:[%s1 + $0xd0] sm:$0xf]
        %v499 = vld [vmem:[%s1 + $0xd4] sm:$0xf]
        %v500 = vld [vmem:[%s1 + $0xd8] sm:$0xf]
        %v501 = vld [vmem:[%s1 + $0xdc] sm:$0xf]
        %v502 = vld [vmem:[%s1 + $0xe0] sm:$0xf]
        %v503 = vld [vmem:[%s1 + $0xe4] sm:$0xf]
        %v504 = vld [vmem:[%s1 + $0xe8] sm:$0xf]
        %v505 = vld [vmem:[%s1 + $0xec] sm:$0xf]
        %v506 = vld [vmem:[%s1 + $0xf0] sm:$0xf]
        %v507 = vld [vmem:[%s1 + $0xf4] sm:$0xf]
        %v508 = vld [vmem:[%s1 + $0xf8] sm:$0xf]
        %v509 = vld [vmem:[%s1 + $0xfc] sm:$0xf]
        %v510 = vld [vmem:[%s1 + $0x100] sm:$0xf]
        %v511 = vld [vmem:[%s1 + $0x104] sm:$0xf]
        %v512 = vld [vmem:[%s1 + $0x108] sm:$0xf]
        %v513 = vld [vmem:[%s1 + $0x10c] sm:$0xf]
        %v514 = vld [vmem:[%s1 + $0x110] sm:$0xf]
        %v515 = vld [vmem:[%s1 + $0x114] sm:$0xf]
        %v516 = vld [vmem:[%s1 + $0x118] sm:$0xf]
        %v517 = vld [vmem:[%s1 + $0x11c] sm:$0xf]
        %v520 = vcombine.high %v438, %v438
        %v522 = vunpack.c.l.s4 1983009808
        %v523 = vunpack.c.0.s8 %v522
        %v524 = vlaneseq
        %v525 = vshrl.u32 %v524, 7
        %v526 = vsub.s32 %v523, %v525
        %v527 = vrot.slane %v438, %v526
        %v529 = vunpack.c.l.s4 1983009808
        %v530 = vunpack.c.0.s8 %v529
        %v531 = vlaneseq
        %v532 = vshrl.u32 %v531, 7
        %v533 = vsub.s32 %v530, %v532
        %v534 = vrot.slane %v520, %v533
        %v535 = vcombine.high %v527, %v527
        %v536 = vcombine.high %v534, %v534
        %v538 = vunpack.c.l.s4 1983009808
        %v539 = vunpack.c.0.s8 %v538
        %v540 = vlaneseq
        %v541 = vshrl.u32 %v540, 7
        %v542 = vsub.s32 %v539, %v541
        %v543 = vrot.slane %v439, %v542
        %v620 = vunpack.c.l.b16 %v446
        %v621 = vunpack.c.l.b16 %v447
        %v622 = vunpack.c.l.b16 %v448
        %v623 = vunpack.c.l.b16 %v449
        %v624 = vunpack.c.l.b16 %v450
        %v625 = vunpack.c.l.b16 %v451
        %v626 = vunpack.c.l.b16 %v452
        %v627 = vunpack.c.l.b16 %v453
        %v628 = vunpack.c.l.b16 %v454
        %v629 = vunpack.c.l.b16 %v455
        %v630 = vunpack.c.l.b16 %v456
        %v631 = vunpack.c.l.b16 %v457
        %v632 = vunpack.c.l.b16 %v458
        %v633 = vunpack.c.l.b16 %v459
        %v634 = vunpack.c.l.b16 %v460
        %v635 = vunpack.c.l.b16 %v461
        %v636 = vunpack.c.l.b16 %v462
        %v637 = vunpack.c.l.b16 %v463
        %v638 = vunpack.c.l.b16 %v464
        %v639 = vunpack.c.l.b16 %v465
        %v640 = vunpack.c.l.b16 %v466
        %v641 = vunpack.c.l.b16 %v467
        %v642 = vunpack.c.l.b16 %v468
        %v643 = vunpack.c.l.b16 %v469
        %v644 = vunpack.c.l.b16 %v470
        %v645 = vunpack.c.l.b16 %v471
        %v646 = vunpack.c.l.b16 %v472
        %v647 = vunpack.c.l.b16 %v473
        %v648 = vunpack.c.l.b16 %v474
        %v649 = vunpack.c.l.b16 %v475
        %v650 = vunpack.c.l.b16 %v476
        %v651 = vunpack.c.l.b16 %v477
        %v652 = vunpack.c.l.b16 %v478
        %v653 = vunpack.c.l.b16 %v479
        %v654 = vunpack.c.l.b16 %v480
        %v655 = vunpack.c.l.b16 %v481
        %v656 = vunpack.c.l.b16 %v482
        %v657 = vunpack.c.l.b16 %v483
        %v658 = vunpack.c.l.b16 %v484
        %v659 = vunpack.c.l.b16 %v485
        %v660 = vunpack.c.l.b16 %v486
        %v661 = vunpack.c.l.b16 %v487
        %v662 = vunpack.c.l.b16 %v488
        %v663 = vunpack.c.l.b16 %v489
        %v664 = vunpack.c.l.b16 %v490
        %v665 = vunpack.c.l.b16 %v491
        %v666 = vunpack.c.l.b16 %v492
        %v667 = vunpack.c.l.b16 %v493
        %v668 = vunpack.c.l.b16 %v494
        %v669 = vunpack.c.l.b16 %v495
        %v670 = vunpack.c.l.b16 %v496
        %v671 = vunpack.c.l.b16 %v497
        %v672 = vunpack.c.l.b16 %v498
        %v673 = vunpack.c.l.b16 %v499
        %v674 = vunpack.c.l.b16 %v500
        %v675 = vunpack.c.l.b16 %v501
        %v676 = vunpack.c.l.b16 %v502
        %v677 = vunpack.c.l.b16 %v503
        %v678 = vunpack.c.l.b16 %v504
        %v679 = vunpack.c.l.b16 %v505
        %v680 = vunpack.c.l.b16 %v506
        %v681 = vunpack.c.l.b16 %v507
        %v682 = vunpack.c.l.b16 %v508
        %v683 = vunpack.c.l.b16 %v509
        %v684 = vunpack.c.l.b16 %v510
        %v685 = vunpack.c.l.b16 %v511
        %v686 = vunpack.c.l.b16 %v512
        %v687 = vunpack.c.l.b16 %v513
        %v688 = vunpack.c.l.b16 %v514
        %v689 = vunpack.c.l.b16 %v515
        %v690 = vunpack.c.l.b16 %v516
        %v691 = vunpack.c.l.b16 %v517
        %v692 = vpack.c.b16 %v621, %v620
        %v693 = vpack.c.b16 %v623, %v622
        %v694 = vpack.c.b16 %v625, %v624
        %v695 = vpack.c.b16 %v627, %v626
        %v696 = vpack.c.b16 %v629, %v628
        %v697 = vpack.c.b16 %v631, %v630
        %v698 = vpack.c.b16 %v633, %v632
        %v699 = vpack.c.b16 %v635, %v634
        %v700 = vpack.c.b16 %v637, %v636
        %v701 = vpack.c.b16 %v639, %v638
        %v702 = vpack.c.b16 %v641, %v640
        %v703 = vpack.c.b16 %v643, %v642
        %v704 = vpack.c.b16 %v645, %v644
        %v705 = vpack.c.b16 %v647, %v646
        %v706 = vpack.c.b16 %v649, %v648
        %v707 = vpack.c.b16 %v651, %v650
        %v708 = vpack.c.b16 %v653, %v652
        %v709 = vpack.c.b16 %v655, %v654
        %v710 = vpack.c.b16 %v657, %v656
        %v711 = vpack.c.b16 %v659, %v658
        %v712 = vpack.c.b16 %v661, %v660
        %v713 = vpack.c.b16 %v663, %v662
        %v714 = vpack.c.b16 %v665, %v664
        %v715 = vpack.c.b16 %v667, %v666
        %v716 = vpack.c.b16 %v669, %v668
        %v717 = vpack.c.b16 %v671, %v670
        %v718 = vpack.c.b16 %v673, %v672
        %v719 = vpack.c.b16 %v675, %v674
        %v720 = vpack.c.b16 %v677, %v676
        %v721 = vpack.c.b16 %v679, %v678
        %v722 = vpack.c.b16 %v681, %v680
        %v723 = vpack.c.b16 %v683, %v682
        %v724 = vpack.c.b16 %v685, %v684
        %v725 = vpack.c.b16 %v687, %v686
        %v726 = vpack.c.b16 %v689, %v688
        %v727 = vpack.c.b16 %v691, %v690
        %vm764 = vcmask 523264
        %v766 = vsel %vm764, %v543, 0
        %768 = vmatprep.subr.bf16.mxu0 0
        %769 = vmatpush1.bf16.msra.mxu0 %v692
        %770 = vmatprep.subr.bf16.mxu0 0
        %771 = vmatpush1.bf16.msra.mxu0 %v693
        %772 = vmatprep.subr.bf16.mxu0 0
        %773 = vmatpush1.bf16.msra.mxu0 %v694
        %774 = vmatprep.subr.bf16.mxu0 0
        %775 = vmatpush1.bf16.msra.mxu0 %v695
        %776 = vmatprep.subr.bf16.mxu0 0
        %777 = vmatpush1.bf16.msra.mxu0 %v696
        %778 = vmatprep.subr.bf16.mxu0 0
        %779 = vmatpush1.bf16.msra.mxu0 %v697
        %780 = vmatprep.subr.bf16.mxu0 0
        %781 = vmatpush1.bf16.msra.mxu0 %v698
        %782 = vmatprep.subr.bf16.mxu0 0
        %783 = vmatpush1.bf16.msra.mxu0 %v699
        %784 = vmatprep.subr.bf16.mxu0 0
        %785 = vmatpush1.bf16.msra.mxu0 %v700
        %786 = vmatprep.subr.bf16.mxu0 0
        %787 = vmatpush1.bf16.msra.mxu0 %v701
        %788 = vmatprep.subr.bf16.mxu0 0
        %789 = vmatpush1.bf16.msra.mxu0 %v702
        %790 = vmatprep.subr.bf16.mxu0 0
        %791 = vmatpush1.bf16.msra.mxu0 %v703
        %792 = vmatprep.subr.bf16.mxu0 0
        %793 = vmatpush1.bf16.msra.mxu0 %v704
        %794 = vmatprep.subr.bf16.mxu0 0
        %795 = vmatpush1.bf16.msra.mxu0 %v705
        %796 = vmatprep.subr.bf16.mxu0 0
        %797 = vmatpush1.bf16.msra.mxu0 %v706
        %798 = vmatprep.subr.bf16.mxu0 0
        %799 = vmatpush1.bf16.msra.mxu0 %v707
        %800 = vmatprep.mubr.bf16.mxu0 %v535
        %801 = vmatmul.mubr.bf16.gmra.mrb[0].mxu0 %v527
        %v802 = vpop.f32.mrb[0].mxu0
        %v803 = vadd.f32 0.0, %v802
        %v804 = vpop.f32.mrb[0].mxu0
        %v805 = vpop.f32.mrb[0].mxu0
        %v806 = vpop.f32.mrb[0].mxu0
        %807 = vdwg.mxu0
        %808 = vmatprep.subr.bf16.mxu0 0
        %809 = vmatpush1.bf16.msra.mxu0 %v708
        %810 = vmatprep.subr.bf16.mxu0 0
        %811 = vmatpush1.bf16.msra.mxu0 %v709
        %812 = vmatprep.subr.bf16.mxu0 0
        %813 = vmatpush1.bf16.msra.mxu0 %v710
        %814 = vmatprep.subr.bf16.mxu0 0
        %815 = vmatpush1.bf16.msra.mxu0 %v711
        %816 = vmatprep.subr.bf16.mxu0 0
        %817 = vmatpush1.bf16.msra.mxu0 %v712
        %818 = vmatprep.subr.bf16.mxu0 0
        %819 = vmatpush1.bf16.msra.mxu0 %v713
        %820 = vmatprep.subr.bf16.mxu0 0
        %821 = vmatpush1.bf16.msra.mxu0 %v714
        %822 = vmatprep.subr.bf16.mxu0 0
        %823 = vmatpush1.bf16.msra.mxu0 %v715
        %824 = vmatprep.subr.bf16.mxu0 0
        %825 = vmatpush1.bf16.msra.mxu0 %v716
        %826 = vmatprep.subr.bf16.mxu0 0
        %827 = vmatpush1.bf16.msra.mxu0 %v717
        %828 = vmatprep.subr.bf16.mxu0 0
        %829 = vmatpush1.bf16.msra.mxu0 %v718
        %830 = vmatprep.subr.bf16.mxu0 0
        %831 = vmatpush1.bf16.msra.mxu0 %v719
        %832 = vmatprep.subr.bf16.mxu0 0
        %833 = vmatpush1.bf16.msra.mxu0 %v720
        %834 = vmatprep.subr.bf16.mxu0 0
        %835 = vmatpush1.bf16.msra.mxu0 %v721
        %836 = vmatprep.subr.bf16.mxu0 0
        %837 = vmatpush1.bf16.msra.mxu0 %v722
        %838 = vmatprep.subr.bf16.mxu0 0
        %839 = vmatpush1.bf16.msra.mxu0 %v723
        %840 = vmatprep.mubr.bf16.mxu0 %v536
        %841 = vmatmul.mubr.bf16.gmra.mrb[0].mxu0 %v534
        %v842 = vpop.f32.mrb[0].mxu0
        %v843 = vadd.f32 %v803, %v842
        %v844 = vpop.f32.mrb[0].mxu0
        %v845 = vpop.f32.mrb[0].mxu0
        %v846 = vpop.f32.mrb[0].mxu0
        %847 = vdwg.mxu0
        %848 = vmatprep.subr.bf16.mxu0 0
        %849 = vmatpush1.bf16.msra.mxu0 %v724
        %850 = vmatprep.subr.bf16.mxu0 0
        %851 = vmatpush1.bf16.msra.mxu0 %v725
        %852 = vmatprep.subr.bf16.mxu0 0
        %853 = vmatpush1.bf16.msra.mxu0 %v726
        %854 = vmatprep.subr.bf16.mxu0 0
        %855 = vmatpush1.bf16.msra.mxu0 %v727
        %856 = vmatprep.subr.bf16.mxu0 0
        %857 = vmatpush1.bf16.msra.mxu0 0
        %858 = vmatprep.subr.bf16.mxu0 0
        %859 = vmatpush1.bf16.msra.mxu0 0
        %860 = vmatprep.subr.bf16.mxu0 0
        %861 = vmatpush1.bf16.msra.mxu0 0
        %862 = vmatprep.subr.bf16.mxu0 0
        %863 = vmatpush1.bf16.msra.mxu0 0
        %864 = vmatprep.subr.bf16.mxu0 0
        %865 = vmatpush1.bf16.msra.mxu0 0
        %866 = vmatprep.subr.bf16.mxu0 0
        %867 = vmatpush1.bf16.msra.mxu0 0
        %868 = vmatprep.subr.bf16.mxu0 0
        %869 = vmatpush1.bf16.msra.mxu0 0
        %870 = vmatprep.subr.bf16.mxu0 0
        %871 = vmatpush1.bf16.msra.mxu0 0
        %872 = vmatprep.subr.bf16.mxu0 0
        %873 = vmatpush1.bf16.msra.mxu0 0
        %874 = vmatprep.subr.bf16.mxu0 0
        %875 = vmatpush1.bf16.msra.mxu0 0
        %876 = vmatprep.subr.bf16.mxu0 0
        %877 = vmatpush1.bf16.msra.mxu0 0
        %878 = vmatprep.subr.bf16.mxu0 0
        %879 = vmatpush1.bf16.msra.mxu0 0
        %880 = vmatprep.mubr.bf16.mxu0 0
        %881 = vmatmul.mubr.bf16.gmra.mrb[0].mxu0 %v766
        %v882 = vpop.f32.mrb[0].mxu0
        %v883 = vadd.f32 %v843, %v882
        %v884 = vpop.f32.mrb[0].mxu0
        %v885 = vpop.f32.mrb[0].mxu0
        %v886 = vpop.f32.mrb[0].mxu0
        %887 = vdwg.mxu0
        %v890 = vcombine.high %v440, %v440
        %v892 = vunpack.c.l.s4 1983009808
        %v893 = vunpack.c.0.s8 %v892
        %v894 = vlaneseq
        %v895 = vshrl.u32 %v894, 7
        %v896 = vsub.s32 %v893, %v895
        %v897 = vrot.slane %v440, %v896
        %v899 = vunpack.c.l.s4 1983009808
        %v900 = vunpack.c.0.s8 %v899
        %v901 = vlaneseq
        %v902 = vshrl.u32 %v901, 7
        %v903 = vsub.s32 %v900, %v902
        %v904 = vrot.slane %v890, %v903
        %v905 = vcombine.high %v897, %v897
        %v906 = vcombine.high %v904, %v904
        %v908 = vunpack.c.l.s4 1983009808
        %v909 = vunpack.c.0.s8 %v908
        %v910 = vlaneseq
        %v911 = vshrl.u32 %v910, 7
        %v912 = vsub.s32 %v909, %v911
        %v913 = vrot.slane %v441, %v912
        %v919 = vsel %vm764, %v913, 0
        %921 = vmatprep.subr.bf16.mxu0 0
        %922 = vmatpush1.bf16.msra.mxu0 %v692
        %923 = vmatprep.subr.bf16.mxu0 0
        %924 = vmatpush1.bf16.msra.mxu0 %v693
        %925 = vmatprep.subr.bf16.mxu0 0
        %926 = vmatpush1.bf16.msra.mxu0 %v694
        %927 = vmatprep.subr.bf16.mxu0 0
        %928 = vmatpush1.bf16.msra.mxu0 %v695
        %929 = vmatprep.subr.bf16.mxu0 0
        %930 = vmatpush1.bf16.msra.mxu0 %v696
        %931 = vmatprep.subr.bf16.mxu0 0
        %932 = vmatpush1.bf16.msra.mxu0 %v697
        %933 = vmatprep.subr.bf16.mxu0 0
        %934 = vmatpush1.bf16.msra.mxu0 %v698
        %935 = vmatprep.subr.bf16.mxu0 0
        %936 = vmatpush1.bf16.msra.mxu0 %v699
        %937 = vmatprep.subr.bf16.mxu0 0
        %938 = vmatpush1.bf16.msra.mxu0 %v700
        %939 = vmatprep.subr.bf16.mxu0 0
        %940 = vmatpush1.bf16.msra.mxu0 %v701
        %941 = vmatprep.subr.bf16.mxu0 0
        %942 = vmatpush1.bf16.msra.mxu0 %v702
        %943 = vmatprep.subr.bf16.mxu0 0
        %944 = vmatpush1.bf16.msra.mxu0 %v703
        %945 = vmatprep.subr.bf16.mxu0 0
        %946 = vmatpush1.bf16.msra.mxu0 %v704
        %947 = vmatprep.subr.bf16.mxu0 0
        %948 = vmatpush1.bf16.msra.mxu0 %v705
        %949 = vmatprep.subr.bf16.mxu0 0
        %950 = vmatpush1.bf16.msra.mxu0 %v706
        %951 = vmatprep.subr.bf16.mxu0 0
        %952 = vmatpush1.bf16.msra.mxu0 %v707
        %953 = vmatprep.mubr.bf16.mxu0 %v905
        %954 = vmatmul.mubr.bf16.gmra.mrb[0].mxu0 %v897
        %v955 = vpop.f32.mrb[0].mxu0
        %v956 = vadd.f32 0.0, %v955
        %v957 = vpop.f32.mrb[0].mxu0
        %v958 = vpop.f32.mrb[0].mxu0
        %v959 = vpop.f32.mrb[0].mxu0
        %960 = vdwg.mxu0
        %961 = vmatprep.subr.bf16.mxu0 0
        %962 = vmatpush1.bf16.msra.mxu0 %v708
        %963 = vmatprep.subr.bf16.mxu0 0
        %964 = vmatpush1.bf16.msra.mxu0 %v709
        %965 = vmatprep.subr.bf16.mxu0 0
        %966 = vmatpush1.bf16.msra.mxu0 %v710
        %967 = vmatprep.subr.bf16.mxu0 0
        %968 = vmatpush1.bf16.msra.mxu0 %v711
        %969 = vmatprep.subr.bf16.mxu0 0
        %970 = vmatpush1.bf16.msra.mxu0 %v712
        %971 = vmatprep.subr.bf16.mxu0 0
        %972 = vmatpush1.bf16.msra.mxu0 %v713
        %973 = vmatprep.subr.bf16.mxu0 0
        %974 = vmatpush1.bf16.msra.mxu0 %v714
        %975 = vmatprep.subr.bf16.mxu0 0
        %976 = vmatpush1.bf16.msra.mxu0 %v715
        %977 = vmatprep.subr.bf16.mxu0 0
        %978 = vmatpush1.bf16.msra.mxu0 %v716
        %979 = vmatprep.subr.bf16.mxu0 0
        %980 = vmatpush1.bf16.msra.mxu0 %v717
        %981 = vmatprep.subr.bf16.mxu0 0
        %982 = vmatpush1.bf16.msra.mxu0 %v718
        %983 = vmatprep.subr.bf16.mxu0 0
        %984 = vmatpush1.bf16.msra.mxu0 %v719
        %985 = vmatprep.subr.bf16.mxu0 0
        %986 = vmatpush1.bf16.msra.mxu0 %v720
        %987 = vmatprep.subr.bf16.mxu0 0
        %988 = vmatpush1.bf16.msra.mxu0 %v721
        %989 = vmatprep.subr.bf16.mxu0 0
        %990 = vmatpush1.bf16.msra.mxu0 %v722
        %991 = vmatprep.subr.bf16.mxu0 0
        %992 = vmatpush1.bf16.msra.mxu0 %v723
        %993 = vmatprep.mubr.bf16.mxu0 %v906
        %994 = vmatmul.mubr.bf16.gmra.mrb[0].mxu0 %v904
        %v995 = vpop.f32.mrb[0].mxu0
        %v996 = vadd.f32 %v956, %v995
        %v997 = vpop.f32.mrb[0].mxu0
        %v998 = vpop.f32.mrb[0].mxu0
        %v999 = vpop.f32.mrb[0].mxu0
        %1000 = vdwg.mxu0
        %1001 = vmatprep.subr.bf16.mxu0 0
        %1002 = vmatpush1.bf16.msra.mxu0 %v724
        %1003 = vmatprep.subr.bf16.mxu0 0
        %1004 = vmatpush1.bf16.msra.mxu0 %v725
        %1005 = vmatprep.subr.bf16.mxu0 0
        %1006 = vmatpush1.bf16.msra.mxu0 %v726
        %1007 = vmatprep.subr.bf16.mxu0 0
        %1008 = vmatpush1.bf16.msra.mxu0 %v727
        %1009 = vmatprep.subr.bf16.mxu0 0
        %1010 = vmatpush1.bf16.msra.mxu0 0
        %1011 = vmatprep.subr.bf16.mxu0 0
        %1012 = vmatpush1.bf16.msra.mxu0 0
        %1013 = vmatprep.subr.bf16.mxu0 0
        %1014 = vmatpush1.bf16.msra.mxu0 0
        %1015 = vmatprep.subr.bf16.mxu0 0
        %1016 = vmatpush1.bf16.msra.mxu0 0
        %1017 = vmatprep.subr.bf16.mxu0 0
        %1018 = vmatpush1.bf16.msra.mxu0 0
        %1019 = vmatprep.subr.bf16.mxu0 0
        %1020 = vmatpush1.bf16.msra.mxu0 0
        %1021 = vmatprep.subr.bf16.mxu0 0
        %1022 = vmatpush1.bf16.msra.mxu0 0
        %1023 = vmatprep.subr.bf16.mxu0 0
        %1024 = vmatpush1.bf16.msra.mxu0 0
        %1025 = vmatprep.subr.bf16.mxu0 0
        %1026 = vmatpush1.bf16.msra.mxu0 0
        %1027 = vmatprep.subr.bf16.mxu0 0
        %1028 = vmatpush1.bf16.msra.mxu0 0
        %1029 = vmatprep.subr.bf16.mxu0 0
        %1030 = vmatpush1.bf16.msra.mxu0 0
        %1031 = vmatprep.subr.bf16.mxu0 0
        %1032 = vmatpush1.bf16.msra.mxu0 0
        %1033 = vmatprep.mubr.bf16.mxu0 0
        %1034 = vmatmul.mubr.bf16.gmra.mrb[0].mxu0 %v919
        %v1035 = vpop.f32.mrb[0].mxu0
        %v1036 = vadd.f32 %v996, %v1035
        %v1037 = vpop.f32.mrb[0].mxu0
        %v1038 = vpop.f32.mrb[0].mxu0
        %v1039 = vpop.f32.mrb[0].mxu0
        %1040 = vdwg.mxu0
        %v1041 = vmax.f32 %v883, %v1036
        %v1044 = vcombine.high %v442, %v442
        %v1046 = vunpack.c.l.s4 1983009808
        %v1047 = vunpack.c.0.s8 %v1046
        %v1048 = vlaneseq
        %v1049 = vshrl.u32 %v1048, 7
        %v1050 = vsub.s32 %v1047, %v1049
        %v1051 = vrot.slane %v442, %v1050
        %v1053 = vunpack.c.l.s4 1983009808
        %v1054 = vunpack.c.0.s8 %v1053
        %v1055 = vlaneseq
        %v1056 = vshrl.u32 %v1055, 7
        %v1057 = vsub.s32 %v1054, %v1056
        %v1058 = vrot.slane %v1044, %v1057
        %v1059 = vcombine.high %v1051, %v1051
        %v1060 = vcombine.high %v1058, %v1058
        %v1062 = vunpack.c.l.s4 1983009808
        %v1063 = vunpack.c.0.s8 %v1062
        %v1064 = vlaneseq
        %v1065 = vshrl.u32 %v1064, 7
        %v1066 = vsub.s32 %v1063, %v1065
        %v1067 = vrot.slane %v443, %v1066
        %v1073 = vsel %vm764, %v1067, 0
        %1075 = vmatprep.subr.bf16.mxu0 0
        %1076 = vmatpush1.bf16.msra.mxu0 %v692
        %1077 = vmatprep.subr.bf16.mxu0 0
        %1078 = vmatpush1.bf16.msra.mxu0 %v693
        %1079 = vmatprep.subr.bf16.mxu0 0
        %1080 = vmatpush1.bf16.msra.mxu0 %v694
        %1081 = vmatprep.subr.bf16.mxu0 0
        %1082 = vmatpush1.bf16.msra.mxu0 %v695
        %1083 = vmatprep.subr.bf16.mxu0 0
        %1084 = vmatpush1.bf16.msra.mxu0 %v696
        %1085 = vmatprep.subr.bf16.mxu0 0
        %1086 = vmatpush1.bf16.msra.mxu0 %v697
        %1087 = vmatprep.subr.bf16.mxu0 0
        %1088 = vmatpush1.bf16.msra.mxu0 %v698
        %1089 = vmatprep.subr.bf16.mxu0 0
        %1090 = vmatpush1.bf16.msra.mxu0 %v699
        %1091 = vmatprep.subr.bf16.mxu0 0
        %1092 = vmatpush1.bf16.msra.mxu0 %v700
        %1093 = vmatprep.subr.bf16.mxu0 0
        %1094 = vmatpush1.bf16.msra.mxu0 %v701
        %1095 = vmatprep.subr.bf16.mxu0 0
        %1096 = vmatpush1.bf16.msra.mxu0 %v702
        %1097 = vmatprep.subr.bf16.mxu0 0
        %1098 = vmatpush1.bf16.msra.mxu0 %v703
        %1099 = vmatprep.subr.bf16.mxu0 0
        %1100 = vmatpush1.bf16.msra.mxu0 %v704
        %1101 = vmatprep.subr.bf16.mxu0 0
        %1102 = vmatpush1.bf16.msra.mxu0 %v705
        %1103 = vmatprep.subr.bf16.mxu0 0
        %1104 = vmatpush1.bf16.msra.mxu0 %v706
        %1105 = vmatprep.subr.bf16.mxu0 0
        %1106 = vmatpush1.bf16.msra.mxu0 %v707
        %1107 = vmatprep.mubr.bf16.mxu0 %v1059
        %1108 = vmatmul.mubr.bf16.gmra.mrb[0].mxu0 %v1051
        %v1109 = vpop.f32.mrb[0].mxu0
        %v1110 = vadd.f32 0.0, %v1109
        %v1111 = vpop.f32.mrb[0].mxu0
        %v1112 = vpop.f32.mrb[0].mxu0
        %v1113 = vpop.f32.mrb[0].mxu0
        %1114 = vdwg.mxu0
        %1115 = vmatprep.subr.bf16.mxu0 0
        %1116 = vmatpush1.bf16.msra.mxu0 %v708
        %1117 = vmatprep.subr.bf16.mxu0 0
        %1118 = vmatpush1.bf16.msra.mxu0 %v709
        %1119 = vmatprep.subr.bf16.mxu0 0
        %1120 = vmatpush1.bf16.msra.mxu0 %v710
        %1121 = vmatprep.subr.bf16.mxu0 0
        %1122 = vmatpush1.bf16.msra.mxu0 %v711
        %1123 = vmatprep.subr.bf16.mxu0 0
        %1124 = vmatpush1.bf16.msra.mxu0 %v712
        %1125 = vmatprep.subr.bf16.mxu0 0
        %1126 = vmatpush1.bf16.msra.mxu0 %v713
        %1127 = vmatprep.subr.bf16.mxu0 0
        %1128 = vmatpush1.bf16.msra.mxu0 %v714
        %1129 = vmatprep.subr.bf16.mxu0 0
        %1130 = vmatpush1.bf16.msra.mxu0 %v715
        %1131 = vmatprep.subr.bf16.mxu0 0
        %1132 = vmatpush1.bf16.msra.mxu0 %v716
        %1133 = vmatprep.subr.bf16.mxu0 0
        %1134 = vmatpush1.bf16.msra.mxu0 %v717
        %1135 = vmatprep.subr.bf16.mxu0 0
        %1136 = vmatpush1.bf16.msra.mxu0 %v718
        %1137 = vmatprep.subr.bf16.mxu0 0
        %1138 = vmatpush1.bf16.msra.mxu0 %v719
        %1139 = vmatprep.subr.bf16.mxu0 0
        %1140 = vmatpush1.bf16.msra.mxu0 %v720
        %1141 = vmatprep.subr.bf16.mxu0 0
        %1142 = vmatpush1.bf16.msra.mxu0 %v721
        %1143 = vmatprep.subr.bf16.mxu0 0
        %1144 = vmatpush1.bf16.msra.mxu0 %v722
        %1145 = vmatprep.subr.bf16.mxu0 0
        %1146 = vmatpush1.bf16.msra.mxu0 %v723
        %1147 = vmatprep.mubr.bf16.mxu0 %v1060
        %1148 = vmatmul.mubr.bf16.gmra.mrb[0].mxu0 %v1058
        %v1149 = vpop.f32.mrb[0].mxu0
        %v1150 = vadd.f32 %v1110, %v1149
        %v1151 = vpop.f32.mrb[0].mxu0
        %v1152 = vpop.f32.mrb[0].mxu0
        %v1153 = vpop.f32.mrb[0].mxu0
        %1154 = vdwg.mxu0
        %1155 = vmatprep.subr.bf16.mxu0 0
        %1156 = vmatpush1.bf16.msra.mxu0 %v724
        %1157 = vmatprep.subr.bf16.mxu0 0
        %1158 = vmatpush1.bf16.msra.mxu0 %v725
        %1159 = vmatprep.subr.bf16.mxu0 0
        %1160 = vmatpush1.bf16.msra.mxu0 %v726
        %1161 = vmatprep.subr.bf16.mxu0 0
        %1162 = vmatpush1.bf16.msra.mxu0 %v727
        %1163 = vmatprep.subr.bf16.mxu0 0
        %1164 = vmatpush1.bf16.msra.mxu0 0
        %1165 = vmatprep.subr.bf16.mxu0 0
        %1166 = vmatpush1.bf16.msra.mxu0 0
        %1167 = vmatprep.subr.bf16.mxu0 0
        %1168 = vmatpush1.bf16.msra.mxu0 0
        %1169 = vmatprep.subr.bf16.mxu0 0
        %1170 = vmatpush1.bf16.msra.mxu0 0
        %1171 = vmatprep.subr.bf16.mxu0 0
        %1172 = vmatpush1.bf16.msra.mxu0 0
        %1173 = vmatprep.subr.bf16.mxu0 0
        %1174 = vmatpush1.bf16.msra.mxu0 0
        %1175 = vmatprep.subr.bf16.mxu0 0
        %1176 = vmatpush1.bf16.msra.mxu0 0
        %1177 = vmatprep.subr.bf16.mxu0 0
        %1178 = vmatpush1.bf16.msra.mxu0 0
        %1179 = vmatprep.subr.bf16.mxu0 0
        %1180 = vmatpush1.bf16.msra.mxu0 0
        %1181 = vmatprep.subr.bf16.mxu0 0
        %1182 = vmatpush1.bf16.msra.mxu0 0
        %1183 = vmatprep.subr.bf16.mxu0 0
        %1184 = vmatpush1.bf16.msra.mxu0 0
        %1185 = vmatprep.subr.bf16.mxu0 0
        %1186 = vmatpush1.bf16.msra.mxu0 0
        %1187 = vmatprep.mubr.bf16.mxu0 0
        %1188 = vmatmul.mubr.bf16.gmra.mrb[0].mxu0 %v1073
        %v1189 = vpop.f32.mrb[0].mxu0
        %v1190 = vadd.f32 %v1150, %v1189
        %v1191 = vpop.f32.mrb[0].mxu0
        %v1192 = vpop.f32.mrb[0].mxu0
        %v1193 = vpop.f32.mrb[0].mxu0
        %1194 = vdwg.mxu0
        %v1195 = vmax.f32 %v1041, %v1190
        %v1198 = vcombine.high %v444, %v444
        %v1200 = vunpack.c.l.s4 1983009808
        %v1201 = vunpack.c.0.s8 %v1200
        %v1202 = vlaneseq
        %v1203 = vshrl.u32 %v1202, 7
        %v1204 = vsub.s32 %v1201, %v1203
        %v1205 = vrot.slane %v444, %v1204
        %v1207 = vunpack.c.l.s4 1983009808
        %v1208 = vunpack.c.0.s8 %v1207
        %v1209 = vlaneseq
        %v1210 = vshrl.u32 %v1209, 7
        %v1211 = vsub.s32 %v1208, %v1210
        %v1212 = vrot.slane %v1198, %v1211
        %v1213 = vcombine.high %v1205, %v1205
        %v1214 = vcombine.high %v1212, %v1212
        %v1216 = vunpack.c.l.s4 1983009808
        %v1217 = vunpack.c.0.s8 %v1216
        %v1218 = vlaneseq
        %v1219 = vshrl.u32 %v1218, 7
        %v1220 = vsub.s32 %v1217, %v1219
        %v1221 = vrot.slane %v445, %v1220
        %v1227 = vsel %vm764, %v1221, 0
        %1229 = vmatprep.subr.bf16.mxu0 0
        %1230 = vmatpush1.bf16.msra.mxu0 %v692
        %1231 = vmatprep.subr.bf16.mxu0 0
        %1232 = vmatpush1.bf16.msra.mxu0 %v693
        %1233 = vmatprep.subr.bf16.mxu0 0
        %1234 = vmatpush1.bf16.msra.mxu0 %v694
        %1235 = vmatprep.subr.bf16.mxu0 0
        %1236 = vmatpush1.bf16.msra.mxu0 %v695
        %1237 = vmatprep.subr.bf16.mxu0 0
        %1238 = vmatpush1.bf16.msra.mxu0 %v696
        %1239 = vmatprep.subr.bf16.mxu0 0
        %1240 = vmatpush1.bf16.msra.mxu0 %v697
        %1241 = vmatprep.subr.bf16.mxu0 0
        %1242 = vmatpush1.bf16.msra.mxu0 %v698
        %1243 = vmatprep.subr.bf16.mxu0 0
        %1244 = vmatpush1.bf16.msra.mxu0 %v699
        %1245 = vmatprep.subr.bf16.mxu0 0
        %1246 = vmatpush1.bf16.msra.mxu0 %v700
        %1247 = vmatprep.subr.bf16.mxu0 0
        %1248 = vmatpush1.bf16.msra.mxu0 %v701
        %1249 = vmatprep.subr.bf16.mxu0 0
        %1250 = vmatpush1.bf16.msra.mxu0 %v702
        %1251 = vmatprep.subr.bf16.mxu0 0
        %1252 = vmatpush1.bf16.msra.mxu0 %v703
        %1253 = vmatprep.subr.bf16.mxu0 0
        %1254 = vmatpush1.bf16.msra.mxu0 %v704
        %1255 = vmatprep.subr.bf16.mxu0 0
        %1256 = vmatpush1.bf16.msra.mxu0 %v705
        %1257 = vmatprep.subr.bf16.mxu0 0
        %1258 = vmatpush1.bf16.msra.mxu0 %v706
        %1259 = vmatprep.subr.bf16.mxu0 0
        %1260 = vmatpush1.bf16.msra.mxu0 %v707
        %1261 = vmatprep.mubr.bf16.mxu0 %v1213
        %1262 = vmatmul.mubr.bf16.gmra.mrb[0].mxu0 %v1205
        %v1263 = vpop.f32.mrb[0].mxu0
        %v1264 = vadd.f32 0.0, %v1263
        %v1265 = vpop.f32.mrb[0].mxu0
        %v1266 = vpop.f32.mrb[0].mxu0
        %v1267 = vpop.f32.mrb[0].mxu0
        %1268 = vdwg.mxu0
        %1269 = vmatprep.subr.bf16.mxu0 0
        %1270 = vmatpush1.bf16.msra.mxu0 %v708
        %1271 = vmatprep.subr.bf16.mxu0 0
        %1272 = vmatpush1.bf16.msra.mxu0 %v709
        %1273 = vmatprep.subr.bf16.mxu0 0
        %1274 = vmatpush1.bf16.msra.mxu0 %v710
        %1275 = vmatprep.subr.bf16.mxu0 0
        %1276 = vmatpush1.bf16.msra.mxu0 %v711
        %1277 = vmatprep.subr.bf16.mxu0 0
        %1278 = vmatpush1.bf16.msra.mxu0 %v712
        %1279 = vmatprep.subr.bf16.mxu0 0
        %1280 = vmatpush1.bf16.msra.mxu0 %v713
        %1281 = vmatprep.subr.bf16.mxu0 0
        %1282 = vmatpush1.bf16.msra.mxu0 %v714
        %1283 = vmatprep.subr.bf16.mxu0 0
        %1284 = vmatpush1.bf16.msra.mxu0 %v715
        %1285 = vmatprep.subr.bf16.mxu0 0
        %1286 = vmatpush1.bf16.msra.mxu0 %v716
        %1287 = vmatprep.subr.bf16.mxu0 0
        %1288 = vmatpush1.bf16.msra.mxu0 %v717
        %1289 = vmatprep.subr.bf16.mxu0 0
        %1290 = vmatpush1.bf16.msra.mxu0 %v718
        %1291 = vmatprep.subr.bf16.mxu0 0
        %1292 = vmatpush1.bf16.msra.mxu0 %v719
        %1293 = vmatprep.subr.bf16.mxu0 0
        %1294 = vmatpush1.bf16.msra.mxu0 %v720
        %1295 = vmatprep.subr.bf16.mxu0 0
        %1296 = vmatpush1.bf16.msra.mxu0 %v721
        %1297 = vmatprep.subr.bf16.mxu0 0
        %1298 = vmatpush1.bf16.msra.mxu0 %v722
        %1299 = vmatprep.subr.bf16.mxu0 0
        %1300 = vmatpush1.bf16.msra.mxu0 %v723
        %1301 = vmatprep.mubr.bf16.mxu0 %v1214
        %1302 = vmatmul.mubr.bf16.gmra.mrb[0].mxu0 %v1212
        %v1303 = vpop.f32.mrb[0].mxu0
        %v1304 = vadd.f32 %v1264, %v1303
        %v1305 = vpop.f32.mrb[0].mxu0
        %v1306 = vpop.f32.mrb[0].mxu0
        %v1307 = vpop.f32.mrb[0].mxu0
        %1308 = vdwg.mxu0
        %1309 = vmatprep.subr.bf16.mxu0 0
        %1310 = vmatpush1.bf16.msra.mxu0 %v724
        %1311 = vmatprep.subr.bf16.mxu0 0
        %1312 = vmatpush1.bf16.msra.mxu0 %v725
        %1313 = vmatprep.subr.bf16.mxu0 0
        %1314 = vmatpush1.bf16.msra.mxu0 %v726
        %1315 = vmatprep.subr.bf16.mxu0 0
        %1316 = vmatpush1.bf16.msra.mxu0 %v727
        %1317 = vmatprep.subr.bf16.mxu0 0
        %1318 = vmatpush1.bf16.msra.mxu0 0
        %1319 = vmatprep.subr.bf16.mxu0 0
        %1320 = vmatpush1.bf16.msra.mxu0 0
        %1321 = vmatprep.subr.bf16.mxu0 0
        %1322 = vmatpush1.bf16.msra.mxu0 0
        %1323 = vmatprep.subr.bf16.mxu0 0
        %1324 = vmatpush1.bf16.msra.mxu0 0
        %1325 = vmatprep.subr.bf16.mxu0 0
        %1326 = vmatpush1.bf16.msra.mxu0 0
        %1327 = vmatprep.subr.bf16.mxu0 0
        %1328 = vmatpush1.bf16.msra.mxu0 0
        %1329 = vmatprep.subr.bf16.mxu0 0
        %1330 = vmatpush1.bf16.msra.mxu0 0
        %1331 = vmatprep.subr.bf16.mxu0 0
        %1332 = vmatpush1.bf16.msra.mxu0 0
        %1333 = vmatprep.subr.bf16.mxu0 0
        %1334 = vmatpush1.bf16.msra.mxu0 0
        %1335 = vmatprep.subr.bf16.mxu0 0
        %1336 = vmatpush1.bf16.msra.mxu0 0
        %1337 = vmatprep.subr.bf16.mxu0 0
        %1338 = vmatpush1.bf16.msra.mxu0 0
        %1339 = vmatprep.subr.bf16.mxu0 0
        %1340 = vmatpush1.bf16.msra.mxu0 0
        %1341 = vmatprep.mubr.bf16.mxu0 0
        %1342 = vmatmul.mubr.bf16.gmra.mrb[0].mxu0 %v1227
        %v1343 = vpop.f32.mrb[0].mxu0
        %v1344 = vadd.f32 %v1304, %v1343
        %v1345 = vpop.f32.mrb[0].mxu0
        %v1346 = vpop.f32.mrb[0].mxu0
        %v1347 = vpop.f32.mrb[0].mxu0
        %1348 = vdwg.mxu0
        %v1349 = vmax.f32 %v1195, %v1344
        %v1350 = vld [vmem:[%s2] sm:$0x1]
        %v1352 = vlaneseq
        %v1353 = vshrl.u32 %v1352, 7
        %v1354 = vsub.s32 0, %v1353
        %v1355 = vrot.slane %v1350, %v1354
        %v1357 = vadd.f32 %v1349, %v1355
        %v1358 = vmax.f32 %v1357, 0.0
        %1359 = vst [vmem:[%s436] sm:$0xf] %v1358
        %v1360 = vlaneseq
        %v1361 = vshrl.u32 %v1360, 7
        %v1362 = vld [vmem:[%s4] sm:$0x1]
        %vm1363 = vcmp.eq.s32.totalorder %v1361, 0
        %v1364 = vsel %vm1363, %v1358, 0.0
        %vm1365 = vcmask 1043456
        %v1366 = vsel %vm1365, %v1364, 0.0
        %v1367 = vrot.slane %v1366, 4
        %v1368 = vadd.f32 %v1366, %v1367
        %v1369 = vrot.slane %v1368, 2
        %v1370 = vadd.f32 %v1368, %v1369
        %v1371 = vrot.slane %v1370, 1
        %v1372 = vadd.f32 %v1370, %v1371
        %v1373 = vpack.c.bf16 %v1372, %v1372
        %v1374 = vld [vmem:[%s3] sm:$0xf]
        %v1375 = vld [vmem:[%s3 + $0x4] sm:$0xf]
        %v1376 = vld [vmem:[%s3 + $0x8] sm:$0xf]
        %v1377 = vld [vmem:[%s3 + $0xc] sm:$0xf]
        %v1378 = vld [vmem:[%s3 + $0x10] sm:$0xf]
        %v1379 = vld [vmem:[%s3 + $0x14] sm:$0xf]
        %v1380 = vld [vmem:[%s3 + $0x18] sm:$0xf]
        %v1381 = vld [vmem:[%s3 + $0x1c] sm:$0xf]
        %v1382 = vld [vmem:[%s3 + $0x20] sm:$0xf]
        %v1383 = vld [vmem:[%s3 + $0x24] sm:$0xf]
        %v1384 = vld [vmem:[%s3 + $0x28] sm:$0xf]
        %v1385 = vld [vmem:[%s3 + $0x2c] sm:$0xf]
        %v1386 = vld [vmem:[%s3 + $0x30] sm:$0xf]
        %v1387 = vld [vmem:[%s3 + $0x34] sm:$0xf]
        %v1388 = vld [vmem:[%s3 + $0x38] sm:$0xf]
        %v1389 = vld [vmem:[%s3 + $0x3c] sm:$0xf]
        %v1406 = vunpack.c.l.b16 %v1374
        %v1407 = vunpack.c.l.b16 %v1375
        %v1408 = vunpack.c.l.b16 %v1376
        %v1409 = vunpack.c.l.b16 %v1377
        %v1410 = vunpack.c.l.b16 %v1378
        %v1411 = vunpack.c.l.b16 %v1379
        %v1412 = vunpack.c.l.b16 %v1380
        %v1413 = vunpack.c.l.b16 %v1381
        %v1414 = vunpack.c.l.b16 %v1382
        %v1415 = vunpack.c.l.b16 %v1383
        %v1416 = vunpack.c.l.b16 %v1384
        %v1417 = vunpack.c.l.b16 %v1385
        %v1418 = vunpack.c.l.b16 %v1386
        %v1419 = vunpack.c.l.b16 %v1387
        %v1420 = vunpack.c.l.b16 %v1388
        %v1421 = vunpack.c.l.b16 %v1389
        %v1422 = vpack.c.b16 %v1407, %v1406
        %v1423 = vpack.c.b16 %v1409, %v1408
        %v1424 = vpack.c.b16 %v1411, %v1410
        %v1425 = vpack.c.b16 %v1413, %v1412
        %v1426 = vpack.c.b16 %v1415, %v1414
        %v1427 = vpack.c.b16 %v1417, %v1416
        %v1428 = vpack.c.b16 %v1419, %v1418
        %v1429 = vpack.c.b16 %v1421, %v1420
        %1438 = vmatprep.subr.bf16.mxu0 0
        %1439 = vmatpush1.bf16.msra.mxu0 %v1422
        %1440 = vmatprep.subr.bf16.mxu0 0
        %1441 = vmatpush1.bf16.msra.mxu0 %v1423
        %1442 = vmatprep.subr.bf16.mxu0 0
        %1443 = vmatpush1.bf16.msra.mxu0 %v1424
        %1444 = vmatprep.subr.bf16.mxu0 0
        %1445 = vmatpush1.bf16.msra.mxu0 %v1425
        %1446 = vmatprep.subr.bf16.mxu0 0
        %1447 = vmatpush1.bf16.msra.mxu0 %v1426
        %1448 = vmatprep.subr.bf16.mxu0 0
        %1449 = vmatpush1.bf16.msra.mxu0 %v1427
        %1450 = vmatprep.subr.bf16.mxu0 0
        %1451 = vmatpush1.bf16.msra.mxu0 %v1428
        %1452 = vmatprep.subr.bf16.mxu0 0
        %1453 = vmatpush1.bf16.msra.mxu0 %v1429
        %1454 = vmatprep.subr.bf16.mxu0 0
        %1455 = vmatpush1.bf16.msra.mxu0 0
        %1456 = vmatprep.subr.bf16.mxu0 0
        %1457 = vmatpush1.bf16.msra.mxu0 0
        %1458 = vmatprep.subr.bf16.mxu0 0
        %1459 = vmatpush1.bf16.msra.mxu0 0
        %1460 = vmatprep.subr.bf16.mxu0 0
        %1461 = vmatpush1.bf16.msra.mxu0 0
        %1462 = vmatprep.subr.bf16.mxu0 0
        %1463 = vmatpush1.bf16.msra.mxu0 0
        %1464 = vmatprep.subr.bf16.mxu0 0
        %1465 = vmatpush1.bf16.msra.mxu0 0
        %1466 = vmatprep.subr.bf16.mxu0 0
        %1467 = vmatpush1.bf16.msra.mxu0 0
        %1468 = vmatprep.subr.bf16.mxu0 0
        %1469 = vmatpush1.bf16.msra.mxu0 0
        %1470 = vmatprep.mubr.bf16.mxu0 0
        %1471 = vmatmul.mubr.bf16.gmra.mrb[0].mxu0 %v1373
        %v1472 = vpop.f32.mrb[0].mxu0
        %v1473 = vadd.f32 0.0, %v1472
        %v1474 = vpop.f32.mrb[0].mxu0
        %v1475 = vpop.f32.mrb[0].mxu0
        %v1476 = vpop.f32.mrb[0].mxu0
        %1477 = vdwg.mxu0
        %v1478 = vadd.f32 %v1362, %v1473
        %vm1479 = vcmp.eq.s32.totalorder %v1361, 1
        %v1480 = vsel %vm1479, %v1358, 0.0
        %v1481 = vsel %vm1365, %v1480, 0.0
        %v1482 = vrot.slane %v1481, 4
        %v1483 = vadd.f32 %v1481, %v1482
        %v1484 = vrot.slane %v1483, 2
        %v1485 = vadd.f32 %v1483, %v1484
        %v1486 = vrot.slane %v1485, 1
        %v1487 = vadd.f32 %v1485, %v1486
        %v1488 = vpack.c.bf16 %v1487, %v1487
        %s1489 = scalar_lea.vmem %s3, 64
        %v1490 = vld [vmem:[%s1489] sm:$0xf]
        %v1491 = vld [vmem:[%s1489 + $0x4] sm:$0xf]
        %v1492 = vld [vmem:[%s1489 + $0x8] sm:$0xf]
        %v1493 = vld [vmem:[%s1489 + $0xc] sm:$0xf]
        %v1494 = vld [vmem:[%s1489 + $0x10] sm:$0xf]
        %v1495 = vld [vmem:[%s1489 + $0x14] sm:$0xf]
        %v1496 = vld [vmem:[%s1489 + $0x18] sm:$0xf]
        %v1497 = vld [vmem:[%s1489 + $0x1c] sm:$0xf]
        %v1498 = vld [vmem:[%s1489 + $0x20] sm:$0xf]
        %v1499 = vld [vmem:[%s1489 + $0x24] sm:$0xf]
        %v1500 = vld [vmem:[%s1489 + $0x28] sm:$0xf]
        %v1501 = vld [vmem:[%s1489 + $0x2c] sm:$0xf]
        %v1502 = vld [vmem:[%s1489 + $0x30] sm:$0xf]
        %v1503 = vld [vmem:[%s1489 + $0x34] sm:$0xf]
        %v1504 = vld [vmem:[%s1489 + $0x38] sm:$0xf]
        %v1505 = vld [vmem:[%s1489 + $0x3c] sm:$0xf]
        %v1522 = vunpack.c.l.b16 %v1490
        %v1523 = vunpack.c.l.b16 %v1491
        %v1524 = vunpack.c.l.b16 %v1492
        %v1525 = vunpack.c.l.b16 %v1493
        %v1526 = vunpack.c.l.b16 %v1494
        %v1527 = vunpack.c.l.b16 %v1495
        %v1528 = vunpack.c.l.b16 %v1496
        %v1529 = vunpack.c.l.b16 %v1497
        %v1530 = vunpack.c.l.b16 %v1498
        %v1531 = vunpack.c.l.b16 %v1499
        %v1532 = vunpack.c.l.b16 %v1500
        %v1533 = vunpack.c.l.b16 %v1501
        %v1534 = vunpack.c.l.b16 %v1502
        %v1535 = vunpack.c.l.b16 %v1503
        %v1536 = vunpack.c.l.b16 %v1504
        %v1537 = vunpack.c.l.b16 %v1505
        %v1538 = vpack.c.b16 %v1523, %v1522
        %v1539 = vpack.c.b16 %v1525, %v1524
        %v1540 = vpack.c.b16 %v1527, %v1526
        %v1541 = vpack.c.b16 %v1529, %v1528
        %v1542 = vpack.c.b16 %v1531, %v1530
        %v1543 = vpack.c.b16 %v1533, %v1532
        %v1544 = vpack.c.b16 %v1535, %v1534
        %v1545 = vpack.c.b16 %v1537, %v1536
        %1554 = vmatprep.subr.bf16.mxu0 0
        %1555 = vmatpush1.bf16.msra.mxu0 %v1538
        %1556 = vmatprep.subr.bf16.mxu0 0
        %1557 = vmatpush1.bf16.msra.mxu0 %v1539
        %1558 = vmatprep.subr.bf16.mxu0 0
        %1559 = vmatpush1.bf16.msra.mxu0 %v1540
        %1560 = vmatprep.subr.bf16.mxu0 0
        %1561 = vmatpush1.bf16.msra.mxu0 %v1541
        %1562 = vmatprep.subr.bf16.mxu0 0
        %1563 = vmatpush1.bf16.msra.mxu0 %v1542
        %1564 = vmatprep.subr.bf16.mxu0 0
        %1565 = vmatpush1.bf16.msra.mxu0 %v1543
        %1566 = vmatprep.subr.bf16.mxu0 0
        %1567 = vmatpush1.bf16.msra.mxu0 %v1544
        %1568 = vmatprep.subr.bf16.mxu0 0
        %1569 = vmatpush1.bf16.msra.mxu0 %v1545
        %1570 = vmatprep.subr.bf16.mxu0 0
        %1571 = vmatpush1.bf16.msra.mxu0 0
        %1572 = vmatprep.subr.bf16.mxu0 0
        %1573 = vmatpush1.bf16.msra.mxu0 0
        %1574 = vmatprep.subr.bf16.mxu0 0
        %1575 = vmatpush1.bf16.msra.mxu0 0
        %1576 = vmatprep.subr.bf16.mxu0 0
        %1577 = vmatpush1.bf16.msra.mxu0 0
        %1578 = vmatprep.subr.bf16.mxu0 0
        %1579 = vmatpush1.bf16.msra.mxu0 0
        %1580 = vmatprep.subr.bf16.mxu0 0
        %1581 = vmatpush1.bf16.msra.mxu0 0
        %1582 = vmatprep.subr.bf16.mxu0 0
        %1583 = vmatpush1.bf16.msra.mxu0 0
        %1584 = vmatprep.subr.bf16.mxu0 0
        %1585 = vmatpush1.bf16.msra.mxu0 0
        %1586 = vmatprep.mubr.bf16.mxu0 0
        %1587 = vmatmul.mubr.bf16.gmra.mrb[0].mxu0 %v1488
        %v1588 = vpop.f32.mrb[0].mxu0
        %v1589 = vadd.f32 0.0, %v1588
        %v1590 = vpop.f32.mrb[0].mxu0
        %v1591 = vpop.f32.mrb[0].mxu0
        %v1592 = vpop.f32.mrb[0].mxu0
        %1593 = vdwg.mxu0
        %v1594 = vadd.f32 %v1478, %v1589
        %vm1595 = vcmp.eq.s32.totalorder %v1361, 2
        %v1596 = vsel %vm1595, %v1358, 0.0
        %v1597 = vsel %vm1365, %v1596, 0.0
        %v1598 = vrot.slane %v1597, 4
        %v1599 = vadd.f32 %v1597, %v1598
        %v1600 = vrot.slane %v1599, 2
        %v1601 = vadd.f32 %v1599, %v1600
        %v1602 = vrot.slane %v1601, 1
        %v1603 = vadd.f32 %v1601, %v1602
        %v1604 = vpack.c.bf16 %v1603, %v1603
        %s1605 = scalar_lea.vmem %s3, 128
        %v1606 = vld [vmem:[%s1605] sm:$0xf]
        %v1607 = vld [vmem:[%s1605 + $0x4] sm:$0xf]
        %v1608 = vld [vmem:[%s1605 + $0x8] sm:$0xf]
        %v1609 = vld [vmem:[%s1605 + $0xc] sm:$0xf]
        %v1610 = vld [vmem:[%s1605 + $0x10] sm:$0xf]
        %v1611 = vld [vmem:[%s1605 + $0x14] sm:$0xf]
        %v1612 = vld [vmem:[%s1605 + $0x18] sm:$0xf]
        %v1613 = vld [vmem:[%s1605 + $0x1c] sm:$0xf]
        %v1614 = vld [vmem:[%s1605 + $0x20] sm:$0xf]
        %v1615 = vld [vmem:[%s1605 + $0x24] sm:$0xf]
        %v1616 = vld [vmem:[%s1605 + $0x28] sm:$0xf]
        %v1617 = vld [vmem:[%s1605 + $0x2c] sm:$0xf]
        %v1618 = vld [vmem:[%s1605 + $0x30] sm:$0xf]
        %v1619 = vld [vmem:[%s1605 + $0x34] sm:$0xf]
        %v1620 = vld [vmem:[%s1605 + $0x38] sm:$0xf]
        %v1621 = vld [vmem:[%s1605 + $0x3c] sm:$0xf]
        %v1638 = vunpack.c.l.b16 %v1606
        %v1639 = vunpack.c.l.b16 %v1607
        %v1640 = vunpack.c.l.b16 %v1608
        %v1641 = vunpack.c.l.b16 %v1609
        %v1642 = vunpack.c.l.b16 %v1610
        %v1643 = vunpack.c.l.b16 %v1611
        %v1644 = vunpack.c.l.b16 %v1612
        %v1645 = vunpack.c.l.b16 %v1613
        %v1646 = vunpack.c.l.b16 %v1614
        %v1647 = vunpack.c.l.b16 %v1615
        %v1648 = vunpack.c.l.b16 %v1616
        %v1649 = vunpack.c.l.b16 %v1617
        %v1650 = vunpack.c.l.b16 %v1618
        %v1651 = vunpack.c.l.b16 %v1619
        %v1652 = vunpack.c.l.b16 %v1620
        %v1653 = vunpack.c.l.b16 %v1621
        %v1654 = vpack.c.b16 %v1639, %v1638
        %v1655 = vpack.c.b16 %v1641, %v1640
        %v1656 = vpack.c.b16 %v1643, %v1642
        %v1657 = vpack.c.b16 %v1645, %v1644
        %v1658 = vpack.c.b16 %v1647, %v1646
        %v1659 = vpack.c.b16 %v1649, %v1648
        %v1660 = vpack.c.b16 %v1651, %v1650
        %v1661 = vpack.c.b16 %v1653, %v1652
        %1670 = vmatprep.subr.bf16.mxu0 0
        %1671 = vmatpush1.bf16.msra.mxu0 %v1654
        %1672 = vmatprep.subr.bf16.mxu0 0
        %1673 = vmatpush1.bf16.msra.mxu0 %v1655
        %1674 = vmatprep.subr.bf16.mxu0 0
        %1675 = vmatpush1.bf16.msra.mxu0 %v1656
        %1676 = vmatprep.subr.bf16.mxu0 0
        %1677 = vmatpush1.bf16.msra.mxu0 %v1657
        %1678 = vmatprep.subr.bf16.mxu0 0
        %1679 = vmatpush1.bf16.msra.mxu0 %v1658
        %1680 = vmatprep.subr.bf16.mxu0 0
        %1681 = vmatpush1.bf16.msra.mxu0 %v1659
        %1682 = vmatprep.subr.bf16.mxu0 0
        %1683 = vmatpush1.bf16.msra.mxu0 %v1660
        %1684 = vmatprep.subr.bf16.mxu0 0
        %1685 = vmatpush1.bf16.msra.mxu0 %v1661
        %1686 = vmatprep.subr.bf16.mxu0 0
        %1687 = vmatpush1.bf16.msra.mxu0 0
        %1688 = vmatprep.subr.bf16.mxu0 0
        %1689 = vmatpush1.bf16.msra.mxu0 0
        %1690 = vmatprep.subr.bf16.mxu0 0
        %1691 = vmatpush1.bf16.msra.mxu0 0
        %1692 = vmatprep.subr.bf16.mxu0 0
        %1693 = vmatpush1.bf16.msra.mxu0 0
        %1694 = vmatprep.subr.bf16.mxu0 0
        %1695 = vmatpush1.bf16.msra.mxu0 0
        %1696 = vmatprep.subr.bf16.mxu0 0
        %1697 = vmatpush1.bf16.msra.mxu0 0
        %1698 = vmatprep.subr.bf16.mxu0 0
        %1699 = vmatpush1.bf16.msra.mxu0 0
        %1700 = vmatprep.subr.bf16.mxu0 0
        %1701 = vmatpush1.bf16.msra.mxu0 0
        %1702 = vmatprep.mubr.bf16.mxu0 0
        %1703 = vmatmul.mubr.bf16.gmra.mrb[0].mxu0 %v1604
        %v1704 = vpop.f32.mrb[0].mxu0
        %v1705 = vadd.f32 0.0, %v1704
        %v1706 = vpop.f32.mrb[0].mxu0
        %v1707 = vpop.f32.mrb[0].mxu0
        %v1708 = vpop.f32.mrb[0].mxu0
        %1709 = vdwg.mxu0
        %v1710 = vadd.f32 %v1594, %v1705
        %vm1711 = vcmp.eq.s32.totalorder %v1361, 3
        %v1712 = vsel %vm1711, %v1358, 0.0
        %v1713 = vsel %vm1365, %v1712, 0.0
        %v1714 = vrot.slane %v1713, 4
        %v1715 = vadd.f32 %v1713, %v1714
        %v1716 = vrot.slane %v1715, 2
        %v1717 = vadd.f32 %v1715, %v1716
        %v1718 = vrot.slane %v1717, 1
        %v1719 = vadd.f32 %v1717, %v1718
        %v1720 = vpack.c.bf16 %v1719, %v1719
        %s1721 = scalar_lea.vmem %s3, 192
        %v1722 = vld [vmem:[%s1721] sm:$0xf]
        %v1723 = vld [vmem:[%s1721 + $0x4] sm:$0xf]
        %v1724 = vld [vmem:[%s1721 + $0x8] sm:$0xf]
        %v1725 = vld [vmem:[%s1721 + $0xc] sm:$0xf]
        %v1726 = vld [vmem:[%s1721 + $0x10] sm:$0xf]
        %v1727 = vld [vmem:[%s1721 + $0x14] sm:$0xf]
        %v1728 = vld [vmem:[%s1721 + $0x18] sm:$0xf]
        %v1729 = vld [vmem:[%s1721 + $0x1c] sm:$0xf]
        %v1730 = vld [vmem:[%s1721 + $0x20] sm:$0xf]
        %v1731 = vld [vmem:[%s1721 + $0x24] sm:$0xf]
        %v1732 = vld [vmem:[%s1721 + $0x28] sm:$0xf]
        %v1733 = vld [vmem:[%s1721 + $0x2c] sm:$0xf]
        %v1734 = vld [vmem:[%s1721 + $0x30] sm:$0xf]
        %v1735 = vld [vmem:[%s1721 + $0x34] sm:$0xf]
        %v1736 = vld [vmem:[%s1721 + $0x38] sm:$0xf]
        %v1737 = vld [vmem:[%s1721 + $0x3c] sm:$0xf]
        %v1754 = vunpack.c.l.b16 %v1722
        %v1755 = vunpack.c.l.b16 %v1723
        %v1756 = vunpack.c.l.b16 %v1724
        %v1757 = vunpack.c.l.b16 %v1725
        %v1758 = vunpack.c.l.b16 %v1726
        %v1759 = vunpack.c.l.b16 %v1727
        %v1760 = vunpack.c.l.b16 %v1728
        %v1761 = vunpack.c.l.b16 %v1729
        %v1762 = vunpack.c.l.b16 %v1730
        %v1763 = vunpack.c.l.b16 %v1731
        %v1764 = vunpack.c.l.b16 %v1732
        %v1765 = vunpack.c.l.b16 %v1733
        %v1766 = vunpack.c.l.b16 %v1734
        %v1767 = vunpack.c.l.b16 %v1735
        %v1768 = vunpack.c.l.b16 %v1736
        %v1769 = vunpack.c.l.b16 %v1737
        %v1770 = vpack.c.b16 %v1755, %v1754
        %v1771 = vpack.c.b16 %v1757, %v1756
        %v1772 = vpack.c.b16 %v1759, %v1758
        %v1773 = vpack.c.b16 %v1761, %v1760
        %v1774 = vpack.c.b16 %v1763, %v1762
        %v1775 = vpack.c.b16 %v1765, %v1764
        %v1776 = vpack.c.b16 %v1767, %v1766
        %v1777 = vpack.c.b16 %v1769, %v1768
        %1786 = vmatprep.subr.bf16.mxu0 0
        %1787 = vmatpush1.bf16.msra.mxu0 %v1770
        %1788 = vmatprep.subr.bf16.mxu0 0
        %1789 = vmatpush1.bf16.msra.mxu0 %v1771
        %1790 = vmatprep.subr.bf16.mxu0 0
        %1791 = vmatpush1.bf16.msra.mxu0 %v1772
        %1792 = vmatprep.subr.bf16.mxu0 0
        %1793 = vmatpush1.bf16.msra.mxu0 %v1773
        %1794 = vmatprep.subr.bf16.mxu0 0
        %1795 = vmatpush1.bf16.msra.mxu0 %v1774
        %1796 = vmatprep.subr.bf16.mxu0 0
        %1797 = vmatpush1.bf16.msra.mxu0 %v1775
        %1798 = vmatprep.subr.bf16.mxu0 0
        %1799 = vmatpush1.bf16.msra.mxu0 %v1776
        %1800 = vmatprep.subr.bf16.mxu0 0
        %1801 = vmatpush1.bf16.msra.mxu0 %v1777
        %1802 = vmatprep.subr.bf16.mxu0 0
        %1803 = vmatpush1.bf16.msra.mxu0 0
        %1804 = vmatprep.subr.bf16.mxu0 0
        %1805 = vmatpush1.bf16.msra.mxu0 0
        %1806 = vmatprep.subr.bf16.mxu0 0
        %1807 = vmatpush1.bf16.msra.mxu0 0
        %1808 = vmatprep.subr.bf16.mxu0 0
        %1809 = vmatpush1.bf16.msra.mxu0 0
        %1810 = vmatprep.subr.bf16.mxu0 0
        %1811 = vmatpush1.bf16.msra.mxu0 0
        %1812 = vmatprep.subr.bf16.mxu0 0
        %1813 = vmatpush1.bf16.msra.mxu0 0
        %1814 = vmatprep.subr.bf16.mxu0 0
        %1815 = vmatpush1.bf16.msra.mxu0 0
        %1816 = vmatprep.subr.bf16.mxu0 0
        %1817 = vmatpush1.bf16.msra.mxu0 0
        %1818 = vmatprep.mubr.bf16.mxu0 0
        %1819 = vmatmul.mubr.bf16.gmra.mrb[0].mxu0 %v1720
        %v1820 = vpop.f32.mrb[0].mxu0
        %v1821 = vadd.f32 0.0, %v1820
        %v1822 = vpop.f32.mrb[0].mxu0
        %v1823 = vpop.f32.mrb[0].mxu0
        %v1824 = vpop.f32.mrb[0].mxu0
        %1825 = vdwg.mxu0
        %v1826 = vadd.f32 %v1710, %v1821
        %v1827 = vmax.f32 %v1826, 0.0
        %1828 = vst [vmem:[%s415] sm:$0x1] %v1827
        %v1829 = vpack.c.bf16 %v1827, %v1827
        %v1830 = vld [vmem:[%s5] sm:$0xf]
        %v1831 = vld [vmem:[%s5 + $0x4] sm:$0xf]
        %v1832 = vld [vmem:[%s5 + $0x8] sm:$0xf]
        %v1833 = vld [vmem:[%s5 + $0xc] sm:$0xf]
        %v1834 = vld [vmem:[%s5 + $0x10] sm:$0xf]
        %v1835 = vld [vmem:[%s5 + $0x14] sm:$0xf]
        %v1836 = vld [vmem:[%s5 + $0x18] sm:$0xf]
        %v1837 = vld [vmem:[%s5 + $0x1c] sm:$0xf]
        %v1838 = vld [vmem:[%s5 + $0x20] sm:$0xf]
        %v1839 = vld [vmem:[%s5 + $0x24] sm:$0xf]
        %v1840 = vld [vmem:[%s5 + $0x28] sm:$0xf]
        %v1841 = vld [vmem:[%s5 + $0x2c] sm:$0xf]
        %v1842 = vld [vmem:[%s5 + $0x30] sm:$0xf]
        %v1843 = vld [vmem:[%s5 + $0x34] sm:$0xf]
        %v1844 = vld [vmem:[%s5 + $0x38] sm:$0xf]
        %v1845 = vld [vmem:[%s5 + $0x3c] sm:$0xf]
        %v1846 = vld [vmem:[%s6] sm:$0x1]
        %v1863 = vunpack.c.l.b16 %v1830
        %v1864 = vunpack.c.l.b16 %v1831
        %v1865 = vunpack.c.l.b16 %v1832
        %v1866 = vunpack.c.l.b16 %v1833
        %v1867 = vunpack.c.l.b16 %v1834
        %v1868 = vunpack.c.l.b16 %v1835
        %v1869 = vunpack.c.l.b16 %v1836
        %v1870 = vunpack.c.l.b16 %v1837
        %v1871 = vunpack.c.l.b16 %v1838
        %v1872 = vunpack.c.l.b16 %v1839
        %v1873 = vunpack.c.l.b16 %v1840
        %v1874 = vunpack.c.l.b16 %v1841
        %v1875 = vunpack.c.l.b16 %v1842
        %v1876 = vunpack.c.l.b16 %v1843
        %v1877 = vunpack.c.l.b16 %v1844
        %v1878 = vunpack.c.l.b16 %v1845
        %v1879 = vpack.c.b16 %v1864, %v1863
        %v1880 = vpack.c.b16 %v1866, %v1865
        %v1881 = vpack.c.b16 %v1868, %v1867
        %v1882 = vpack.c.b16 %v1870, %v1869
        %v1883 = vpack.c.b16 %v1872, %v1871
        %v1884 = vpack.c.b16 %v1874, %v1873
        %v1885 = vpack.c.b16 %v1876, %v1875
        %v1886 = vpack.c.b16 %v1878, %v1877
        %1895 = vmatprep.subr.bf16.mxu0 0
        %1896 = vmatpush1.bf16.msra.mxu0 %v1879
        %1897 = vmatprep.subr.bf16.mxu0 0
        %1898 = vmatpush1.bf16.msra.mxu0 %v1880
        %1899 = vmatprep.subr.bf16.mxu0 0
        %1900 = vmatpush1.bf16.msra.mxu0 %v1881
        %1901 = vmatprep.subr.bf16.mxu0 0
        %1902 = vmatpush1.bf16.msra.mxu0 %v1882
        %1903 = vmatprep.subr.bf16.mxu0 0
        %1904 = vmatpush1.bf16.msra.mxu0 %v1883
        %1905 = vmatprep.subr.bf16.mxu0 0
        %1906 = vmatpush1.bf16.msra.mxu0 %v1884
        %1907 = vmatprep.subr.bf16.mxu0 0
        %1908 = vmatpush1.bf16.msra.mxu0 %v1885
        %1909 = vmatprep.subr.bf16.mxu0 0
        %1910 = vmatpush1.bf16.msra.mxu0 %v1886
        %1911 = vmatprep.subr.bf16.mxu0 0
        %1912 = vmatpush1.bf16.msra.mxu0 0
        %1913 = vmatprep.subr.bf16.mxu0 0
        %1914 = vmatpush1.bf16.msra.mxu0 0
        %1915 = vmatprep.subr.bf16.mxu0 0
        %1916 = vmatpush1.bf16.msra.mxu0 0
        %1917 = vmatprep.subr.bf16.mxu0 0
        %1918 = vmatpush1.bf16.msra.mxu0 0
        %1919 = vmatprep.subr.bf16.mxu0 0
        %1920 = vmatpush1.bf16.msra.mxu0 0
        %1921 = vmatprep.subr.bf16.mxu0 0
        %1922 = vmatpush1.bf16.msra.mxu0 0
        %1923 = vmatprep.subr.bf16.mxu0 0
        %1924 = vmatpush1.bf16.msra.mxu0 0
        %1925 = vmatprep.subr.bf16.mxu0 0
        %1926 = vmatpush1.bf16.msra.mxu0 0
        %1927 = vmatprep.mubr.bf16.mxu0 0
        %1928 = vmatmul.mubr.bf16.gmra.mrb[0].mxu0 %v1829
        %v1929 = vpop.f32.mrb[0].mxu0
        %v1930 = vadd.f32 %v1846, %v1929
        %v1931 = vpop.f32.mrb[0].mxu0
        %v1932 = vpop.f32.mrb[0].mxu0
        %v1933 = vpop.f32.mrb[0].mxu0
        %1934 = vdwg.mxu0
        %v1935 = vmax.f32 %v1930, 0.0
        %1936 = vst [vmem:[%s421] sm:$0x1] %v1935
        %v1937 = vpack.c.bf16 %v1935, %v1935
        %v1938 = vld [vmem:[%s7] sm:$0xf]
        %v1939 = vld [vmem:[%s7 + $0x4] sm:$0xf]
        %v1940 = vld [vmem:[%s7 + $0x8] sm:$0xf]
        %v1941 = vld [vmem:[%s7 + $0xc] sm:$0xf]
        %v1942 = vld [vmem:[%s7 + $0x10] sm:$0xf]
        %v1943 = vld [vmem:[%s7 + $0x14] sm:$0xf]
        %v1944 = vld [vmem:[%s7 + $0x18] sm:$0xf]
        %v1945 = vld [vmem:[%s7 + $0x1c] sm:$0xf]
        %v1946 = vld [vmem:[%s7 + $0x20] sm:$0xf]
        %v1947 = vld [vmem:[%s7 + $0x24] sm:$0xf]
        %v1948 = vld [vmem:[%s7 + $0x28] sm:$0xf]
        %v1949 = vld [vmem:[%s7 + $0x2c] sm:$0xf]
        %v1950 = vld [vmem:[%s7 + $0x30] sm:$0xf]
        %v1951 = vld [vmem:[%s7 + $0x34] sm:$0xf]
        %v1952 = vld [vmem:[%s7 + $0x38] sm:$0xf]
        %v1953 = vld [vmem:[%s7 + $0x3c] sm:$0xf]
        %v1954 = vld [vmem:[%s8] sm:$0x1]
        %v1971 = vunpack.c.l.b16 %v1938
        %v1972 = vunpack.c.l.b16 %v1939
        %v1973 = vunpack.c.l.b16 %v1940
        %v1974 = vunpack.c.l.b16 %v1941
        %v1975 = vunpack.c.l.b16 %v1942
        %v1976 = vunpack.c.l.b16 %v1943
        %v1977 = vunpack.c.l.b16 %v1944
        %v1978 = vunpack.c.l.b16 %v1945
        %v1979 = vunpack.c.l.b16 %v1946
        %v1980 = vunpack.c.l.b16 %v1947
        %v1981 = vunpack.c.l.b16 %v1948
        %v1982 = vunpack.c.l.b16 %v1949
        %v1983 = vunpack.c.l.b16 %v1950
        %v1984 = vunpack.c.l.b16 %v1951
        %v1985 = vunpack.c.l.b16 %v1952
        %v1986 = vunpack.c.l.b16 %v1953
        %v1987 = vpack.c.b16 %v1972, %v1971
        %v1988 = vpack.c.b16 %v1974, %v1973
        %v1989 = vpack.c.b16 %v1976, %v1975
        %v1990 = vpack.c.b16 %v1978, %v1977
        %v1991 = vpack.c.b16 %v1980, %v1979
        %v1992 = vpack.c.b16 %v1982, %v1981
        %v1993 = vpack.c.b16 %v1984, %v1983
        %v1994 = vpack.c.b16 %v1986, %v1985
        %2003 = vmatprep.subr.bf16.mxu0 0
        %2004 = vmatpush1.bf16.msra.mxu0 %v1987
        %2005 = vmatprep.subr.bf16.mxu0 0
        %2006 = vmatpush1.bf16.msra.mxu0 %v1988
        %2007 = vmatprep.subr.bf16.mxu0 0
        %2008 = vmatpush1.bf16.msra.mxu0 %v1989
        %2009 = vmatprep.subr.bf16.mxu0 0
        %2010 = vmatpush1.bf16.msra.mxu0 %v1990
        %2011 = vmatprep.subr.bf16.mxu0 0
        %2012 = vmatpush1.bf16.msra.mxu0 %v1991
        %2013 = vmatprep.subr.bf16.mxu0 0
        %2014 = vmatpush1.bf16.msra.mxu0 %v1992
        %2015 = vmatprep.subr.bf16.mxu0 0
        %2016 = vmatpush1.bf16.msra.mxu0 %v1993
        %2017 = vmatprep.subr.bf16.mxu0 0
        %2018 = vmatpush1.bf16.msra.mxu0 %v1994
        %2019 = vmatprep.subr.bf16.mxu0 0
        %2020 = vmatpush1.bf16.msra.mxu0 0
        %2021 = vmatprep.subr.bf16.mxu0 0
        %2022 = vmatpush1.bf16.msra.mxu0 0
        %2023 = vmatprep.subr.bf16.mxu0 0
        %2024 = vmatpush1.bf16.msra.mxu0 0
        %2025 = vmatprep.subr.bf16.mxu0 0
        %2026 = vmatpush1.bf16.msra.mxu0 0
        %2027 = vmatprep.subr.bf16.mxu0 0
        %2028 = vmatpush1.bf16.msra.mxu0 0
        %2029 = vmatprep.subr.bf16.mxu0 0
        %2030 = vmatpush1.bf16.msra.mxu0 0
        %2031 = vmatprep.subr.bf16.mxu0 0
        %2032 = vmatpush1.bf16.msra.mxu0 0
        %2033 = vmatprep.subr.bf16.mxu0 0
        %2034 = vmatpush1.bf16.msra.mxu0 0
        %2035 = vmatprep.mubr.bf16.mxu0 0
        %2036 = vmatmul.mubr.bf16.gmra.mrb[0].mxu0 %v1937
        %v2037 = vpop.f32.mrb[0].mxu0
        %v2038 = vadd.f32 %v1954, %v2037
        %v2039 = vpop.f32.mrb[0].mxu0
        %v2040 = vpop.f32.mrb[0].mxu0
        %v2041 = vpop.f32.mrb[0].mxu0
        %2042 = vdwg.mxu0
        %2043 = vst [vmem:[%s427] sm:$0x1] %v2038
        %p2044 = scmp.lt.s32.totalorder %s30, 1
        %s2045 = scalar_select %p2044, %s30, 1
        %s2046 = smul.addr %s2045, 4
        %s2047 = scalar_lea.vmem %s9, %s2046
        %s2048 = sand.u32 %s258, 1
        %s2049 = scalar_lea.sflag [#allocation3], %s2048
        %s2050 = sand.u32 %s258, 1
        %s2051 = scalar_lea.vmem [#allocation2], %s2050
        %s2052 = sand.u32 %s30, 1
        %s2053 = scalar_lea.sflag [#allocation5], %s2052
        %s2054 = sand.u32 %s284, 1
        %s2055 = scalar_lea.vmem [#allocation4], %s2054
        %s2056 = sand.u32 %s30, 1
        %s2057 = scalar_lea.sflag [#allocation5], %s2056
        %s2058 = sand.u32 %s310, 1
        %s2059 = scalar_lea.vmem [#allocation6], %s2058
        // Predicated region
        $region57: #{convnet_forward.5} parent=55 // pred_check
          %p2060 = pneg %p242
        $region58: #{convnet_forward.5} parent=55 // pred_check_branch
          %2062 = sbr.rel (%p2060) target = $region60
        $region59: #{convnet_forward.5} parent=55 // pred_region
          _
        $region60: #{convnet_forward.5} parent=55 // pred_fallthru
          _
        // Predicated region
        $region61: #{convnet_forward.5} parent=55 // pred_check
          %p2063 = pneg %p268
        $region62: #{convnet_forward.5} parent=55 // pred_check_branch
          %2065 = sbr.rel (%p2063) target = $region64
        $region63: #{convnet_forward.5} parent=55 // pred_region
          %s2067 = ssub.s32 16, 16
          %2068 = vsyncadd %s2049, %s2067
          %s2069 = smul.addr %s30, 16
          %s2070 = scalar_lea.hbm %s10, %s2069
          %s2072 = sshll.u32 %s2051, 4
          %s2073 = int_to_ptr.vmem [resolvable:$true] %s2072
          %2075 = dma.vmem_to_hbm [thread:$0]  %s2073, 16, %s2070, %s2049
        $region64: #{convnet_forward.5} parent=55 // pred_fallthru
          _
        // Predicated region
        $region65: #{convnet_forward.5} parent=55 // pred_check
          %p2076 = pneg %p294
        $region66: #{convnet_forward.5} parent=55 // pred_check_branch
          %2078 = sbr.rel (%p2076) target = $region68
        $region67: #{convnet_forward.5} parent=55 // pred_region
          %s2080 = ssub.s32 16, 16
          %2081 = vsyncadd %s2053, %s2080
          %s2082 = smul.addr %s30, 16
          %s2083 = scalar_lea.hbm %s11, %s2082
          %s2085 = sshll.u32 %s2055, 4
          %s2086 = int_to_ptr.vmem [resolvable:$true] %s2085
          %2088 = dma.vmem_to_hbm [thread:$0]  %s2086, 16, %s2083, %s2053
        $region68: #{convnet_forward.5} parent=55 // pred_fallthru
          _
        // Predicated region
        $region69: #{convnet_forward.5} parent=55 // pred_check
          %p2089 = pneg %p320
        $region70: #{convnet_forward.5} parent=55 // pred_check_branch
          %2091 = sbr.rel (%p2089) target = $region72
        $region71: #{convnet_forward.5} parent=55 // pred_region
          %s2093 = ssub.s32 16, 16
          %2094 = vsyncadd %s2057, %s2093
          %s2095 = smul.addr %s30, 16
          %s2096 = scalar_lea.hbm %s12, %s2095
          %s2098 = sshll.u32 %s2059, 4
          %s2099 = int_to_ptr.vmem [resolvable:$true] %s2098
          %2101 = dma.vmem_to_hbm [thread:$0]  %s2099, 16, %s2096, %s2057
        $region72: #{convnet_forward.5} parent=55 // pred_fallthru
          _
      $region56: #{convnet_forward.5} parent=5 // pred_fallthru
        _
      %p2102 = scmp.le.s32.totalorder 2, %s25
      // Predicated region
      $region73: #{convnet_forward.5} parent=5 // pred_check
        %p2103 = pneg %p2102
      $region74: #{convnet_forward.5} parent=5 // pred_check_branch
        %2105 = sbr.rel (%p2103) target = $region76
      $region75: #{convnet_forward.5} parent=5 // pred_region
        %s2106 = ssub.s32 %s25, 2
        // Predicated region
        $region77: #{convnet_forward.5} parent=75 // pred_check
          %p2107 = pneg %p248
        $region78: #{convnet_forward.5} parent=75 // pred_check_branch
          %2109 = sbr.rel (%p2107) target = $region80
        $region79: #{convnet_forward.5} parent=75 // pred_region
          %p2110 = scmp.lt.s32.totalorder %s31, 1
          %s2111 = scalar_select %p2110, %s31, 1
          %s2112 = smul.addr %s2111, 4
          %s2113 = scalar_lea.vmem %s9, %s2112
        $region80: #{convnet_forward.5} parent=75 // pred_fallthru
          _
        // Predicated region
        $region81: #{convnet_forward.5} parent=75 // pred_check
          %p2114 = pneg %p274
        $region82: #{convnet_forward.5} parent=75 // pred_check_branch
          %2116 = sbr.rel (%p2114) target = $region84
        $region83: #{convnet_forward.5} parent=75 // pred_region
          %s2117 = sand.u32 %s259, 1
          %s2118 = scalar_lea.sflag [#allocation3], %s2117
          %s2119 = sand.u32 %s259, 1
          %s2120 = scalar_lea.vmem [#allocation2], %s2119
          %2121 = dma.done %s2118, 16
        $region84: #{convnet_forward.5} parent=75 // pred_fallthru
          _
        // Predicated region
        $region85: #{convnet_forward.5} parent=75 // pred_check
          %p2122 = pneg %p300
        $region86: #{convnet_forward.5} parent=75 // pred_check_branch
          %2124 = sbr.rel (%p2122) target = $region88
        $region87: #{convnet_forward.5} parent=75 // pred_region
          %s2125 = sand.u32 %s31, 1
          %s2126 = scalar_lea.sflag [#allocation5], %s2125
          %s2127 = sand.u32 %s285, 1
          %s2128 = scalar_lea.vmem [#allocation4], %s2127
          %2129 = dma.done %s2126, 16
        $region88: #{convnet_forward.5} parent=75 // pred_fallthru
          _
        // Predicated region
        $region89: #{convnet_forward.5} parent=75 // pred_check
          %p2130 = pneg %p326
        $region90: #{convnet_forward.5} parent=75 // pred_check_branch
          %2132 = sbr.rel (%p2130) target = $region92
        $region91: #{convnet_forward.5} parent=75 // pred_region
          %s2133 = sand.u32 %s31, 1
          %s2134 = scalar_lea.sflag [#allocation5], %s2133
          %s2135 = sand.u32 %s311, 1
          %s2136 = scalar_lea.vmem [#allocation6], %s2135
          %2137 = dma.done %s2134, 16
        $region92: #{convnet_forward.5} parent=75 // pred_fallthru
          _
      $region76: #{convnet_forward.5} parent=5 // pred_fallthru
        _
    $region6: #{convnet_forward.5} parent=1 // loop_footer
      %s29 = sadd.s32 1, %s25
    $region7: #{convnet_forward.5} parent=1 // loop_footer_branch
      %24 = sbr.rel target = $region3
    $region8: #{convnet_forward.5} parent=1 // loop_exit
      _
    %2138 = vsyncpa [#allocation3], 1
    %s2139 = scalar_lea.sflag [#allocation3], 1
    %2140 = vsyncpa %s2139, 1
    %2141 = vsyncpa [#allocation5], 1
    %s2142 = scalar_lea.sflag [#allocation5], 1
    %2143 = vsyncpa %s2142, 1

</llo_original>
